<compile_context>
chip_gen: v7x
topology: tpu7x:2x2x1
jax: 0.10.0
libtpu: 0.0.40
codegen_flags: <defaults>
</compile_context>

<pallas_src>
import jax
import jax.numpy as jnp
from jax.experimental import pallas as pl
from jax.experimental.pallas import tpu as pltpu

LN_EPS = 1e-5            # torch nn.LayerNorm default
MASK_NEG = -1e30         # additive causal-mask bias; exp() underflows to exactly 0
N_PARAMS = 26


# ---------------------------------------------------------------------------
# Shared math (used by both the Pallas kernel and the pure-JAX reference).
# ---------------------------------------------------------------------------
def _layernorm(x, g, b):
    mu = jnp.mean(x, axis=-1, keepdims=True)
    var = jnp.mean((x - mu) ** 2, axis=-1, keepdims=True)
    return (x - mu) * jax.lax.rsqrt(var + LN_EPS) * g + b


def _gelu_exact(x):
    # torch nn.GELU() default = exact erf formulation
    return 0.5 * x * (1.0 + jax.lax.erf(x * (1.0 / jnp.sqrt(jnp.float32(2.0)))))


def _split_heads(x, nhead, head_dim):
    # (t, nhead*head_dim) -> (nhead, t, head_dim): leading-axis stack of lane slices.
    return jnp.stack(
        [x[:, h * head_dim:(h + 1) * head_dim] for h in range(nhead)], axis=0)


def _mha(q_in, kv_in, wq, bq, wk, bk, wv, bv, wo, bo,
         nhead, head_dim, attn_bias, inv_fn, merge_fn):
    """Multi-head attention: full-width q/k/v projections, head-batched score and
    context matmuls, single concat-heads output projection."""
    q = jnp.dot(q_in, wq, preferred_element_type=jnp.float32) + bq
    k = jnp.dot(kv_in, wk, preferred_element_type=jnp.float32) + bk
    v = jnp.dot(kv_in, wv, preferred_element_type=jnp.float32) + bv

    qh = _split_heads(q, nhead, head_dim)       # (h, tq, d)
    kh = _split_heads(k, nhead, head_dim)       # (h, tk, d)
    vh = _split_heads(v, nhead, head_dim)       # (h, tk, d)

    scale = jnp.float32(1.0 / (head_dim ** 0.5))
    s = jnp.einsum('hqd,hkd->hqk', qh, kh,
                   preferred_element_type=jnp.float32) * scale
    if attn_bias is not None:
        s = s + attn_bias                       # (tq, tk) bias broadcast over heads
    m = jnp.max(s, axis=-1, keepdims=True)
    e = jnp.exp(s - m)
    w = e * inv_fn(jnp.sum(e, axis=-1, keepdims=True))
    ctx = jnp.einsum('hqk,hkd->hqd', w, vh,
                     preferred_element_type=jnp.float32)    # (h, tq, d)
    ctx2d = merge_fn(ctx)                        # (tq, nhead*head_dim)
    return jnp.dot(ctx2d, wo, preferred_element_type=jnp.float32) + bo


# ---------------------------------------------------------------------------
# Pallas kernel
# ---------------------------------------------------------------------------
def _make_kernel(nhead, head_dim, tq, t_full, ff_chunk):
    def kernel(tgt_q_ref, tgt_kv_ref, enc_ref,
               ln1_g, ln1_b, ln2_g, ln2_b, lnf_g, lnf_b,
               sa_wq, sa_bq, sa_wk, sa_bk, sa_wv, sa_bv, sa_wo, sa_bo,
               ca_wq, ca_bq, ca_wk, ca_bk, ca_wv, ca_bv, ca_wo, ca_bo,
               ff_w1, ff_b1, ff_w2, ff_b2,
               out_ref, ctx_scratch):
        # approx reciprocal runs on the EUP slot (vs a VALU divide)
        inv = lambda x: pl.reciprocal(x, approx=True)

        def merge_heads(ctx):
            # (h, tq, d) -> (tq, nhead*d) via the VMEM scratch (no lane concat).
            for h in range(nhead):
                ctx_scratch[:, h * head_dim:(h + 1) * head_dim] = ctx[h]
            return ctx_scratch[...]

        # Causal additive bias for this query tile, built ONCE per grid step.
        q_off = pl.program_id(1) * tq
        row = jax.lax.broadcasted_iota(jnp.int32, (tq, t_full), 0) + q_off
        col = jax.lax.broadcasted_iota(jnp.int32, (tq, t_full), 1)
        causal_bias = jnp.where(col <= row, 0.0, MASK_NEG).astype(jnp.float32)

        # x = norm1(tgt); x = x + self_attn(x, x, x, causal)
        x_q = _layernorm(tgt_q_ref[0], ln1_g[...], ln1_b[...])
        x_kv = _layernorm(tgt_kv_ref[0], ln1_g[...], ln1_b[...])
        x_q = x_q + _mha(x_q, x_kv,
                         sa_wq[...], sa_bq[...], sa_wk[...], sa_bk[...],
                         sa_wv[...], sa_bv[...], sa_wo[...], sa_bo[...],
                         nhead, head_dim, causal_bias, inv, merge_heads)

        # x = norm2(x); x = x + cross_attn(x, enc, enc)
        x_q = _layernorm(x_q, ln2_g[...], ln2_b[...])
        x_q = x_q + _mha(x_q, enc_ref[0],
                         ca_wq[...], ca_bq[...], ca_wk[...], ca_bk[...],
                         ca_wv[...], ca_bv[...], ca_wo[...], ca_bo[...],
                         nhead, head_dim, None, inv, merge_heads)

        # Pre-LN feed-forward: y = norm(x); y = y + linear2(gelu(linear1(y)))
        # K-tiled over dim_feedforward so the (tq, dff) activation and the full FF
        # weight values are never live at once.
        y = _layernorm(x_q, lnf_g[...], lnf_b[...])
        acc = y + ff_b2[...]
        dff = ff_w1.shape[1]
        for c0 in range(0, dff, ff_chunk):
            c1 = c0 + ff_chunk
            hid = jnp.dot(y, ff_w1[:, c0:c1],
                          preferred_element_type=jnp.float32) + ff_b1[:, c0:c1]
            hid = _gelu_exact(hid)
            acc = acc + jnp.dot(hid, ff_w2[c0:c1, :],
                                preferred_element_type=jnp.float32)
        out_ref[0] = acc
        # TODO(synk): nn.Dropout is modeled as identity (eval mode); training-mode RNG dropout omitted.

    return kernel


def transformer_decoder_layer(tgt, enc, params, nhead, tq_max=128):
    B, T, D = tgt.shape
    S = enc.shape[1]
    assert D % nhead == 0
    head_dim = D // nhead

    tq = T if T <= tq_max else tq_max
    if tq != T:
        assert T % tq == 0, "T must be a multiple of the query tile"

    dff = params[22].shape[1]                  # ff_w1
    ff_chunk = dff if dff <= 512 else 512
    assert dff % ff_chunk == 0

    grid = (B, T // tq)
    in_specs = [
        pl.BlockSpec((1, tq, D), lambda b, q: (b, q, 0)),   # tgt: query tile
        pl.BlockSpec((1, T, D), lambda b, q: (b, 0, 0)),    # tgt: full seq (self-attn K/V)
        pl.BlockSpec((1, S, D), lambda b, q: (b, 0, 0)),    # encoder output (cross K/V)
    ]
    # Grid-invariant weights: constant block index -> fetched once, reused each step.
    in_specs += [pl.BlockSpec(p.shape, lambda b, q: (0, 0)) for p in params]

    return pl.pallas_call(
        _make_kernel(nhead, head_dim, tq, T, ff_chunk),
        out_shape=jax.ShapeDtypeStruct((B, T, D), jnp.float32),
        grid=grid,
        in_specs=in_specs,
        out_specs=pl.BlockSpec((1, tq, D), lambda b, q: (b, q, 0)),
        scratch_shapes=[pltpu.VMEM((tq, D), jnp.float32)],
        compiler_params=pltpu.CompilerParams(
            dimension_semantics=("parallel", "parallel")),
    )(tgt, tgt, enc, *params)


# ---------------------------------------------------------------------------
# Pure-JAX reference (identical math; exact reciprocal, unchunked FFN)
# ---------------------------------------------------------------------------
def _decoder_reference(tgt_b, enc_b, params, nhead, head_dim):
    (ln1_g, ln1_b, ln2_g, ln2_b, lnf_g, lnf_b,
     sa_wq, sa_bq, sa_wk, sa_bk, sa_wv, sa_bv, sa_wo, sa_bo,
     ca_wq, ca_bq, ca_wk, ca_bk, ca_wv, ca_bv, ca_wo, ca_bo,
     ff_w1, ff_b1, ff_w2, ff_b2) = params

    T = tgt_b.shape[0]
    row = jax.lax.broadcasted_iota(jnp.int32, (T, T), 0)
    col = jax.lax.broadcasted_iota(jnp.int32, (T, T), 1)
    causal_bias = jnp.where(col <= row, 0.0, MASK_NEG).astype(jnp.float32)

    inv = lambda x: 1.0 / x
    merge = lambda ctx: jnp.concatenate([ctx[h] for h in range(nhead)], axis=1)

    x = _layernorm(tgt_b, ln1_g, ln1_b)
    x = x + _mha(x, x, sa_wq, sa_bq, sa_wk, sa_bk, sa_wv, sa_bv, sa_wo, sa_bo,
                 nhead, head_dim, causal_bias, inv, merge)
    x = _layernorm(x, ln2_g, ln2_b)
    x = x + _mha(x, enc_b, ca_wq, ca_bq, ca_wk, ca_bk, ca_wv, ca_bv, ca_wo, ca_bo,
                 nhead, head_dim, None, inv, merge)
    y = _layernorm(x, lnf_g, lnf_b)
    hid = _gelu_exact(jnp.dot(y, ff_w1, preferred_element_type=jnp.float32) + ff_b1)
    return y + jnp.dot(hid, ff_w2, preferred_element_type=jnp.float32) + ff_b2


# ---------------------------------------------------------------------------
# Deterministic parameter initialization (shapes implied by the module)
# ---------------------------------------------------------------------------
def init_params(key, d_model, dim_feedforward):
    keys = iter(jax.random.split(key, 64))

    def linear(fan_in, fan_out):
        bound = 1.0 / float(fan_in) ** 0.5
        w = jax.random.uniform(next(keys), (fan_in, fan_out), jnp.float32, -bound, bound)
        b = jax.random.uniform(next(keys), (1, fan_out), jnp.float32, -bound, bound)
        return w, b

    ones = jnp.ones((1, d_model), jnp.float32)
    zeros = jnp.zeros((1, d_model), jnp.float32)
    ln1_g, ln1_b = ones, zeros
    ln2_g, ln2_b = ones, zeros
    lnf_g, lnf_b = ones, zeros

    sa_wq, sa_bq = linear(d_model, d_model)
    sa_wk, sa_bk = linear(d_model, d_model)
    sa_wv, sa_bv = linear(d_model, d_model)
    sa_wo, sa_bo = linear(d_model, d_model)

    ca_wq, ca_bq = linear(d_model, d_model)
    ca_wk, ca_bk = linear(d_model, d_model)
    ca_wv, ca_bv = linear(d_model, d_model)
    ca_wo, ca_bo = linear(d_model, d_model)

    ff_w1, ff_b1 = linear(d_model, dim_feedforward)
    ff_w2, ff_b2 = linear(dim_feedforward, d_model)

    return (ln1_g, ln1_b, ln2_g, ln2_b, lnf_g, lnf_b,
            sa_wq, sa_bq, sa_wk, sa_bk, sa_wv, sa_bv, sa_wo, sa_bo,
            ca_wq, ca_bq, ca_wk, ca_bk, ca_wv, ca_bv, ca_wo, ca_bo,
            ff_w1, ff_b1, ff_w2, ff_b2)


if __name__ == "__main__":
    # Small but lane-dense demo shapes (D is a full 128-lane vreg width).
    B, T, S = 2, 16, 8
    D_MODEL, NHEAD, DIM_FF = 128, 4, 256
    HEAD_DIM = D_MODEL // NHEAD

    key = jax.random.PRNGKey(0)
    k_tgt, k_enc, k_par = jax.random.split(key, 3)
    tgt = jax.random.normal(k_tgt, (B, T, D_MODEL), jnp.float32)
    enc = jax.random.normal(k_enc, (B, S, D_MODEL), jnp.float32)
    params = init_params(k_par, D_MODEL, DIM_FF)

    out = jax.block_until_ready(transformer_decoder_layer(tgt, enc, params, NHEAD))

    ref_fn = jax.vmap(lambda t, e: _decoder_reference(t, e, params, NHEAD, HEAD_DIM))
    ref = jax.block_until_ready(ref_fn(tgt, enc))

    assert out.shape == (B, T, D_MODEL)
    err = float(jnp.max(jnp.abs(out - ref)))
    # Tolerance covers the approximate (EUP) reciprocal used for the in-kernel
    # softmax normalization; the reference uses an exact divide.
    assert jnp.allclose(out, ref, rtol=2e-2, atol=2e-2), err
    print("KERNEL_OK")
</pallas_src>

<mosaic_0001>
module attributes {stable_mosaic.version = 11 : i64} {
  func.func @kernel(%arg0: i32, %arg1: i32, %arg2: memref<1x16x128xf32, #tpu.memory_space<vmem>>, %arg3: memref<1x16x128xf32, #tpu.memory_space<vmem>>, %arg4: memref<1x8x128xf32, #tpu.memory_space<vmem>>, %arg5: memref<1x128xf32, #tpu.memory_space<vmem>>, %arg6: memref<1x128xf32, #tpu.memory_space<vmem>>, %arg7: memref<1x128xf32, #tpu.memory_space<vmem>>, %arg8: memref<1x128xf32, #tpu.memory_space<vmem>>, %arg9: memref<1x128xf32, #tpu.memory_space<vmem>>, %arg10: memref<1x128xf32, #tpu.memory_space<vmem>>, %arg11: memref<128x128xf32, #tpu.memory_space<vmem>>, %arg12: memref<1x128xf32, #tpu.memory_space<vmem>>, %arg13: memref<128x128xf32, #tpu.memory_space<vmem>>, %arg14: memref<1x128xf32, #tpu.memory_space<vmem>>, %arg15: memref<128x128xf32, #tpu.memory_space<vmem>>, %arg16: memref<1x128xf32, #tpu.memory_space<vmem>>, %arg17: memref<128x128xf32, #tpu.memory_space<vmem>>, %arg18: memref<1x128xf32, #tpu.memory_space<vmem>>, %arg19: memref<128x128xf32, #tpu.memory_space<vmem>>, %arg20: memref<1x128xf32, #tpu.memory_space<vmem>>, %arg21: memref<128x128xf32, #tpu.memory_space<vmem>>, %arg22: memref<1x128xf32, #tpu.memory_space<vmem>>, %arg23: memref<128x128xf32, #tpu.memory_space<vmem>>, %arg24: memref<1x128xf32, #tpu.memory_space<vmem>>, %arg25: memref<128x128xf32, #tpu.memory_space<vmem>>, %arg26: memref<1x128xf32, #tpu.memory_space<vmem>>, %arg27: memref<128x256xf32, #tpu.memory_space<vmem>>, %arg28: memref<1x256xf32, #tpu.memory_space<vmem>>, %arg29: memref<256x128xf32, #tpu.memory_space<vmem>>, %arg30: memref<1x128xf32, #tpu.memory_space<vmem>>, %arg31: memref<1x16x128xf32, #tpu.memory_space<vmem>>, %arg32: memref<16x128xf32, #tpu.memory_space<vmem>>) attributes {dimension_semantics = [#tpu.dimension_semantics<parallel>, #tpu.dimension_semantics<parallel>], iteration_bounds = array<i64: 2, 1>, scalar_prefetch = 0 : i64, scratch_operands = 1 : i64, tpu.core_type = #tpu.core_type<tc>, window_params = [{transform_indices = @transform_0, window_bounds = array<i64: 1, 16, 128>}, {transform_indices = @transform_1, window_bounds = array<i64: 1, 16, 128>}, {transform_indices = @transform_2, window_bounds = array<i64: 1, 8, 128>}, {pipeline_mode = #tpu.pipeline_mode<synchronous>, transform_indices = @transform_3, window_bounds = array<i64: 1, 128>}, {pipeline_mode = #tpu.pipeline_mode<synchronous>, transform_indices = @transform_4, window_bounds = array<i64: 1, 128>}, {pipeline_mode = #tpu.pipeline_mode<synchronous>, transform_indices = @transform_5, window_bounds = array<i64: 1, 128>}, {pipeline_mode = #tpu.pipeline_mode<synchronous>, transform_indices = @transform_6, window_bounds = array<i64: 1, 128>}, {pipeline_mode = #tpu.pipeline_mode<synchronous>, transform_indices = @transform_7, window_bounds = array<i64: 1, 128>}, {pipeline_mode = #tpu.pipeline_mode<synchronous>, transform_indices = @transform_8, window_bounds = array<i64: 1, 128>}, {pipeline_mode = #tpu.pipeline_mode<synchronous>, transform_indices = @transform_9, window_bounds = array<i64: 128, 128>}, {pipeline_mode = #tpu.pipeline_mode<synchronous>, transform_indices = @transform_10, window_bounds = array<i64: 1, 128>}, {pipeline_mode = #tpu.pipeline_mode<synchronous>, transform_indices = @transform_11, window_bounds = array<i64: 128, 128>}, {pipeline_mode = #tpu.pipeline_mode<synchronous>, transform_indices = @transform_12, window_bounds = array<i64: 1, 128>}, {pipeline_mode = #tpu.pipeline_mode<synchronous>, transform_indices = @transform_13, window_bounds = array<i64: 128, 128>}, {pipeline_mode = #tpu.pipeline_mode<synchronous>, transform_indices = @transform_14, window_bounds = array<i64: 1, 128>}, {pipeline_mode = #tpu.pipeline_mode<synchronous>, transform_indices = @transform_15, window_bounds = array<i64: 128, 128>}, {pipeline_mode = #tpu.pipeline_mode<synchronous>, transform_indices = @transform_16, window_bounds = array<i64: 1, 128>}, {pipeline_mode = #tpu.pipeline_mode<synchronous>, transform_indices = @transform_17, window_bounds = array<i64: 128, 128>}, {pipeline_mode = #tpu.pipeline_mode<synchronous>, transform_indices = @transform_18, window_bounds = array<i64: 1, 128>}, {pipeline_mode = #tpu.pipeline_mode<synchronous>, transform_indices = @transform_19, window_bounds = array<i64: 128, 128>}, {pipeline_mode = #tpu.pipeline_mode<synchronous>, transform_indices = @transform_20, window_bounds = array<i64: 1, 128>}, {pipeline_mode = #tpu.pipeline_mode<synchronous>, transform_indices = @transform_21, window_bounds = array<i64: 128, 128>}, {pipeline_mode = #tpu.pipeline_mode<synchronous>, transform_indices = @transform_22, window_bounds = array<i64: 1, 128>}, {pipeline_mode = #tpu.pipeline_mode<synchronous>, transform_indices = @transform_23, window_bounds = array<i64: 128, 128>}, {pipeline_mode = #tpu.pipeline_mode<synchronous>, transform_indices = @transform_24, window_bounds = array<i64: 1, 128>}, {pipeline_mode = #tpu.pipeline_mode<synchronous>, transform_indices = @transform_25, window_bounds = array<i64: 128, 256>}, {pipeline_mode = #tpu.pipeline_mode<synchronous>, transform_indices = @transform_26, window_bounds = array<i64: 1, 256>}, {pipeline_mode = #tpu.pipeline_mode<synchronous>, transform_indices = @transform_27, window_bounds = array<i64: 256, 128>}, {pipeline_mode = #tpu.pipeline_mode<synchronous>, transform_indices = @transform_28, window_bounds = array<i64: 1, 128>}, {transform_indices = @transform_29, window_bounds = array<i64: 1, 16, 128>}]} {
    %c16_i32 = arith.constant 16 : i32
    %0 = arith.muli %arg1, %c16_i32 : i32
    %1 = tpu.iota {dimensions = array<i32: 0>} : vector<16x16xi32>
    %2 = vector.broadcast %0 : i32 to vector<16x16xi32>
    %3 = arith.addi %1, %2 : vector<16x16xi32>
    %4 = tpu.iota {dimensions = array<i32: 1>} : vector<16x16xi32>
    %5 = arith.cmpi sle, %4, %3 : vector<16x16xi32>
    %cst = arith.constant 0.000000e+00 : f32
    %cst_0 = arith.constant -1.000000e+30 : f32
    %6 = vector.broadcast %cst : f32 to vector<16x16xf32>
    %7 = vector.broadcast %cst_0 : f32 to vector<16x16xf32>
    %8 = arith.select %5, %6, %7 : vector<16x16xi1>, vector<16x16xf32>
    %c0 = arith.constant 0 : index
    %c0_1 = arith.constant 0 : index
    %c0_2 = arith.constant 0 : index
    %9 = vector.load %arg2[%c0, %c0_1, %c0_2] : memref<1x16x128xf32, #tpu.memory_space<vmem>>, vector<1x16x128xf32>
    %10 = vector.shape_cast %9 : vector<1x16x128xf32> to vector<16x128xf32>
    %c0_3 = arith.constant 0 : index
    %c0_4 = arith.constant 0 : index
    %11 = vector.load %arg5[%c0_3, %c0_4] : memref<1x128xf32, #tpu.memory_space<vmem>>, vector<1x128xf32>
    %c0_5 = arith.constant 0 : index
    %c0_6 = arith.constant 0 : index
    %12 = vector.load %arg6[%c0_5, %c0_6] : memref<1x128xf32, #tpu.memory_space<vmem>>, vector<1x128xf32>
    %cst_7 = arith.constant dense<0.000000e+00> : vector<16xf32>
    %13 = vector.multi_reduction <add>, %10, %cst_7 [1] : vector<16x128xf32> to vector<16xf32>
    %14 = vector.shape_cast %13 : vector<16xf32> to vector<16x1xf32>
    %cst_8 = arith.constant 1.280000e+02 : f32
    %15 = vector.broadcast %cst_8 : f32 to vector<16x1xf32>
    %16 = arith.divf %14, %15 : vector<16x1xf32>
    %17 = vector.broadcast %16 : vector<16x1xf32> to vector<16x128xf32>
    %18 = arith.subf %10, %17 : vector<16x128xf32>
    %19 = arith.mulf %18, %18 : vector<16x128xf32>
    %cst_9 = arith.constant dense<0.000000e+00> : vector<16xf32>
    %20 = vector.multi_reduction <add>, %19, %cst_9 [1] : vector<16x128xf32> to vector<16xf32>
    %21 = vector.shape_cast %20 : vector<16xf32> to vector<16x1xf32>
    %cst_10 = arith.constant 1.280000e+02 : f32
    %22 = vector.broadcast %cst_10 : f32 to vector<16x1xf32>
    %23 = arith.divf %21, %22 : vector<16x1xf32>
    %24 = vector.broadcast %16 : vector<16x1xf32> to vector<16x128xf32>
    %25 = arith.subf %10, %24 : vector<16x128xf32>
    %cst_11 = arith.constant 9.99999974E-6 : f32
    %26 = vector.broadcast %cst_11 : f32 to vector<16x1xf32>
    %27 = arith.addf %23, %26 : vector<16x1xf32>
    %28 = math.rsqrt %27 : vector<16x1xf32>
    %29 = vector.broadcast %28 : vector<16x1xf32> to vector<16x128xf32>
    %30 = arith.mulf %25, %29 : vector<16x128xf32>
    %31 = vector.broadcast %11 : vector<1x128xf32> to vector<16x128xf32>
    %32 = arith.mulf %30, %31 : vector<16x128xf32>
    %33 = vector.broadcast %12 : vector<1x128xf32> to vector<16x128xf32>
    %34 = arith.addf %32, %33 : vector<16x128xf32>
    %c0_12 = arith.constant 0 : index
    %c0_13 = arith.constant 0 : index
    %c0_14 = arith.constant 0 : index
    %35 = vector.load %arg3[%c0_12, %c0_13, %c0_14] : memref<1x16x128xf32, #tpu.memory_space<vmem>>, vector<1x16x128xf32>
    %36 = vector.shape_cast %35 : vector<1x16x128xf32> to vector<16x128xf32>
    %c0_15 = arith.constant 0 : index
    %c0_16 = arith.constant 0 : index
    %37 = vector.load %arg5[%c0_15, %c0_16] : memref<1x128xf32, #tpu.memory_space<vmem>>, vector<1x128xf32>
    %c0_17 = arith.constant 0 : index
    %c0_18 = arith.constant 0 : index
    %38 = vector.load %arg6[%c0_17, %c0_18] : memref<1x128xf32, #tpu.memory_space<vmem>>, vector<1x128xf32>
    %cst_19 = arith.constant dense<0.000000e+00> : vector<16xf32>
    %39 = vector.multi_reduction <add>, %36, %cst_19 [1] : vector<16x128xf32> to vector<16xf32>
    %40 = vector.shape_cast %39 : vector<16xf32> to vector<16x1xf32>
    %cst_20 = arith.constant 1.280000e+02 : f32
    %41 = vector.broadcast %cst_20 : f32 to vector<16x1xf32>
    %42 = arith.divf %40, %41 : vector<16x1xf32>
    %43 = vector.broadcast %42 : vector<16x1xf32> to vector<16x128xf32>
    %44 = arith.subf %36, %43 : vector<16x128xf32>
    %45 = arith.mulf %44, %44 : vector<16x128xf32>
    %cst_21 = arith.constant dense<0.000000e+00> : vector<16xf32>
    %46 = vector.multi_reduction <add>, %45, %cst_21 [1] : vector<16x128xf32> to vector<16xf32>
    %47 = vector.shape_cast %46 : vector<16xf32> to vector<16x1xf32>
    %cst_22 = arith.constant 1.280000e+02 : f32
    %48 = vector.broadcast %cst_22 : f32 to vector<16x1xf32>
    %49 = arith.divf %47, %48 : vector<16x1xf32>
    %50 = vector.broadcast %42 : vector<16x1xf32> to vector<16x128xf32>
    %51 = arith.subf %36, %50 : vector<16x128xf32>
    %cst_23 = arith.constant 9.99999974E-6 : f32
    %52 = vector.broadcast %cst_23 : f32 to vector<16x1xf32>
    %53 = arith.addf %49, %52 : vector<16x1xf32>
    %54 = math.rsqrt %53 : vector<16x1xf32>
    %55 = vector.broadcast %54 : vector<16x1xf32> to vector<16x128xf32>
    %56 = arith.mulf %51, %55 : vector<16x128xf32>
    %57 = vector.broadcast %37 : vector<1x128xf32> to vector<16x128xf32>
    %58 = arith.mulf %56, %57 : vector<16x128xf32>
    %59 = vector.broadcast %38 : vector<1x128xf32> to vector<16x128xf32>
    %60 = arith.addf %58, %59 : vector<16x128xf32>
    %c0_24 = arith.constant 0 : index
    %c0_25 = arith.constant 0 : index
    %61 = vector.load %arg11[%c0_24, %c0_25] : memref<128x128xf32, #tpu.memory_space<vmem>>, vector<128x128xf32>
    %c0_26 = arith.constant 0 : index
    %c0_27 = arith.constant 0 : index
    %62 = vector.load %arg12[%c0_26, %c0_27] : memref<1x128xf32, #tpu.memory_space<vmem>>, vector<1x128xf32>
    %c0_28 = arith.constant 0 : index
    %c0_29 = arith.constant 0 : index
    %63 = vector.load %arg13[%c0_28, %c0_29] : memref<128x128xf32, #tpu.memory_space<vmem>>, vector<128x128xf32>
    %c0_30 = arith.constant 0 : index
    %c0_31 = arith.constant 0 : index
    %64 = vector.load %arg14[%c0_30, %c0_31] : memref<1x128xf32, #tpu.memory_space<vmem>>, vector<1x128xf32>
    %c0_32 = arith.constant 0 : index
    %c0_33 = arith.constant 0 : index
    %65 = vector.load %arg15[%c0_32, %c0_33] : memref<128x128xf32, #tpu.memory_space<vmem>>, vector<128x128xf32>
    %c0_34 = arith.constant 0 : index
    %c0_35 = arith.constant 0 : index
    %66 = vector.load %arg16[%c0_34, %c0_35] : memref<1x128xf32, #tpu.memory_space<vmem>>, vector<1x128xf32>
    %c0_36 = arith.constant 0 : index
    %c0_37 = arith.constant 0 : index
    %67 = vector.load %arg17[%c0_36, %c0_37] : memref<128x128xf32, #tpu.memory_space<vmem>>, vector<128x128xf32>
    %c0_38 = arith.constant 0 : index
    %c0_39 = arith.constant 0 : index
    %68 = vector.load %arg18[%c0_38, %c0_39] : memref<1x128xf32, #tpu.memory_space<vmem>>, vector<1x128xf32>
    %cst_40 = arith.constant dense<0.000000e+00> : vector<16x128xf32>
    %69 = tpu.matmul %34, %61, %cst_40 {dimension_numbers = #tpu.dot_dimension_numbers<[1], [0], [0], [1], [0, 0, 1, 1], [], []>} : vector<16x128xf32>, vector<128x128xf32>, vector<16x128xf32> -> vector<16x128xf32>
    %70 = vector.broadcast %62 : vector<1x128xf32> to vector<16x128xf32>
    %71 = arith.addf %69, %70 : vector<16x128xf32>
    %cst_41 = arith.constant dense<0.000000e+00> : vector<16x128xf32>
    %72 = tpu.matmul %60, %63, %cst_41 {dimension_numbers = #tpu.dot_dimension_numbers<[1], [0], [0], [1], [0, 0, 1, 1], [], []>} : vector<16x128xf32>, vector<128x128xf32>, vector<16x128xf32> -> vector<16x128xf32>
    %73 = vector.broadcast %64 : vector<1x128xf32> to vector<16x128xf32>
    %74 = arith.addf %72, %73 : vector<16x128xf32>
    %cst_42 = arith.constant dense<0.000000e+00> : vector<16x128xf32>
    %75 = tpu.matmul %60, %65, %cst_42 {dimension_numbers = #tpu.dot_dimension_numbers<[1], [0], [0], [1], [0, 0, 1, 1], [], []>} : vector<16x128xf32>, vector<128x128xf32>, vector<16x128xf32> -> vector<16x128xf32>
    %76 = vector.broadcast %66 : vector<1x128xf32> to vector<16x128xf32>
    %77 = arith.addf %75, %76 : vector<16x128xf32>
    %78 = vector.extract_strided_slice %71 {offsets = [0, 0], sizes = [16, 32], strides = [1, 1]} : vector<16x128xf32> to vector<16x32xf32>
    %79 = vector.extract_strided_slice %71 {offsets = [0, 32], sizes = [16, 32], strides = [1, 1]} : vector<16x128xf32> to vector<16x32xf32>
    %80 = vector.extract_strided_slice %71 {offsets = [0, 64], sizes = [16, 32], strides = [1, 1]} : vector<16x128xf32> to vector<16x32xf32>
    %81 = vector.extract_strided_slice %71 {offsets = [0, 96], sizes = [16, 32], strides = [1, 1]} : vector<16x128xf32> to vector<16x32xf32>
    %82 = vector.shape_cast %78 : vector<16x32xf32> to vector<1x16x32xf32>
    %83 = vector.shape_cast %79 : vector<16x32xf32> to vector<1x16x32xf32>
    %84 = vector.shape_cast %80 : vector<16x32xf32> to vector<1x16x32xf32>
    %85 = vector.shape_cast %81 : vector<16x32xf32> to vector<1x16x32xf32>
    %86 = tpu.concatenate %82, %83, %84, %85 in 0 : vector<1x16x32xf32>, vector<1x16x32xf32>, vector<1x16x32xf32>, vector<1x16x32xf32> -> vector<4x16x32xf32>
    %87 = vector.extract_strided_slice %74 {offsets = [0, 0], sizes = [16, 32], strides = [1, 1]} : vector<16x128xf32> to vector<16x32xf32>
    %88 = vector.extract_strided_slice %74 {offsets = [0, 32], sizes = [16, 32], strides = [1, 1]} : vector<16x128xf32> to vector<16x32xf32>
    %89 = vector.extract_strided_slice %74 {offsets = [0, 64], sizes = [16, 32], strides = [1, 1]} : vector<16x128xf32> to vector<16x32xf32>
    %90 = vector.extract_strided_slice %74 {offsets = [0, 96], sizes = [16, 32], strides = [1, 1]} : vector<16x128xf32> to vector<16x32xf32>
    %91 = vector.shape_cast %87 : vector<16x32xf32> to vector<1x16x32xf32>
    %92 = vector.shape_cast %88 : vector<16x32xf32> to vector<1x16x32xf32>
    %93 = vector.shape_cast %89 : vector<16x32xf32> to vector<1x16x32xf32>
    %94 = vector.shape_cast %90 : vector<16x32xf32> to vector<1x16x32xf32>
    %95 = tpu.concatenate %91, %92, %93, %94 in 0 : vector<1x16x32xf32>, vector<1x16x32xf32>, vector<1x16x32xf32>, vector<1x16x32xf32> -> vector<4x16x32xf32>
    %96 = vector.extract_strided_slice %77 {offsets = [0, 0], sizes = [16, 32], strides = [1, 1]} : vector<16x128xf32> to vector<16x32xf32>
    %97 = vector.extract_strided_slice %77 {offsets = [0, 32], sizes = [16, 32], strides = [1, 1]} : vector<16x128xf32> to vector<16x32xf32>
    %98 = vector.extract_strided_slice %77 {offsets = [0, 64], sizes = [16, 32], strides = [1, 1]} : vector<16x128xf32> to vector<16x32xf32>
    %99 = vector.extract_strided_slice %77 {offsets = [0, 96], sizes = [16, 32], strides = [1, 1]} : vector<16x128xf32> to vector<16x32xf32>
    %100 = vector.shape_cast %96 : vector<16x32xf32> to vector<1x16x32xf32>
    %101 = vector.shape_cast %97 : vector<16x32xf32> to vector<1x16x32xf32>
    %102 = vector.shape_cast %98 : vector<16x32xf32> to vector<1x16x32xf32>
    %103 = vector.shape_cast %99 : vector<16x32xf32> to vector<1x16x32xf32>
    %104 = tpu.concatenate %100, %101, %102, %103 in 0 : vector<1x16x32xf32>, vector<1x16x32xf32>, vector<1x16x32xf32>, vector<1x16x32xf32> -> vector<4x16x32xf32>
    "tpu.trace_start"() <{level = 10 : i32, message = "hqd,hkd->hqk"}> : () -> ()
    %cst_43 = arith.constant dense<0.000000e+00> : vector<4x16x16xf32>
    %105 = tpu.matmul %86, %95, %cst_43 {dimension_numbers = #tpu.dot_dimension_numbers<[2], [2], [1], [1], [0, 0, 0, 1, 1, 1], [0], [0]>} : vector<4x16x32xf32>, vector<4x16x32xf32>, vector<4x16x16xf32> -> vector<4x16x16xf32>
    "tpu.trace_stop"() : () -> ()
    %cst_44 = arith.constant 0.176776692 : f32
    %106 = vector.broadcast %cst_44 : f32 to vector<4x16x16xf32>
    %107 = arith.mulf %105, %106 : vector<4x16x16xf32>
    %108 = vector.shape_cast %8 : vector<16x16xf32> to vector<1x16x16xf32>
    %109 = vector.broadcast %108 : vector<1x16x16xf32> to vector<4x16x16xf32>
    %110 = arith.addf %107, %109 : vector<4x16x16xf32>
    %cst_45 = arith.constant dense<0xFF800000> : vector<4x16xf32>
    %111 = vector.multi_reduction <maximumf>, %110, %cst_45 [2] : vector<4x16x16xf32> to vector<4x16xf32>
    %112 = vector.shape_cast %111 : vector<4x16xf32> to vector<4x16x1xf32>
    %113 = vector.broadcast %112 : vector<4x16x1xf32> to vector<4x16x16xf32>
    %114 = arith.subf %110, %113 : vector<4x16x16xf32>
    %115 = math.exp %114 : vector<4x16x16xf32>
    %cst_46 = arith.constant dense<0.000000e+00> : vector<4x16xf32>
    %116 = vector.multi_reduction <add>, %115, %cst_46 [2] : vector<4x16x16xf32> to vector<4x16xf32>
    %117 = vector.shape_cast %116 : vector<4x16xf32> to vector<4x16x1xf32>
    %118 = tpu.reciprocal %117 {approx = true} : vector<4x16x1xf32> -> vector<4x16x1xf32>
    %119 = vector.broadcast %118 : vector<4x16x1xf32> to vector<4x16x16xf32>
    %120 = arith.mulf %115, %119 : vector<4x16x16xf32>
    "tpu.trace_start"() <{level = 10 : i32, message = "hqk,hkd->hqd"}> : () -> ()
    %cst_47 = arith.constant dense<0.000000e+00> : vector<4x16x32xf32>
    %121 = tpu.matmul %120, %104, %cst_47 {dimension_numbers = #tpu.dot_dimension_numbers<[2], [1], [1], [2], [0, 0, 0, 1, 1, 2], [0], [0]>} : vector<4x16x16xf32>, vector<4x16x32xf32>, vector<4x16x32xf32> -> vector<4x16x32xf32>
    "tpu.trace_stop"() : () -> ()
    %122 = vector.extract_strided_slice %121 {offsets = [0, 0, 0], sizes = [1, 16, 32], strides = [1, 1, 1]} : vector<4x16x32xf32> to vector<1x16x32xf32>
    %123 = vector.shape_cast %122 : vector<1x16x32xf32> to vector<16x32xf32>
    %c0_48 = arith.constant 0 : index
    %c0_49 = arith.constant 0 : index
    %124 = vector.load %arg32[%c0_48, %c0_49] : memref<16x128xf32, #tpu.memory_space<vmem>>, vector<16x32xf32>
    tpu.vector_store %arg32[%c0_48, %c0_49], %123 {strides = array<i32>} : memref<16x128xf32, #tpu.memory_space<vmem>>, vector<16x32xf32>,
    %125 = vector.extract_strided_slice %121 {offsets = [1, 0, 0], sizes = [1, 16, 32], strides = [1, 1, 1]} : vector<4x16x32xf32> to vector<1x16x32xf32>
    %126 = vector.shape_cast %125 : vector<1x16x32xf32> to vector<16x32xf32>
    %c0_50 = arith.constant 0 : index
    %c32 = arith.constant 32 : index
    %127 = vector.load %arg32[%c0_50, %c32] : memref<16x128xf32, #tpu.memory_space<vmem>>, vector<16x32xf32>
    tpu.vector_store %arg32[%c0_50, %c32], %126 {strides = array<i32>} : memref<16x128xf32, #tpu.memory_space<vmem>>, vector<16x32xf32>,
    %128 = vector.extract_strided_slice %121 {offsets = [2, 0, 0], sizes = [1, 16, 32], strides = [1, 1, 1]} : vector<4x16x32xf32> to vector<1x16x32xf32>
    %129 = vector.shape_cast %128 : vector<1x16x32xf32> to vector<16x32xf32>
    %c0_51 = arith.constant 0 : index
    %c64 = arith.constant 64 : index
    %130 = vector.load %arg32[%c0_51, %c64] : memref<16x128xf32, #tpu.memory_space<vmem>>, vector<16x32xf32>
    tpu.vector_store %arg32[%c0_51, %c64], %129 {strides = array<i32>} : memref<16x128xf32, #tpu.memory_space<vmem>>, vector<16x32xf32>,
    %131 = vector.extract_strided_slice %121 {offsets = [3, 0, 0], sizes = [1, 16, 32], strides = [1, 1, 1]} : vector<4x16x32xf32> to vector<1x16x32xf32>
    %132 = vector.shape_cast %131 : vector<1x16x32xf32> to vector<16x32xf32>
    %c0_52 = arith.constant 0 : index
    %c96 = arith.constant 96 : index
    %133 = vector.load %arg32[%c0_52, %c96] : memref<16x128xf32, #tpu.memory_space<vmem>>, vector<16x32xf32>
    tpu.vector_store %arg32[%c0_52, %c96], %132 {strides = array<i32>} : memref<16x128xf32, #tpu.memory_space<vmem>>, vector<16x32xf32>,
    %c0_53 = arith.constant 0 : index
    %c0_54 = arith.constant 0 : index
    %134 = vector.load %arg32[%c0_53, %c0_54] : memref<16x128xf32, #tpu.memory_space<vmem>>, vector<16x128xf32>
    %cst_55 = arith.constant dense<0.000000e+00> : vector<16x128xf32>
    %135 = tpu.matmul %134, %67, %cst_55 {dimension_numbers = #tpu.dot_dimension_numbers<[1], [0], [0], [1], [0, 0, 1, 1], [], []>} : vector<16x128xf32>, vector<128x128xf32>, vector<16x128xf32> -> vector<16x128xf32>
    %136 = vector.broadcast %68 : vector<1x128xf32> to vector<16x128xf32>
    %137 = arith.addf %135, %136 : vector<16x128xf32>
    %138 = arith.addf %34, %137 : vector<16x128xf32>
    %c0_56 = arith.constant 0 : index
    %c0_57 = arith.constant 0 : index
    %139 = vector.load %arg7[%c0_56, %c0_57] : memref<1x128xf32, #tpu.memory_space<vmem>>, vector<1x128xf32>
    %c0_58 = arith.constant 0 : index
    %c0_59 = arith.constant 0 : index
    %140 = vector.load %arg8[%c0_58, %c0_59] : memref<1x128xf32, #tpu.memory_space<vmem>>, vector<1x128xf32>
    %cst_60 = arith.constant dense<0.000000e+00> : vector<16xf32>
    %141 = vector.multi_reduction <add>, %138, %cst_60 [1] : vector<16x128xf32> to vector<16xf32>
    %142 = vector.shape_cast %141 : vector<16xf32> to vector<16x1xf32>
    %cst_61 = arith.constant 1.280000e+02 : f32
    %143 = vector.broadcast %cst_61 : f32 to vector<16x1xf32>
    %144 = arith.divf %142, %143 : vector<16x1xf32>
    %145 = vector.broadcast %144 : vector<16x1xf32> to vector<16x128xf32>
    %146 = arith.subf %138, %145 : vector<16x128xf32>
    %147 = arith.mulf %146, %146 : vector<16x128xf32>
    %cst_62 = arith.constant dense<0.000000e+00> : vector<16xf32>
    %148 = vector.multi_reduction <add>, %147, %cst_62 [1] : vector<16x128xf32> to vector<16xf32>
    %149 = vector.shape_cast %148 : vector<16xf32> to vector<16x1xf32>
    %cst_63 = arith.constant 1.280000e+02 : f32
    %150 = vector.broadcast %cst_63 : f32 to vector<16x1xf32>
    %151 = arith.divf %149, %150 : vector<16x1xf32>
    %152 = vector.broadcast %144 : vector<16x1xf32> to vector<16x128xf32>
    %153 = arith.subf %138, %152 : vector<16x128xf32>
    %cst_64 = arith.constant 9.99999974E-6 : f32
    %154 = vector.broadcast %cst_64 : f32 to vector<16x1xf32>
    %155 = arith.addf %151, %154 : vector<16x1xf32>
    %156 = math.rsqrt %155 : vector<16x1xf32>
    %157 = vector.broadcast %156 : vector<16x1xf32> to vector<16x128xf32>
    %158 = arith.mulf %153, %157 : vector<16x128xf32>
    %159 = vector.broadcast %139 : vector<1x128xf32> to vector<16x128xf32>
    %160 = arith.mulf %158, %159 : vector<16x128xf32>
    %161 = vector.broadcast %140 : vector<1x128xf32> to vector<16x128xf32>
    %162 = arith.addf %160, %161 : vector<16x128xf32>
    %c0_65 = arith.constant 0 : index
    %c0_66 = arith.constant 0 : index
    %c0_67 = arith.constant 0 : index
    %163 = vector.load %arg4[%c0_65, %c0_66, %c0_67] : memref<1x8x128xf32, #tpu.memory_space<vmem>>, vector<1x8x128xf32>
    %164 = vector.shape_cast %163 : vector<1x8x128xf32> to vector<8x128xf32>
    %c0_68 = arith.constant 0 : index
    %c0_69 = arith.constant 0 : index
    %165 = vector.load %arg19[%c0_68, %c0_69] : memref<128x128xf32, #tpu.memory_space<vmem>>, vector<128x128xf32>
    %c0_70 = arith.constant 0 : index
    %c0_71 = arith.constant 0 : index
    %166 = vector.load %arg20[%c0_70, %c0_71] : memref<1x128xf32, #tpu.memory_space<vmem>>, vector<1x128xf32>
    %c0_72 = arith.constant 0 : index
    %c0_73 = arith.constant 0 : index
    %167 = vector.load %arg21[%c0_72, %c0_73] : memref<128x128xf32, #tpu.memory_space<vmem>>, vector<128x128xf32>
    %c0_74 = arith.constant 0 : index
    %c0_75 = arith.constant 0 : index
    %168 = vector.load %arg22[%c0_74, %c0_75] : memref<1x128xf32, #tpu.memory_space<vmem>>, vector<1x128xf32>
    %c0_76 = arith.constant 0 : index
    %c0_77 = arith.constant 0 : index
    %169 = vector.load %arg23[%c0_76, %c0_77] : memref<128x128xf32, #tpu.memory_space<vmem>>, vector<128x128xf32>
    %c0_78 = arith.constant 0 : index
    %c0_79 = arith.constant 0 : index
    %170 = vector.load %arg24[%c0_78, %c0_79] : memref<1x128xf32, #tpu.memory_space<vmem>>, vector<1x128xf32>
    %c0_80 = arith.constant 0 : index
    %c0_81 = arith.constant 0 : index
    %171 = vector.load %arg25[%c0_80, %c0_81] : memref<128x128xf32, #tpu.memory_space<vmem>>, vector<128x128xf32>
    %c0_82 = arith.constant 0 : index
    %c0_83 = arith.constant 0 : index
    %172 = vector.load %arg26[%c0_82, %c0_83] : memref<1x128xf32, #tpu.memory_space<vmem>>, vector<1x128xf32>
    %cst_84 = arith.constant dense<0.000000e+00> : vector<16x128xf32>
    %173 = tpu.matmul %162, %165, %cst_84 {dimension_numbers = #tpu.dot_dimension_numbers<[1], [0], [0], [1], [0, 0, 1, 1], [], []>} : vector<16x128xf32>, vector<128x128xf32>, vector<16x128xf32> -> vector<16x128xf32>
    %174 = vector.broadcast %166 : vector<1x128xf32> to vector<16x128xf32>
    %175 = arith.addf %173, %174 : vector<16x128xf32>
    %cst_85 = arith.constant dense<0.000000e+00> : vector<8x128xf32>
    %176 = tpu.matmul %164, %167, %cst_85 {dimension_numbers = #tpu.dot_dimension_numbers<[1], [0], [0], [1], [0, 0, 1, 1], [], []>} : vector<8x128xf32>, vector<128x128xf32>, vector<8x128xf32> -> vector<8x128xf32>
    %177 = vector.broadcast %168 : vector<1x128xf32> to vector<8x128xf32>
    %178 = arith.addf %176, %177 : vector<8x128xf32>
    %cst_86 = arith.constant dense<0.000000e+00> : vector<8x128xf32>
    %179 = tpu.matmul %164, %169, %cst_86 {dimension_numbers = #tpu.dot_dimension_numbers<[1], [0], [0], [1], [0, 0, 1, 1], [], []>} : vector<8x128xf32>, vector<128x128xf32>, vector<8x128xf32> -> vector<8x128xf32>
    %180 = vector.broadcast %170 : vector<1x128xf32> to vector<8x128xf32>
    %181 = arith.addf %179, %180 : vector<8x128xf32>
    %182 = vector.extract_strided_slice %175 {offsets = [0, 0], sizes = [16, 32], strides = [1, 1]} : vector<16x128xf32> to vector<16x32xf32>
    %183 = vector.extract_strided_slice %175 {offsets = [0, 32], sizes = [16, 32], strides = [1, 1]} : vector<16x128xf32> to vector<16x32xf32>
    %184 = vector.extract_strided_slice %175 {offsets = [0, 64], sizes = [16, 32], strides = [1, 1]} : vector<16x128xf32> to vector<16x32xf32>
    %185 = vector.extract_strided_slice %175 {offsets = [0, 96], sizes = [16, 32], strides = [1, 1]} : vector<16x128xf32> to vector<16x32xf32>
    %186 = vector.shape_cast %182 : vector<16x32xf32> to vector<1x16x32xf32>
    %187 = vector.shape_cast %183 : vector<16x32xf32> to vector<1x16x32xf32>
    %188 = vector.shape_cast %184 : vector<16x32xf32> to vector<1x16x32xf32>
    %189 = vector.shape_cast %185 : vector<16x32xf32> to vector<1x16x32xf32>
    %190 = tpu.concatenate %186, %187, %188, %189 in 0 : vector<1x16x32xf32>, vector<1x16x32xf32>, vector<1x16x32xf32>, vector<1x16x32xf32> -> vector<4x16x32xf32>
    %191 = vector.extract_strided_slice %178 {offsets = [0, 0], sizes = [8, 32], strides = [1, 1]} : vector<8x128xf32> to vector<8x32xf32>
    %192 = vector.extract_strided_slice %178 {offsets = [0, 32], sizes = [8, 32], strides = [1, 1]} : vector<8x128xf32> to vector<8x32xf32>
    %193 = vector.extract_strided_slice %178 {offsets = [0, 64], sizes = [8, 32], strides = [1, 1]} : vector<8x128xf32> to vector<8x32xf32>
    %194 = vector.extract_strided_slice %178 {offsets = [0, 96], sizes = [8, 32], strides = [1, 1]} : vector<8x128xf32> to vector<8x32xf32>
    %195 = vector.shape_cast %191 : vector<8x32xf32> to vector<1x8x32xf32>
    %196 = vector.shape_cast %192 : vector<8x32xf32> to vector<1x8x32xf32>
    %197 = vector.shape_cast %193 : vector<8x32xf32> to vector<1x8x32xf32>
    %198 = vector.shape_cast %194 : vector<8x32xf32> to vector<1x8x32xf32>
    %199 = tpu.concatenate %195, %196, %197, %198 in 0 : vector<1x8x32xf32>, vector<1x8x32xf32>, vector<1x8x32xf32>, vector<1x8x32xf32> -> vector<4x8x32xf32>
    %200 = vector.extract_strided_slice %181 {offsets = [0, 0], sizes = [8, 32], strides = [1, 1]} : vector<8x128xf32> to vector<8x32xf32>
    %201 = vector.extract_strided_slice %181 {offsets = [0, 32], sizes = [8, 32], strides = [1, 1]} : vector<8x128xf32> to vector<8x32xf32>
    %202 = vector.extract_strided_slice %181 {offsets = [0, 64], sizes = [8, 32], strides = [1, 1]} : vector<8x128xf32> to vector<8x32xf32>
    %203 = vector.extract_strided_slice %181 {offsets = [0, 96], sizes = [8, 32], strides = [1, 1]} : vector<8x128xf32> to vector<8x32xf32>
    %204 = vector.shape_cast %200 : vector<8x32xf32> to vector<1x8x32xf32>
    %205 = vector.shape_cast %201 : vector<8x32xf32> to vector<1x8x32xf32>
    %206 = vector.shape_cast %202 : vector<8x32xf32> to vector<1x8x32xf32>
    %207 = vector.shape_cast %203 : vector<8x32xf32> to vector<1x8x32xf32>
    %208 = tpu.concatenate %204, %205, %206, %207 in 0 : vector<1x8x32xf32>, vector<1x8x32xf32>, vector<1x8x32xf32>, vector<1x8x32xf32> -> vector<4x8x32xf32>
    "tpu.trace_start"() <{level = 10 : i32, message = "hqd,hkd->hqk"}> : () -> ()
    %cst_87 = arith.constant dense<0.000000e+00> : vector<4x16x8xf32>
    %209 = tpu.matmul %190, %199, %cst_87 {dimension_numbers = #tpu.dot_dimension_numbers<[2], [2], [1], [1], [0, 0, 0, 1, 1, 1], [0], [0]>} : vector<4x16x32xf32>, vector<4x8x32xf32>, vector<4x16x8xf32> -> vector<4x16x8xf32>
    "tpu.trace_stop"() : () -> ()
    %cst_88 = arith.constant 0.176776692 : f32
    %210 = vector.broadcast %cst_88 : f32 to vector<4x16x8xf32>
    %211 = arith.mulf %209, %210 : vector<4x16x8xf32>
    %cst_89 = arith.constant dense<0xFF800000> : vector<4x16xf32>
    %212 = vector.multi_reduction <maximumf>, %211, %cst_89 [2] : vector<4x16x8xf32> to vector<4x16xf32>
    %213 = vector.shape_cast %212 : vector<4x16xf32> to vector<4x16x1xf32>
    %214 = vector.broadcast %213 : vector<4x16x1xf32> to vector<4x16x8xf32>
    %215 = arith.subf %211, %214 : vector<4x16x8xf32>
    %216 = math.exp %215 : vector<4x16x8xf32>
    %cst_90 = arith.constant dense<0.000000e+00> : vector<4x16xf32>
    %217 = vector.multi_reduction <add>, %216, %cst_90 [2] : vector<4x16x8xf32> to vector<4x16xf32>
    %218 = vector.shape_cast %217 : vector<4x16xf32> to vector<4x16x1xf32>
    %219 = tpu.reciprocal %218 {approx = true} : vector<4x16x1xf32> -> vector<4x16x1xf32>
    %220 = vector.broadcast %219 : vector<4x16x1xf32> to vector<4x16x8xf32>
    %221 = arith.mulf %216, %220 : vector<4x16x8xf32>
    "tpu.trace_start"() <{level = 10 : i32, message = "hqk,hkd->hqd"}> : () -> ()
    %cst_91 = arith.constant dense<0.000000e+00> : vector<4x16x32xf32>
    %222 = tpu.matmul %221, %208, %cst_91 {dimension_numbers = #tpu.dot_dimension_numbers<[2], [1], [1], [2], [0, 0, 0, 1, 1, 2], [0], [0]>} : vector<4x16x8xf32>, vector<4x8x32xf32>, vector<4x16x32xf32> -> vector<4x16x32xf32>
    "tpu.trace_stop"() : () -> ()
    %223 = vector.extract_strided_slice %222 {offsets = [0, 0, 0], sizes = [1, 16, 32], strides = [1, 1, 1]} : vector<4x16x32xf32> to vector<1x16x32xf32>
    %224 = vector.shape_cast %223 : vector<1x16x32xf32> to vector<16x32xf32>
    %c0_92 = arith.constant 0 : index
    %c0_93 = arith.constant 0 : index
    %225 = vector.load %arg32[%c0_92, %c0_93] : memref<16x128xf32, #tpu.memory_space<vmem>>, vector<16x32xf32>
    tpu.vector_store %arg32[%c0_92, %c0_93], %224 {strides = array<i32>} : memref<16x128xf32, #tpu.memory_space<vmem>>, vector<16x32xf32>,
    %226 = vector.extract_strided_slice %222 {offsets = [1, 0, 0], sizes = [1, 16, 32], strides = [1, 1, 1]} : vector<4x16x32xf32> to vector<1x16x32xf32>
    %227 = vector.shape_cast %226 : vector<1x16x32xf32> to vector<16x32xf32>
    %c0_94 = arith.constant 0 : index
    %c32_95 = arith.constant 32 : index
    %228 = vector.load %arg32[%c0_94, %c32_95] : memref<16x128xf32, #tpu.memory_space<vmem>>, vector<16x32xf32>
    tpu.vector_store %arg32[%c0_94, %c32_95], %227 {strides = array<i32>} : memref<16x128xf32, #tpu.memory_space<vmem>>, vector<16x32xf32>,
    %229 = vector.extract_strided_slice %222 {offsets = [2, 0, 0], sizes = [1, 16, 32], strides = [1, 1, 1]} : vector<4x16x32xf32> to vector<1x16x32xf32>
    %230 = vector.shape_cast %229 : vector<1x16x32xf32> to vector<16x32xf32>
    %c0_96 = arith.constant 0 : index
    %c64_97 = arith.constant 64 : index
    %231 = vector.load %arg32[%c0_96, %c64_97] : memref<16x128xf32, #tpu.memory_space<vmem>>, vector<16x32xf32>
    tpu.vector_store %arg32[%c0_96, %c64_97], %230 {strides = array<i32>} : memref<16x128xf32, #tpu.memory_space<vmem>>, vector<16x32xf32>,
    %232 = vector.extract_strided_slice %222 {offsets = [3, 0, 0], sizes = [1, 16, 32], strides = [1, 1, 1]} : vector<4x16x32xf32> to vector<1x16x32xf32>
    %233 = vector.shape_cast %232 : vector<1x16x32xf32> to vector<16x32xf32>
    %c0_98 = arith.constant 0 : index
    %c96_99 = arith.constant 96 : index
    %234 = vector.load %arg32[%c0_98, %c96_99] : memref<16x128xf32, #tpu.memory_space<vmem>>, vector<16x32xf32>
    tpu.vector_store %arg32[%c0_98, %c96_99], %233 {strides = array<i32>} : memref<16x128xf32, #tpu.memory_space<vmem>>, vector<16x32xf32>,
    %c0_100 = arith.constant 0 : index
    %c0_101 = arith.constant 0 : index
    %235 = vector.load %arg32[%c0_100, %c0_101] : memref<16x128xf32, #tpu.memory_space<vmem>>, vector<16x128xf32>
    %cst_102 = arith.constant dense<0.000000e+00> : vector<16x128xf32>
    %236 = tpu.matmul %235, %171, %cst_102 {dimension_numbers = #tpu.dot_dimension_numbers<[1], [0], [0], [1], [0, 0, 1, 1], [], []>} : vector<16x128xf32>, vector<128x128xf32>, vector<16x128xf32> -> vector<16x128xf32>
    %237 = vector.broadcast %172 : vector<1x128xf32> to vector<16x128xf32>
    %238 = arith.addf %236, %237 : vector<16x128xf32>
    %239 = arith.addf %162, %238 : vector<16x128xf32>
    %c0_103 = arith.constant 0 : index
    %c0_104 = arith.constant 0 : index
    %240 = vector.load %arg9[%c0_103, %c0_104] : memref<1x128xf32, #tpu.memory_space<vmem>>, vector<1x128xf32>
    %c0_105 = arith.constant 0 : index
    %c0_106 = arith.constant 0 : index
    %241 = vector.load %arg10[%c0_105, %c0_106] : memref<1x128xf32, #tpu.memory_space<vmem>>, vector<1x128xf32>
    %cst_107 = arith.constant dense<0.000000e+00> : vector<16xf32>
    %242 = vector.multi_reduction <add>, %239, %cst_107 [1] : vector<16x128xf32> to vector<16xf32>
    %243 = vector.shape_cast %242 : vector<16xf32> to vector<16x1xf32>
    %cst_108 = arith.constant 1.280000e+02 : f32
    %244 = vector.broadcast %cst_108 : f32 to vector<16x1xf32>
    %245 = arith.divf %243, %244 : vector<16x1xf32>
    %246 = vector.broadcast %245 : vector<16x1xf32> to vector<16x128xf32>
    %247 = arith.subf %239, %246 : vector<16x128xf32>
    %248 = arith.mulf %247, %247 : vector<16x128xf32>
    %cst_109 = arith.constant dense<0.000000e+00> : vector<16xf32>
    %249 = vector.multi_reduction <add>, %248, %cst_109 [1] : vector<16x128xf32> to vector<16xf32>
    %250 = vector.shape_cast %249 : vector<16xf32> to vector<16x1xf32>
    %cst_110 = arith.constant 1.280000e+02 : f32
    %251 = vector.broadcast %cst_110 : f32 to vector<16x1xf32>
    %252 = arith.divf %250, %251 : vector<16x1xf32>
    %253 = vector.broadcast %245 : vector<16x1xf32> to vector<16x128xf32>
    %254 = arith.subf %239, %253 : vector<16x128xf32>
    %cst_111 = arith.constant 9.99999974E-6 : f32
    %255 = vector.broadcast %cst_111 : f32 to vector<16x1xf32>
    %256 = arith.addf %252, %255 : vector<16x1xf32>
    %257 = math.rsqrt %256 : vector<16x1xf32>
    %258 = vector.broadcast %257 : vector<16x1xf32> to vector<16x128xf32>
    %259 = arith.mulf %254, %258 : vector<16x128xf32>
    %260 = vector.broadcast %240 : vector<1x128xf32> to vector<16x128xf32>
    %261 = arith.mulf %259, %260 : vector<16x128xf32>
    %262 = vector.broadcast %241 : vector<1x128xf32> to vector<16x128xf32>
    %263 = arith.addf %261, %262 : vector<16x128xf32>
    %c0_112 = arith.constant 0 : index
    %c0_113 = arith.constant 0 : index
    %264 = vector.load %arg30[%c0_112, %c0_113] : memref<1x128xf32, #tpu.memory_space<vmem>>, vector<1x128xf32>
    %265 = vector.broadcast %264 : vector<1x128xf32> to vector<16x128xf32>
    %266 = arith.addf %263, %265 : vector<16x128xf32>
    %c0_114 = arith.constant 0 : index
    %c0_115 = arith.constant 0 : index
    %267 = vector.load %arg27[%c0_114, %c0_115] : memref<128x256xf32, #tpu.memory_space<vmem>>, vector<128x256xf32>
    %cst_116 = arith.constant dense<0.000000e+00> : vector<16x256xf32>
    %268 = tpu.matmul %263, %267, %cst_116 {dimension_numbers = #tpu.dot_dimension_numbers<[1], [0], [0], [1], [0, 0, 1, 1], [], []>} : vector<16x128xf32>, vector<128x256xf32>, vector<16x256xf32> -> vector<16x256xf32>
    %c0_117 = arith.constant 0 : index
    %c0_118 = arith.constant 0 : index
    %269 = vector.load %arg28[%c0_117, %c0_118] : memref<1x256xf32, #tpu.memory_space<vmem>>, vector<1x256xf32>
    %270 = vector.broadcast %269 : vector<1x256xf32> to vector<16x256xf32>
    %271 = arith.addf %268, %270 : vector<16x256xf32>
    %cst_119 = arith.constant 5.000000e-01 : f32
    %272 = vector.broadcast %cst_119 : f32 to vector<16x256xf32>
    %273 = arith.mulf %272, %271 : vector<16x256xf32>
    %cst_120 = arith.constant 2.000000e+00 : f32
    %274 = math.sqrt %cst_120 : f32
    %cst_121 = arith.constant 1.000000e+00 : f32
    %275 = arith.divf %cst_121, %274 : f32
    %276 = vector.broadcast %275 : f32 to vector<16x256xf32>
    %277 = arith.mulf %271, %276 : vector<16x256xf32>
    %278 = math.erf %277 : vector<16x256xf32>
    %cst_122 = arith.constant 1.000000e+00 : f32
    %279 = vector.broadcast %cst_122 : f32 to vector<16x256xf32>
    %280 = arith.addf %279, %278 : vector<16x256xf32>
    %281 = arith.mulf %273, %280 : vector<16x256xf32>
    %c0_123 = arith.constant 0 : index
    %c0_124 = arith.constant 0 : index
    %282 = vector.load %arg29[%c0_123, %c0_124] : memref<256x128xf32, #tpu.memory_space<vmem>>, vector<256x128xf32>
    %cst_125 = arith.constant dense<0.000000e+00> : vector<16x128xf32>
    %283 = tpu.matmul %281, %282, %cst_125 {dimension_numbers = #tpu.dot_dimension_numbers<[1], [0], [0], [1], [0, 0, 1, 1], [], []>} : vector<16x256xf32>, vector<256x128xf32>, vector<16x128xf32> -> vector<16x128xf32>
    %284 = arith.addf %266, %283 : vector<16x128xf32>
    %c0_126 = arith.constant 0 : index
    %c0_127 = arith.constant 0 : index
    %c0_128 = arith.constant 0 : index
    %285 = vector.load %arg31[%c0_126, %c0_127, %c0_128] : memref<1x16x128xf32, #tpu.memory_space<vmem>>, vector<1x16x128xf32>
    %286 = vector.shape_cast %285 : vector<1x16x128xf32> to vector<16x128xf32>
    %287 = vector.shape_cast %284 : vector<16x128xf32> to vector<1x16x128xf32>
    tpu.vector_store %arg31[%c0_126, %c0_127, %c0_128], %287 {strides = array<i32>} : memref<1x16x128xf32, #tpu.memory_space<vmem>>, vector<1x16x128xf32>,
    return
  }
  func.func @transform_0(%arg0: i32, %arg1: i32) -> (i32, i32, i32) {
    %c0_i32 = arith.constant 0 : i32
    %c0_i32_0 = arith.constant 0 : i32
    return %arg0, %arg1, %c0_i32 : i32, i32, i32
  }
  func.func @transform_1(%arg0: i32, %arg1: i32) -> (i32, i32, i32) {
    %c0_i32 = arith.constant 0 : i32
    %c0_i32_0 = arith.constant 0 : i32
    %c0_i32_1 = arith.constant 0 : i32
    return %arg0, %c0_i32, %c0_i32_0 : i32, i32, i32
  }
  func.func @transform_2(%arg0: i32, %arg1: i32) -> (i32, i32, i32) {
    %c0_i32 = arith.constant 0 : i32
    %c0_i32_0 = arith.constant 0 : i32
    %c0_i32_1 = arith.constant 0 : i32
    return %arg0, %c0_i32, %c0_i32_0 : i32, i32, i32
  }
  func.func @transform_3(%arg0: i32, %arg1: i32) -> (i32, i32) {
    %c0_i32 = arith.constant 0 : i32
    %c0_i32_0 = arith.constant 0 : i32
    %c0_i32_1 = arith.constant 0 : i32
    return %c0_i32, %c0_i32_0 : i32, i32
  }
  func.func @transform_4(%arg0: i32, %arg1: i32) -> (i32, i32) {
    %c0_i32 = arith.constant 0 : i32
    %c0_i32_0 = arith.constant 0 : i32
    %c0_i32_1 = arith.constant 0 : i32
    return %c0_i32, %c0_i32_0 : i32, i32
  }
  func.func @transform_5(%arg0: i32, %arg1: i32) -> (i32, i32) {
    %c0_i32 = arith.constant 0 : i32
    %c0_i32_0 = arith.constant 0 : i32
    %c0_i32_1 = arith.constant 0 : i32
    return %c0_i32, %c0_i32_0 : i32, i32
  }
  func.func @transform_6(%arg0: i32, %arg1: i32) -> (i32, i32) {
    %c0_i32 = arith.constant 0 : i32
    %c0_i32_0 = arith.constant 0 : i32
    %c0_i32_1 = arith.constant 0 : i32
    return %c0_i32, %c0_i32_0 : i32, i32
  }
  func.func @transform_7(%arg0: i32, %arg1: i32) -> (i32, i32) {
    %c0_i32 = arith.constant 0 : i32
    %c0_i32_0 = arith.constant 0 : i32
    %c0_i32_1 = arith.constant 0 : i32
    return %c0_i32, %c0_i32_0 : i32, i32
  }
  func.func @transform_8(%arg0: i32, %arg1: i32) -> (i32, i32) {
    %c0_i32 = arith.constant 0 : i32
    %c0_i32_0 = arith.constant 0 : i32
    %c0_i32_1 = arith.constant 0 : i32
    return %c0_i32, %c0_i32_0 : i32, i32
  }
  func.func @transform_9(%arg0: i32, %arg1: i32) -> (i32, i32) {
    %c0_i32 = arith.constant 0 : i32
    %c0_i32_0 = arith.constant 0 : i32
    %c0_i32_1 = arith.constant 0 : i32
    return %c0_i32, %c0_i32_0 : i32, i32
  }
  func.func @transform_10(%arg0: i32, %arg1: i32) -> (i32, i32) {
    %c0_i32 = arith.constant 0 : i32
    %c0_i32_0 = arith.constant 0 : i32
    %c0_i32_1 = arith.constant 0 : i32
    return %c0_i32, %c0_i32_0 : i32, i32
  }
  func.func @transform_11(%arg0: i32, %arg1: i32) -> (i32, i32) {
    %c0_i32 = arith.constant 0 : i32
    %c0_i32_0 = arith.constant 0 : i32
    %c0_i32_1 = arith.constant 0 : i32
    return %c0_i32, %c0_i32_0 : i32, i32
  }
  func.func @transform_12(%arg0: i32, %arg1: i32) -> (i32, i32) {
    %c0_i32 = arith.constant 0 : i32
    %c0_i32_0 = arith.constant 0 : i32
    %c0_i32_1 = arith.constant 0 : i32
    return %c0_i32, %c0_i32_0 : i32, i32
  }
  func.func @transform_13(%arg0: i32, %arg1: i32) -> (i32, i32) {
    %c0_i32 = arith.constant 0 : i32
    %c0_i32_0 = arith.constant 0 : i32
    %c0_i32_1 = arith.constant 0 : i32
    return %c0_i32, %c0_i32_0 : i32, i32
  }
  func.func @transform_14(%arg0: i32, %arg1: i32) -> (i32, i32) {
    %c0_i32 = arith.constant 0 : i32
    %c0_i32_0 = arith.constant 0 : i32
    %c0_i32_1 = arith.constant 0 : i32
    return %c0_i32, %c0_i32_0 : i32, i32
  }
  func.func @transform_15(%arg0: i32, %arg1: i32) -> (i32, i32) {
    %c0_i32 = arith.constant 0 : i32
    %c0_i32_0 = arith.constant 0 : i32
    %c0_i32_1 = arith.constant 0 : i32
    return %c0_i32, %c0_i32_0 : i32, i32
  }
  func.func @transform_16(%arg0: i32, %arg1: i32) -> (i32, i32) {
    %c0_i32 = arith.constant 0 : i32
    %c0_i32_0 = arith.constant 0 : i32
    %c0_i32_1 = arith.constant 0 : i32
    return %c0_i32, %c0_i32_0 : i32, i32
  }
  func.func @transform_17(%arg0: i32, %arg1: i32) -> (i32, i32) {
    %c0_i32 = arith.constant 0 : i32
    %c0_i32_0 = arith.constant 0 : i32
    %c0_i32_1 = arith.constant 0 : i32
    return %c0_i32, %c0_i32_0 : i32, i32
  }
  func.func @transform_18(%arg0: i32, %arg1: i32) -> (i32, i32) {
    %c0_i32 = arith.constant 0 : i32
    %c0_i32_0 = arith.constant 0 : i32
    %c0_i32_1 = arith.constant 0 : i32
    return %c0_i32, %c0_i32_0 : i32, i32
  }
  func.func @transform_19(%arg0: i32, %arg1: i32) -> (i32, i32) {
    %c0_i32 = arith.constant 0 : i32
    %c0_i32_0 = arith.constant 0 : i32
    %c0_i32_1 = arith.constant 0 : i32
    return %c0_i32, %c0_i32_0 : i32, i32
  }
  func.func @transform_20(%arg0: i32, %arg1: i32) -> (i32, i32) {
    %c0_i32 = arith.constant 0 : i32
    %c0_i32_0 = arith.constant 0 : i32
    %c0_i32_1 = arith.constant 0 : i32
    return %c0_i32, %c0_i32_0 : i32, i32
  }
  func.func @transform_21(%arg0: i32, %arg1: i32) -> (i32, i32) {
    %c0_i32 = arith.constant 0 : i32
    %c0_i32_0 = arith.constant 0 : i32
    %c0_i32_1 = arith.constant 0 : i32
    return %c0_i32, %c0_i32_0 : i32, i32
  }
  func.func @transform_22(%arg0: i32, %arg1: i32) -> (i32, i32) {
    %c0_i32 = arith.constant 0 : i32
    %c0_i32_0 = arith.constant 0 : i32
    %c0_i32_1 = arith.constant 0 : i32
    return %c0_i32, %c0_i32_0 : i32, i32
  }
  func.func @transform_23(%arg0: i32, %arg1: i32) -> (i32, i32) {
    %c0_i32 = arith.constant 0 : i32
    %c0_i32_0 = arith.constant 0 : i32
    %c0_i32_1 = arith.constant 0 : i32
    return %c0_i32, %c0_i32_0 : i32, i32
  }
  func.func @transform_24(%arg0: i32, %arg1: i32) -> (i32, i32) {
    %c0_i32 = arith.constant 0 : i32
    %c0_i32_0 = arith.constant 0 : i32
    %c0_i32_1 = arith.constant 0 : i32
    return %c0_i32, %c0_i32_0 : i32, i32
  }
  func.func @transform_25(%arg0: i32, %arg1: i32) -> (i32, i32) {
    %c0_i32 = arith.constant 0 : i32
    %c0_i32_0 = arith.constant 0 : i32
    %c0_i32_1 = arith.constant 0 : i32
    return %c0_i32, %c0_i32_0 : i32, i32
  }
  func.func @transform_26(%arg0: i32, %arg1: i32) -> (i32, i32) {
    %c0_i32 = arith.constant 0 : i32
    %c0_i32_0 = arith.constant 0 : i32
    %c0_i32_1 = arith.constant 0 : i32
    return %c0_i32, %c0_i32_0 : i32, i32
  }
  func.func @transform_27(%arg0: i32, %arg1: i32) -> (i32, i32) {
    %c0_i32 = arith.constant 0 : i32
    %c0_i32_0 = arith.constant 0 : i32
    %c0_i32_1 = arith.constant 0 : i32
    return %c0_i32, %c0_i32_0 : i32, i32
  }
  func.func @transform_28(%arg0: i32, %arg1: i32) -> (i32, i32) {
    %c0_i32 = arith.constant 0 : i32
    %c0_i32_0 = arith.constant 0 : i32
    %c0_i32_1 = arith.constant 0 : i32
    return %c0_i32, %c0_i32_0 : i32, i32
  }
  func.func @transform_29(%arg0: i32, %arg1: i32) -> (i32, i32, i32) {
    %c0_i32 = arith.constant 0 : i32
    %c0_i32_0 = arith.constant 0 : i32
    return %arg0, %arg1, %c0_i32 : i32, i32, i32
  }
}

</mosaic_0001>

<llo_original>
// kernel: tpu_custom_call.1
$region0: #{tpu_custom_call.1}
  #allocation0 [shape = 'u32[]', space=smem, size = 0x4, offset = 0x4, fixed_abs, tag = 'smem constant byte address 0x4 - core index']
  #allocation1 [shape = 'u32[144,128]{1,0:T(1,128)}', space=vmem, size = 0x12000, scoped, tag = 'internal scratch']
  #allocation2 [shape = 'f32[16,128]{1,0:T(8,128)}', space=vmem, size = 0x2000, scoped, tag = 'scratch operand']
  %s0 = inlined_call_operand.smem [shape: u32[30], index: -1, kind: input, shape index: {}]
  %s1 = sld [smem:[%s0]]
  %s2 = scalar_lea.smem %s0, 1
  %s3 = sld [smem:[%s2]]
  %s4 = scalar_lea.smem %s0, 2
  %s5 = sld [smem:[%s4]]
  %s6 = scalar_lea.smem %s0, 3
  %s7 = sld [smem:[%s6]]
  %s8 = scalar_lea.smem %s0, 4
  %s9 = sld [smem:[%s8]]
  %s10 = scalar_lea.smem %s0, 5
  %s11 = sld [smem:[%s10]]
  %s12 = scalar_lea.smem %s0, 6
  %s13 = sld [smem:[%s12]]
  %s14 = scalar_lea.smem %s0, 7
  %s15 = sld [smem:[%s14]]
  %s16 = scalar_lea.smem %s0, 8
  %s17 = sld [smem:[%s16]]
  %s18 = scalar_lea.smem %s0, 9
  %s19 = sld [smem:[%s18]]
  %s20 = scalar_lea.smem %s0, 10
  %s21 = sld [smem:[%s20]]
  %s22 = scalar_lea.smem %s0, 11
  %s23 = sld [smem:[%s22]]
  %s24 = scalar_lea.smem %s0, 12
  %s25 = sld [smem:[%s24]]
  %s26 = scalar_lea.smem %s0, 13
  %s27 = sld [smem:[%s26]]
  %s28 = scalar_lea.smem %s0, 14
  %s29 = sld [smem:[%s28]]
  %s30 = scalar_lea.smem %s0, 15
  %s31 = sld [smem:[%s30]]
  %s32 = scalar_lea.smem %s0, 16
  %s33 = sld [smem:[%s32]]
  %s34 = scalar_lea.smem %s0, 17
  %s35 = sld [smem:[%s34]]
  %s36 = scalar_lea.smem %s0, 18
  %s37 = sld [smem:[%s36]]
  %s38 = scalar_lea.smem %s0, 19
  %s39 = sld [smem:[%s38]]
  %s40 = scalar_lea.smem %s0, 20
  %s41 = sld [smem:[%s40]]
  %s42 = scalar_lea.smem %s0, 21
  %s43 = sld [smem:[%s42]]
  %s44 = scalar_lea.smem %s0, 22
  %s45 = sld [smem:[%s44]]
  %s46 = scalar_lea.smem %s0, 23
  %s47 = sld [smem:[%s46]]
  %s48 = scalar_lea.smem %s0, 24
  %s49 = sld [smem:[%s48]]
  %s50 = scalar_lea.smem %s0, 25
  %s51 = sld [smem:[%s50]]
  %s52 = scalar_lea.smem %s0, 26
  %s53 = sld [smem:[%s52]]
  %s54 = scalar_lea.smem %s0, 27
  %s55 = sld [smem:[%s54]]
  %s56 = scalar_lea.smem %s0, 28
  %s57 = sld [smem:[%s56]]
  %s58 = scalar_lea.smem %s0, 29
  %s59 = sld [smem:[%s58]]
  %s60 = sld [smem:[#allocation0]]
  $region201: #{tpu_custom_call.1} parent=0
    _
  %s62 = ssub.s32 1, %s60
  %s63 = scalar_select 0, %s62, %s60
  $region1: #{tpu_custom_call.1} parent=0
    #allocation3 [shape = 'u8[16384]{0}', space=vmem, size = 0x4000, scoped, tag = 'input window, operand 0']
    #allocation4 [shape = 's32[2]{0}', space=sflag, size = 0x8, scoped, tag = 'scoped memory for tpu_custom_call.1']
    #allocation5 [shape = 's32[2]{0}', space=sflag, size = 0x8, scoped, tag = 'scoped memory for tpu_custom_call.1']
    #allocation6 [shape = 'u8[16384]{0}', space=vmem, size = 0x4000, scoped, tag = 'input window, operand 1']
    #allocation7 [shape = 's32[2]{0}', space=sflag, size = 0x8, scoped, tag = 'scoped memory for tpu_custom_call.1']
    #allocation8 [shape = 'u8[8192]{0}', space=vmem, size = 0x2000, scoped, tag = 'input window, operand 2']
    #allocation9 [shape = 'u8[65536]{0}', space=vmem, size = 0x10000, scoped, tag = 'input window, operand 9, single buffered']
    #allocation10 [shape = 's32[1]{0}', space=sflag, size = 0x4, scoped, tag = 'scoped memory for tpu_custom_call.1']
    #allocation11 [shape = 'u8[65536]{0}', space=vmem, size = 0x10000, scoped, tag = 'input window, operand 11, single buffered']
    #allocation12 [shape = 'u8[65536]{0}', space=vmem, size = 0x10000, scoped, tag = 'input window, operand 13, single buffered']
    #allocation13 [shape = 's32[1]{0}', space=sflag, size = 0x4, scoped, tag = 'scoped memory for tpu_custom_call.1']
    #allocation14 [shape = 'u8[65536]{0}', space=vmem, size = 0x10000, scoped, tag = 'input window, operand 15, single buffered']
    #allocation15 [shape = 'u8[65536]{0}', space=vmem, size = 0x10000, scoped, tag = 'input window, operand 17, single buffered']
    #allocation16 [shape = 's32[1]{0}', space=sflag, size = 0x4, scoped, tag = 'scoped memory for tpu_custom_call.1']
    #allocation17 [shape = 'u8[65536]{0}', space=vmem, size = 0x10000, scoped, tag = 'input window, operand 19, single buffered']
    #allocation18 [shape = 'u8[65536]{0}', space=vmem, size = 0x10000, scoped, tag = 'input window, operand 21, single buffered']
    #allocation19 [shape = 's32[1]{0}', space=sflag, size = 0x4, scoped, tag = 'scoped memory for tpu_custom_call.1']
    #allocation20 [shape = 'u8[65536]{0}', space=vmem, size = 0x10000, scoped, tag = 'input window, operand 23, single buffered']
    #allocation21 [shape = 'u8[131072]{0}', space=vmem, size = 0x20000, scoped, tag = 'input window, operand 25, single buffered']
    #allocation22 [shape = 's32[1]{0}', space=sflag, size = 0x4, scoped, tag = 'scoped memory for tpu_custom_call.1']
    #allocation23 [shape = 'u8[131072]{0}', space=vmem, size = 0x20000, scoped, tag = 'input window, operand 27, single buffered']
    #allocation24 [shape = 'u8[16384]{0}', space=vmem, size = 0x4000, scoped, tag = 'output window, operand 0']
    %64 = vsyncpa [#allocation4], 0
    %s65 = scalar_lea.sflag [#allocation4], 1
    %66 = vsyncpa %s65, 0
    %67 = vsyncpa [#allocation7], 0
    %s68 = scalar_lea.sflag [#allocation7], 1
    %69 = vsyncpa %s68, 0
    %70 = vsyncpa [#allocation10], 0
    %71 = vsyncpa [#allocation13], 0
    %72 = vsyncpa [#allocation16], 0
    %73 = vsyncpa [#allocation19], 0
    %74 = vsyncpa [#allocation22], 0
    %75 = vsyncpa [#allocation5], 0
    %s76 = scalar_lea.sflag [#allocation5], 1
    %77 = vsyncpa %s76, 0
    loop: start=0, step=1, limit=4
    $region2: #{tpu_custom_call.1} parent=1 // loop_pre_header
      _
    $region3: #{tpu_custom_call.1} parent=1 // loop_header
      %s79 = sphi 0, %s83
      %p80 = scmp.ge.s32.totalorder %s79, 4
      %s86 = sphi 0, %s98
      %s87 = sphi 0, %s94
      %s88 = sphi 0, %s86
      %s89 = sphi 0, %s87
      %s90 = sphi 0, %s88
      %s91 = sphi 0, %s89
      %s103 = sphi 0, %s105
      %s106 = sphi 0, %s103
      %s107 = sphi 0, %s106
      %s123 = sphi 0, %s107
      %s129 = sphi 0, %s131
      %s132 = sphi 0, %s129
      %s133 = sphi 0, %s132
      %s149 = sphi 0, %s133
      %s155 = sphi 0, %s157
      %s158 = sphi 0, %s155
      %s159 = sphi 0, %s158
      %s175 = sphi 0, %s159
      %s179 = sphi 0, %s179
      %s181 = sphi 0, %s179
      %s182 = sphi 0, %s181
      %s196 = sphi 0, %s182
      %s200 = sphi 0, %s200
      %s202 = sphi 0, %s200
      %s203 = sphi 0, %s202
      %s217 = sphi 0, %s203
      %s221 = sphi 0, %s221
      %s223 = sphi 0, %s221
      %s224 = sphi 0, %s223
      %s238 = sphi 0, %s224
      %s242 = sphi 0, %s242
      %s244 = sphi 0, %s242
      %s245 = sphi 0, %s244
      %s259 = sphi 0, %s245
      %s263 = sphi 0, %s263
      %s265 = sphi 0, %s263
      %s266 = sphi 0, %s265
      %s280 = sphi 0, %s266
      %s284 = sphi 0, %s284
      %s286 = sphi 0, %s284
      %s287 = sphi 0, %s286
      %s301 = sphi 0, %s287
      %s305 = sphi 0, %s305
      %s307 = sphi 0, %s305
      %s308 = sphi 0, %s307
      %s322 = sphi 0, %s308
      %s326 = sphi 0, %s326
      %s328 = sphi 0, %s326
      %s329 = sphi 0, %s328
      %s343 = sphi 0, %s329
      %s347 = sphi 0, %s347
      %s349 = sphi 0, %s347
      %s350 = sphi 0, %s349
      %s364 = sphi 0, %s350
      %s368 = sphi 0, %s368
      %s370 = sphi 0, %s368
      %s371 = sphi 0, %s370
      %s385 = sphi 0, %s371
      %s389 = sphi 0, %s389
      %s391 = sphi 0, %s389
      %s392 = sphi 0, %s391
      %s406 = sphi 0, %s392
      %s410 = sphi 0, %s410
      %s412 = sphi 0, %s410
      %s413 = sphi 0, %s412
      %s427 = sphi 0, %s413
      %s431 = sphi 0, %s431
      %s433 = sphi 0, %s431
      %s434 = sphi 0, %s433
      %s448 = sphi 0, %s434
      %s452 = sphi 0, %s452
      %s454 = sphi 0, %s452
      %s455 = sphi 0, %s454
      %s469 = sphi 0, %s455
      %s473 = sphi 0, %s473
      %s475 = sphi 0, %s473
      %s476 = sphi 0, %s475
      %s490 = sphi 0, %s476
      %s494 = sphi 0, %s494
      %s496 = sphi 0, %s494
      %s497 = sphi 0, %s496
      %s511 = sphi 0, %s497
      %s515 = sphi 0, %s515
      %s517 = sphi 0, %s515
      %s518 = sphi 0, %s517
      %s532 = sphi 0, %s518
      %s536 = sphi 0, %s536
      %s538 = sphi 0, %s536
      %s539 = sphi 0, %s538
      %s553 = sphi 0, %s539
      %s557 = sphi 0, %s557
      %s559 = sphi 0, %s557
      %s560 = sphi 0, %s559
      %s574 = sphi 0, %s560
      %s578 = sphi 0, %s578
      %s580 = sphi 0, %s578
      %s581 = sphi 0, %s580
      %s595 = sphi 0, %s581
      %s599 = sphi 0, %s599
      %s601 = sphi 0, %s599
      %s602 = sphi 0, %s601
      %s616 = sphi 0, %s602
      %s620 = sphi 0, %s620
      %s622 = sphi 0, %s620
      %s623 = sphi 0, %s622
      %s637 = sphi 0, %s623
      %s641 = sphi 0, %s641
      %s643 = sphi 0, %s641
      %s644 = sphi 0, %s643
      %s658 = sphi 0, %s644
      %s662 = sphi 0, %s662
      %s664 = sphi 0, %s662
      %s665 = sphi 0, %s664
      %s679 = sphi 0, %s665
      %s683 = sphi 0, %s683
      %s685 = sphi 0, %s683
      %s686 = sphi 0, %s685
      %s700 = sphi 0, %s686
      %s704 = sphi 0, %s704
      %s706 = sphi 0, %s704
      %s707 = sphi 0, %s706
      %s721 = sphi 0, %s707
      %s729 = sphi 0, %s731
      %s732 = sphi 0, %s729
      %s733 = sphi 0, %s732
      %s749 = sphi 0, %s733
    $region4: #{tpu_custom_call.1} parent=1 // loop_header_branch
      %82 = sbr.rel (%p80) target = $region8
    $region5: #{tpu_custom_call.1} parent=1 // loop_body
      %s84 = ssub.s32 %s79, 1
      %s85 = ssub.s32 %s79, 2
      %s92 = sadd.s32 1, %s87
      %p93 = scmp.ge.s32.totalorder %s92, 1
      %s94 = scalar_select %p93, 0, %s92
      %s95 = sadd.s32 1, %s86
      %s96 = scalar_select %p93, %s95, %s86
      %p97 = scmp.ge.s32.totalorder %s96, 2
      %s98 = scalar_select %p97, 0, %s96
      %s99 = ssub.s32 %s86, %s98
      %s100 = ssub.s32 %s87, %s94
      %s101 = sor.u32 %s99, %s100
      %p102 = scmp.eq.s32.totalorder %s101, 0
      %s104 = sadd.s32 %s103, 1
      %s105 = scalar_select %p102, %s103, %s104
      %p108 = pneg %p102
      %p109 = scmp.eq.s32.totalorder %s79, 1
      %p110 = por %p108, %p109
      %p111 = scmp.ne.s32.totalorder %s103, %s106
      %p112 = scmp.eq.s32.totalorder %s79, 0
      %p113 = por %p111, %p112
      %p114 = scmp.ne.s32.totalorder %s103, %s106
      %p115 = scmp.eq.s32.totalorder %s84, 1
      %p116 = por %p114, %p115
      %p117 = scmp.ne.s32.totalorder %s106, %s107
      %p118 = scmp.eq.s32.totalorder %s84, 0
      %p119 = por %p117, %p118
      %p120 = scmp.ne.s32.totalorder %s106, %s107
      %p121 = scmp.eq.s32.totalorder %s85, 1
      %p122 = por %p120, %p121
      %p124 = scmp.ne.s32.totalorder %s107, %s123
      %p125 = scmp.eq.s32.totalorder %s85, 0
      %p126 = por %p124, %p125
      %s127 = ssub.s32 %s86, %s98
      %p128 = scmp.eq.s32.totalorder %s127, 0
      %s130 = sadd.s32 %s129, 1
      %s131 = scalar_select %p128, %s129, %s130
      %p134 = pneg %p128
      %p135 = scmp.eq.s32.totalorder %s79, 1
      %p136 = por %p134, %p135
      %p137 = scmp.ne.s32.totalorder %s129, %s132
      %p138 = scmp.eq.s32.totalorder %s79, 0
      %p139 = por %p137, %p138
      %p140 = scmp.ne.s32.totalorder %s129, %s132
      %p141 = scmp.eq.s32.totalorder %s84, 1
      %p142 = por %p140, %p141
      %p143 = scmp.ne.s32.totalorder %s132, %s133
      %p144 = scmp.eq.s32.totalorder %s84, 0
      %p145 = por %p143, %p144
      %p146 = scmp.ne.s32.totalorder %s132, %s133
      %p147 = scmp.eq.s32.totalorder %s85, 1
      %p148 = por %p146, %p147
      %p150 = scmp.ne.s32.totalorder %s133, %s149
      %p151 = scmp.eq.s32.totalorder %s85, 0
      %p152 = por %p150, %p151
      %s153 = ssub.s32 %s86, %s98
      %p154 = scmp.eq.s32.totalorder %s153, 0
      %s156 = sadd.s32 %s155, 1
      %s157 = scalar_select %p154, %s155, %s156
      %p160 = pneg %p154
      %p161 = scmp.eq.s32.totalorder %s79, 1
      %p162 = por %p160, %p161
      %p163 = scmp.ne.s32.totalorder %s155, %s158
      %p164 = scmp.eq.s32.totalorder %s79, 0
      %p165 = por %p163, %p164
      %p166 = scmp.ne.s32.totalorder %s155, %s158
      %p167 = scmp.eq.s32.totalorder %s84, 1
      %p168 = por %p166, %p167
      %p169 = scmp.ne.s32.totalorder %s158, %s159
      %p170 = scmp.eq.s32.totalorder %s84, 0
      %p171 = por %p169, %p170
      %p172 = scmp.ne.s32.totalorder %s158, %s159
      %p173 = scmp.eq.s32.totalorder %s85, 1
      %p174 = por %p172, %p173
      %p176 = scmp.ne.s32.totalorder %s159, %s175
      %p177 = scmp.eq.s32.totalorder %s85, 0
      %p178 = por %p176, %p177
      %s180 = sadd.s32 %s179, 1
      %p183 = scmp.eq.s32.totalorder %s79, 1
      %p184 = scmp.ne.s32.totalorder %s179, %s181
      %p185 = scmp.eq.s32.totalorder %s79, 0
      %p186 = por %p184, %p185
      %p187 = scmp.ne.s32.totalorder %s179, %s181
      %p188 = scmp.eq.s32.totalorder %s84, 1
      %p189 = por %p187, %p188
      %p190 = scmp.ne.s32.totalorder %s181, %s182
      %p191 = scmp.eq.s32.totalorder %s84, 0
      %p192 = por %p190, %p191
      %p193 = scmp.ne.s32.totalorder %s181, %s182
      %p194 = scmp.eq.s32.totalorder %s85, 1
      %p195 = por %p193, %p194
      %p197 = scmp.ne.s32.totalorder %s182, %s196
      %p198 = scmp.eq.s32.totalorder %s85, 0
      %p199 = por %p197, %p198
      %s201 = sadd.s32 %s200, 1
      %p204 = scmp.eq.s32.totalorder %s79, 1
      %p205 = scmp.ne.s32.totalorder %s200, %s202
      %p206 = scmp.eq.s32.totalorder %s79, 0
      %p207 = por %p205, %p206
      %p208 = scmp.ne.s32.totalorder %s200, %s202
      %p209 = scmp.eq.s32.totalorder %s84, 1
      %p210 = por %p208, %p209
      %p211 = scmp.ne.s32.totalorder %s202, %s203
      %p212 = scmp.eq.s32.totalorder %s84, 0
      %p213 = por %p211, %p212
      %p214 = scmp.ne.s32.totalorder %s202, %s203
      %p215 = scmp.eq.s32.totalorder %s85, 1
      %p216 = por %p214, %p215
      %p218 = scmp.ne.s32.totalorder %s203, %s217
      %p219 = scmp.eq.s32.totalorder %s85, 0
      %p220 = por %p218, %p219
      %s222 = sadd.s32 %s221, 1
      %p225 = scmp.eq.s32.totalorder %s79, 1
      %p226 = scmp.ne.s32.totalorder %s221, %s223
      %p227 = scmp.eq.s32.totalorder %s79, 0
      %p228 = por %p226, %p227
      %p229 = scmp.ne.s32.totalorder %s221, %s223
      %p230 = scmp.eq.s32.totalorder %s84, 1
      %p231 = por %p229, %p230
      %p232 = scmp.ne.s32.totalorder %s223, %s224
      %p233 = scmp.eq.s32.totalorder %s84, 0
      %p234 = por %p232, %p233
      %p235 = scmp.ne.s32.totalorder %s223, %s224
      %p236 = scmp.eq.s32.totalorder %s85, 1
      %p237 = por %p235, %p236
      %p239 = scmp.ne.s32.totalorder %s224, %s238
      %p240 = scmp.eq.s32.totalorder %s85, 0
      %p241 = por %p239, %p240
      %s243 = sadd.s32 %s242, 1
      %p246 = scmp.eq.s32.totalorder %s79, 1
      %p247 = scmp.ne.s32.totalorder %s242, %s244
      %p248 = scmp.eq.s32.totalorder %s79, 0
      %p249 = por %p247, %p248
      %p250 = scmp.ne.s32.totalorder %s242, %s244
      %p251 = scmp.eq.s32.totalorder %s84, 1
      %p252 = por %p250, %p251
      %p253 = scmp.ne.s32.totalorder %s244, %s245
      %p254 = scmp.eq.s32.totalorder %s84, 0
      %p255 = por %p253, %p254
      %p256 = scmp.ne.s32.totalorder %s244, %s245
      %p257 = scmp.eq.s32.totalorder %s85, 1
      %p258 = por %p256, %p257
      %p260 = scmp.ne.s32.totalorder %s245, %s259
      %p261 = scmp.eq.s32.totalorder %s85, 0
      %p262 = por %p260, %p261
      %s264 = sadd.s32 %s263, 1
      %p267 = scmp.eq.s32.totalorder %s79, 1
      %p268 = scmp.ne.s32.totalorder %s263, %s265
      %p269 = scmp.eq.s32.totalorder %s79, 0
      %p270 = por %p268, %p269
      %p271 = scmp.ne.s32.totalorder %s263, %s265
      %p272 = scmp.eq.s32.totalorder %s84, 1
      %p273 = por %p271, %p272
      %p274 = scmp.ne.s32.totalorder %s265, %s266
      %p275 = scmp.eq.s32.totalorder %s84, 0
      %p276 = por %p274, %p275
      %p277 = scmp.ne.s32.totalorder %s265, %s266
      %p278 = scmp.eq.s32.totalorder %s85, 1
      %p279 = por %p277, %p278
      %p281 = scmp.ne.s32.totalorder %s266, %s280
      %p282 = scmp.eq.s32.totalorder %s85, 0
      %p283 = por %p281, %p282
      %s285 = sadd.s32 %s284, 1
      %p288 = scmp.eq.s32.totalorder %s79, 1
      %p289 = scmp.ne.s32.totalorder %s284, %s286
      %p290 = scmp.eq.s32.totalorder %s79, 0
      %p291 = por %p289, %p290
      %p292 = scmp.ne.s32.totalorder %s284, %s286
      %p293 = scmp.eq.s32.totalorder %s84, 1
      %p294 = por %p292, %p293
      %p295 = scmp.ne.s32.totalorder %s286, %s287
      %p296 = scmp.eq.s32.totalorder %s84, 0
      %p297 = por %p295, %p296
      %p298 = scmp.ne.s32.totalorder %s286, %s287
      %p299 = scmp.eq.s32.totalorder %s85, 1
      %p300 = por %p298, %p299
      %p302 = scmp.ne.s32.totalorder %s287, %s301
      %p303 = scmp.eq.s32.totalorder %s85, 0
      %p304 = por %p302, %p303
      %s306 = sadd.s32 %s305, 1
      %p309 = scmp.eq.s32.totalorder %s79, 1
      %p310 = scmp.ne.s32.totalorder %s305, %s307
      %p311 = scmp.eq.s32.totalorder %s79, 0
      %p312 = por %p310, %p311
      %p313 = scmp.ne.s32.totalorder %s305, %s307
      %p314 = scmp.eq.s32.totalorder %s84, 1
      %p315 = por %p313, %p314
      %p316 = scmp.ne.s32.totalorder %s307, %s308
      %p317 = scmp.eq.s32.totalorder %s84, 0
      %p318 = por %p316, %p317
      %p319 = scmp.ne.s32.totalorder %s307, %s308
      %p320 = scmp.eq.s32.totalorder %s85, 1
      %p321 = por %p319, %p320
      %p323 = scmp.ne.s32.totalorder %s308, %s322
      %p324 = scmp.eq.s32.totalorder %s85, 0
      %p325 = por %p323, %p324
      %s327 = sadd.s32 %s326, 1
      %p330 = scmp.eq.s32.totalorder %s79, 1
      %p331 = scmp.ne.s32.totalorder %s326, %s328
      %p332 = scmp.eq.s32.totalorder %s79, 0
      %p333 = por %p331, %p332
      %p334 = scmp.ne.s32.totalorder %s326, %s328
      %p335 = scmp.eq.s32.totalorder %s84, 1
      %p336 = por %p334, %p335
      %p337 = scmp.ne.s32.totalorder %s328, %s329
      %p338 = scmp.eq.s32.totalorder %s84, 0
      %p339 = por %p337, %p338
      %p340 = scmp.ne.s32.totalorder %s328, %s329
      %p341 = scmp.eq.s32.totalorder %s85, 1
      %p342 = por %p340, %p341
      %p344 = scmp.ne.s32.totalorder %s329, %s343
      %p345 = scmp.eq.s32.totalorder %s85, 0
      %p346 = por %p344, %p345
      %s348 = sadd.s32 %s347, 1
      %p351 = scmp.eq.s32.totalorder %s79, 1
      %p352 = scmp.ne.s32.totalorder %s347, %s349
      %p353 = scmp.eq.s32.totalorder %s79, 0
      %p354 = por %p352, %p353
      %p355 = scmp.ne.s32.totalorder %s347, %s349
      %p356 = scmp.eq.s32.totalorder %s84, 1
      %p357 = por %p355, %p356
      %p358 = scmp.ne.s32.totalorder %s349, %s350
      %p359 = scmp.eq.s32.totalorder %s84, 0
      %p360 = por %p358, %p359
      %p361 = scmp.ne.s32.totalorder %s349, %s350
      %p362 = scmp.eq.s32.totalorder %s85, 1
      %p363 = por %p361, %p362
      %p365 = scmp.ne.s32.totalorder %s350, %s364
      %p366 = scmp.eq.s32.totalorder %s85, 0
      %p367 = por %p365, %p366
      %s369 = sadd.s32 %s368, 1
      %p372 = scmp.eq.s32.totalorder %s79, 1
      %p373 = scmp.ne.s32.totalorder %s368, %s370
      %p374 = scmp.eq.s32.totalorder %s79, 0
      %p375 = por %p373, %p374
      %p376 = scmp.ne.s32.totalorder %s368, %s370
      %p377 = scmp.eq.s32.totalorder %s84, 1
      %p378 = por %p376, %p377
      %p379 = scmp.ne.s32.totalorder %s370, %s371
      %p380 = scmp.eq.s32.totalorder %s84, 0
      %p381 = por %p379, %p380
      %p382 = scmp.ne.s32.totalorder %s370, %s371
      %p383 = scmp.eq.s32.totalorder %s85, 1
      %p384 = por %p382, %p383
      %p386 = scmp.ne.s32.totalorder %s371, %s385
      %p387 = scmp.eq.s32.totalorder %s85, 0
      %p388 = por %p386, %p387
      %s390 = sadd.s32 %s389, 1
      %p393 = scmp.eq.s32.totalorder %s79, 1
      %p394 = scmp.ne.s32.totalorder %s389, %s391
      %p395 = scmp.eq.s32.totalorder %s79, 0
      %p396 = por %p394, %p395
      %p397 = scmp.ne.s32.totalorder %s389, %s391
      %p398 = scmp.eq.s32.totalorder %s84, 1
      %p399 = por %p397, %p398
      %p400 = scmp.ne.s32.totalorder %s391, %s392
      %p401 = scmp.eq.s32.totalorder %s84, 0
      %p402 = por %p400, %p401
      %p403 = scmp.ne.s32.totalorder %s391, %s392
      %p404 = scmp.eq.s32.totalorder %s85, 1
      %p405 = por %p403, %p404
      %p407 = scmp.ne.s32.totalorder %s392, %s406
      %p408 = scmp.eq.s32.totalorder %s85, 0
      %p409 = por %p407, %p408
      %s411 = sadd.s32 %s410, 1
      %p414 = scmp.eq.s32.totalorder %s79, 1
      %p415 = scmp.ne.s32.totalorder %s410, %s412
      %p416 = scmp.eq.s32.totalorder %s79, 0
      %p417 = por %p415, %p416
      %p418 = scmp.ne.s32.totalorder %s410, %s412
      %p419 = scmp.eq.s32.totalorder %s84, 1
      %p420 = por %p418, %p419
      %p421 = scmp.ne.s32.totalorder %s412, %s413
      %p422 = scmp.eq.s32.totalorder %s84, 0
      %p423 = por %p421, %p422
      %p424 = scmp.ne.s32.totalorder %s412, %s413
      %p425 = scmp.eq.s32.totalorder %s85, 1
      %p426 = por %p424, %p425
      %p428 = scmp.ne.s32.totalorder %s413, %s427
      %p429 = scmp.eq.s32.totalorder %s85, 0
      %p430 = por %p428, %p429
      %s432 = sadd.s32 %s431, 1
      %p435 = scmp.eq.s32.totalorder %s79, 1
      %p436 = scmp.ne.s32.totalorder %s431, %s433
      %p437 = scmp.eq.s32.totalorder %s79, 0
      %p438 = por %p436, %p437
      %p439 = scmp.ne.s32.totalorder %s431, %s433
      %p440 = scmp.eq.s32.totalorder %s84, 1
      %p441 = por %p439, %p440
      %p442 = scmp.ne.s32.totalorder %s433, %s434
      %p443 = scmp.eq.s32.totalorder %s84, 0
      %p444 = por %p442, %p443
      %p445 = scmp.ne.s32.totalorder %s433, %s434
      %p446 = scmp.eq.s32.totalorder %s85, 1
      %p447 = por %p445, %p446
      %p449 = scmp.ne.s32.totalorder %s434, %s448
      %p450 = scmp.eq.s32.totalorder %s85, 0
      %p451 = por %p449, %p450
      %s453 = sadd.s32 %s452, 1
      %p456 = scmp.eq.s32.totalorder %s79, 1
      %p457 = scmp.ne.s32.totalorder %s452, %s454
      %p458 = scmp.eq.s32.totalorder %s79, 0
      %p459 = por %p457, %p458
      %p460 = scmp.ne.s32.totalorder %s452, %s454
      %p461 = scmp.eq.s32.totalorder %s84, 1
      %p462 = por %p460, %p461
      %p463 = scmp.ne.s32.totalorder %s454, %s455
      %p464 = scmp.eq.s32.totalorder %s84, 0
      %p465 = por %p463, %p464
      %p466 = scmp.ne.s32.totalorder %s454, %s455
      %p467 = scmp.eq.s32.totalorder %s85, 1
      %p468 = por %p466, %p467
      %p470 = scmp.ne.s32.totalorder %s455, %s469
      %p471 = scmp.eq.s32.totalorder %s85, 0
      %p472 = por %p470, %p471
      %s474 = sadd.s32 %s473, 1
      %p477 = scmp.eq.s32.totalorder %s79, 1
      %p478 = scmp.ne.s32.totalorder %s473, %s475
      %p479 = scmp.eq.s32.totalorder %s79, 0
      %p480 = por %p478, %p479
      %p481 = scmp.ne.s32.totalorder %s473, %s475
      %p482 = scmp.eq.s32.totalorder %s84, 1
      %p483 = por %p481, %p482
      %p484 = scmp.ne.s32.totalorder %s475, %s476
      %p485 = scmp.eq.s32.totalorder %s84, 0
      %p486 = por %p484, %p485
      %p487 = scmp.ne.s32.totalorder %s475, %s476
      %p488 = scmp.eq.s32.totalorder %s85, 1
      %p489 = por %p487, %p488
      %p491 = scmp.ne.s32.totalorder %s476, %s490
      %p492 = scmp.eq.s32.totalorder %s85, 0
      %p493 = por %p491, %p492
      %s495 = sadd.s32 %s494, 1
      %p498 = scmp.eq.s32.totalorder %s79, 1
      %p499 = scmp.ne.s32.totalorder %s494, %s496
      %p500 = scmp.eq.s32.totalorder %s79, 0
      %p501 = por %p499, %p500
      %p502 = scmp.ne.s32.totalorder %s494, %s496
      %p503 = scmp.eq.s32.totalorder %s84, 1
      %p504 = por %p502, %p503
      %p505 = scmp.ne.s32.totalorder %s496, %s497
      %p506 = scmp.eq.s32.totalorder %s84, 0
      %p507 = por %p505, %p506
      %p508 = scmp.ne.s32.totalorder %s496, %s497
      %p509 = scmp.eq.s32.totalorder %s85, 1
      %p510 = por %p508, %p509
      %p512 = scmp.ne.s32.totalorder %s497, %s511
      %p513 = scmp.eq.s32.totalorder %s85, 0
      %p514 = por %p512, %p513
      %s516 = sadd.s32 %s515, 1
      %p519 = scmp.eq.s32.totalorder %s79, 1
      %p520 = scmp.ne.s32.totalorder %s515, %s517
      %p521 = scmp.eq.s32.totalorder %s79, 0
      %p522 = por %p520, %p521
      %p523 = scmp.ne.s32.totalorder %s515, %s517
      %p524 = scmp.eq.s32.totalorder %s84, 1
      %p525 = por %p523, %p524
      %p526 = scmp.ne.s32.totalorder %s517, %s518
      %p527 = scmp.eq.s32.totalorder %s84, 0
      %p528 = por %p526, %p527
      %p529 = scmp.ne.s32.totalorder %s517, %s518
      %p530 = scmp.eq.s32.totalorder %s85, 1
      %p531 = por %p529, %p530
      %p533 = scmp.ne.s32.totalorder %s518, %s532
      %p534 = scmp.eq.s32.totalorder %s85, 0
      %p535 = por %p533, %p534
      %s537 = sadd.s32 %s536, 1
      %p540 = scmp.eq.s32.totalorder %s79, 1
      %p541 = scmp.ne.s32.totalorder %s536, %s538
      %p542 = scmp.eq.s32.totalorder %s79, 0
      %p543 = por %p541, %p542
      %p544 = scmp.ne.s32.totalorder %s536, %s538
      %p545 = scmp.eq.s32.totalorder %s84, 1
      %p546 = por %p544, %p545
      %p547 = scmp.ne.s32.totalorder %s538, %s539
      %p548 = scmp.eq.s32.totalorder %s84, 0
      %p549 = por %p547, %p548
      %p550 = scmp.ne.s32.totalorder %s538, %s539
      %p551 = scmp.eq.s32.totalorder %s85, 1
      %p552 = por %p550, %p551
      %p554 = scmp.ne.s32.totalorder %s539, %s553
      %p555 = scmp.eq.s32.totalorder %s85, 0
      %p556 = por %p554, %p555
      %s558 = sadd.s32 %s557, 1
      %p561 = scmp.eq.s32.totalorder %s79, 1
      %p562 = scmp.ne.s32.totalorder %s557, %s559
      %p563 = scmp.eq.s32.totalorder %s79, 0
      %p564 = por %p562, %p563
      %p565 = scmp.ne.s32.totalorder %s557, %s559
      %p566 = scmp.eq.s32.totalorder %s84, 1
      %p567 = por %p565, %p566
      %p568 = scmp.ne.s32.totalorder %s559, %s560
      %p569 = scmp.eq.s32.totalorder %s84, 0
      %p570 = por %p568, %p569
      %p571 = scmp.ne.s32.totalorder %s559, %s560
      %p572 = scmp.eq.s32.totalorder %s85, 1
      %p573 = por %p571, %p572
      %p575 = scmp.ne.s32.totalorder %s560, %s574
      %p576 = scmp.eq.s32.totalorder %s85, 0
      %p577 = por %p575, %p576
      %s579 = sadd.s32 %s578, 1
      %p582 = scmp.eq.s32.totalorder %s79, 1
      %p583 = scmp.ne.s32.totalorder %s578, %s580
      %p584 = scmp.eq.s32.totalorder %s79, 0
      %p585 = por %p583, %p584
      %p586 = scmp.ne.s32.totalorder %s578, %s580
      %p587 = scmp.eq.s32.totalorder %s84, 1
      %p588 = por %p586, %p587
      %p589 = scmp.ne.s32.totalorder %s580, %s581
      %p590 = scmp.eq.s32.totalorder %s84, 0
      %p591 = por %p589, %p590
      %p592 = scmp.ne.s32.totalorder %s580, %s581
      %p593 = scmp.eq.s32.totalorder %s85, 1
      %p594 = por %p592, %p593
      %p596 = scmp.ne.s32.totalorder %s581, %s595
      %p597 = scmp.eq.s32.totalorder %s85, 0
      %p598 = por %p596, %p597
      %s600 = sadd.s32 %s599, 1
      %p603 = scmp.eq.s32.totalorder %s79, 1
      %p604 = scmp.ne.s32.totalorder %s599, %s601
      %p605 = scmp.eq.s32.totalorder %s79, 0
      %p606 = por %p604, %p605
      %p607 = scmp.ne.s32.totalorder %s599, %s601
      %p608 = scmp.eq.s32.totalorder %s84, 1
      %p609 = por %p607, %p608
      %p610 = scmp.ne.s32.totalorder %s601, %s602
      %p611 = scmp.eq.s32.totalorder %s84, 0
      %p612 = por %p610, %p611
      %p613 = scmp.ne.s32.totalorder %s601, %s602
      %p614 = scmp.eq.s32.totalorder %s85, 1
      %p615 = por %p613, %p614
      %p617 = scmp.ne.s32.totalorder %s602, %s616
      %p618 = scmp.eq.s32.totalorder %s85, 0
      %p619 = por %p617, %p618
      %s621 = sadd.s32 %s620, 1
      %p624 = scmp.eq.s32.totalorder %s79, 1
      %p625 = scmp.ne.s32.totalorder %s620, %s622
      %p626 = scmp.eq.s32.totalorder %s79, 0
      %p627 = por %p625, %p626
      %p628 = scmp.ne.s32.totalorder %s620, %s622
      %p629 = scmp.eq.s32.totalorder %s84, 1
      %p630 = por %p628, %p629
      %p631 = scmp.ne.s32.totalorder %s622, %s623
      %p632 = scmp.eq.s32.totalorder %s84, 0
      %p633 = por %p631, %p632
      %p634 = scmp.ne.s32.totalorder %s622, %s623
      %p635 = scmp.eq.s32.totalorder %s85, 1
      %p636 = por %p634, %p635
      %p638 = scmp.ne.s32.totalorder %s623, %s637
      %p639 = scmp.eq.s32.totalorder %s85, 0
      %p640 = por %p638, %p639
      %s642 = sadd.s32 %s641, 1
      %p645 = scmp.eq.s32.totalorder %s79, 1
      %p646 = scmp.ne.s32.totalorder %s641, %s643
      %p647 = scmp.eq.s32.totalorder %s79, 0
      %p648 = por %p646, %p647
      %p649 = scmp.ne.s32.totalorder %s641, %s643
      %p650 = scmp.eq.s32.totalorder %s84, 1
      %p651 = por %p649, %p650
      %p652 = scmp.ne.s32.totalorder %s643, %s644
      %p653 = scmp.eq.s32.totalorder %s84, 0
      %p654 = por %p652, %p653
      %p655 = scmp.ne.s32.totalorder %s643, %s644
      %p656 = scmp.eq.s32.totalorder %s85, 1
      %p657 = por %p655, %p656
      %p659 = scmp.ne.s32.totalorder %s644, %s658
      %p660 = scmp.eq.s32.totalorder %s85, 0
      %p661 = por %p659, %p660
      %s663 = sadd.s32 %s662, 1
      %p666 = scmp.eq.s32.totalorder %s79, 1
      %p667 = scmp.ne.s32.totalorder %s662, %s664
      %p668 = scmp.eq.s32.totalorder %s79, 0
      %p669 = por %p667, %p668
      %p670 = scmp.ne.s32.totalorder %s662, %s664
      %p671 = scmp.eq.s32.totalorder %s84, 1
      %p672 = por %p670, %p671
      %p673 = scmp.ne.s32.totalorder %s664, %s665
      %p674 = scmp.eq.s32.totalorder %s84, 0
      %p675 = por %p673, %p674
      %p676 = scmp.ne.s32.totalorder %s664, %s665
      %p677 = scmp.eq.s32.totalorder %s85, 1
      %p678 = por %p676, %p677
      %p680 = scmp.ne.s32.totalorder %s665, %s679
      %p681 = scmp.eq.s32.totalorder %s85, 0
      %p682 = por %p680, %p681
      %s684 = sadd.s32 %s683, 1
      %p687 = scmp.eq.s32.totalorder %s79, 1
      %p688 = scmp.ne.s32.totalorder %s683, %s685
      %p689 = scmp.eq.s32.totalorder %s79, 0
      %p690 = por %p688, %p689
      %p691 = scmp.ne.s32.totalorder %s683, %s685
      %p692 = scmp.eq.s32.totalorder %s84, 1
      %p693 = por %p691, %p692
      %p694 = scmp.ne.s32.totalorder %s685, %s686
      %p695 = scmp.eq.s32.totalorder %s84, 0
      %p696 = por %p694, %p695
      %p697 = scmp.ne.s32.totalorder %s685, %s686
      %p698 = scmp.eq.s32.totalorder %s85, 1
      %p699 = por %p697, %p698
      %p701 = scmp.ne.s32.totalorder %s686, %s700
      %p702 = scmp.eq.s32.totalorder %s85, 0
      %p703 = por %p701, %p702
      %s705 = sadd.s32 %s704, 1
      %p708 = scmp.eq.s32.totalorder %s79, 1
      %p709 = scmp.ne.s32.totalorder %s704, %s706
      %p710 = scmp.eq.s32.totalorder %s79, 0
      %p711 = por %p709, %p710
      %p712 = scmp.ne.s32.totalorder %s704, %s706
      %p713 = scmp.eq.s32.totalorder %s84, 1
      %p714 = por %p712, %p713
      %p715 = scmp.ne.s32.totalorder %s706, %s707
      %p716 = scmp.eq.s32.totalorder %s84, 0
      %p717 = por %p715, %p716
      %p718 = scmp.ne.s32.totalorder %s706, %s707
      %p719 = scmp.eq.s32.totalorder %s85, 1
      %p720 = por %p718, %p719
      %p722 = scmp.ne.s32.totalorder %s707, %s721
      %p723 = scmp.eq.s32.totalorder %s85, 0
      %p724 = por %p722, %p723
      %s725 = ssub.s32 %s86, %s98
      %s726 = ssub.s32 %s87, %s94
      %s727 = sor.u32 %s725, %s726
      %p728 = scmp.eq.s32.totalorder %s727, 0
      %s730 = sadd.s32 %s729, 1
      %s731 = scalar_select %p728, %s729, %s730
      %p734 = pneg %p728
      %p735 = scmp.eq.s32.totalorder %s79, 1
      %p736 = por %p734, %p735
      %p737 = scmp.ne.s32.totalorder %s729, %s732
      %p738 = scmp.eq.s32.totalorder %s79, 0
      %p739 = por %p737, %p738
      %p740 = scmp.ne.s32.totalorder %s729, %s732
      %p741 = scmp.eq.s32.totalorder %s84, 1
      %p742 = por %p740, %p741
      %p743 = scmp.ne.s32.totalorder %s732, %s733
      %p744 = scmp.eq.s32.totalorder %s84, 0
      %p745 = por %p743, %p744
      %p746 = scmp.ne.s32.totalorder %s732, %s733
      %p747 = scmp.eq.s32.totalorder %s85, 1
      %p748 = por %p746, %p747
      %p750 = scmp.ne.s32.totalorder %s733, %s749
      %p751 = scmp.eq.s32.totalorder %s85, 0
      %p752 = por %p750, %p751
      %p753 = scmp.le.s32.totalorder 1, %s79
      %p754 = scmp.lt.s32.totalorder %s79, 3
      %p755 = pnand %p753, %p754
      %p756 = pneg %p755
      // Predicated region
      $region9: #{tpu_custom_call.1} parent=5 // pred_check
        _
      $region10: #{tpu_custom_call.1} parent=5 // pred_check_branch
        %758 = sbr.rel (%p755) target = $region12
      $region11: #{tpu_custom_call.1} parent=5 // pred_region
        %s759 = ssub.s32 %s79, 1
        // Predicated region
        $region13: #{tpu_custom_call.1} parent=11 // pred_check
          %p760 = pneg %p192
        $region14: #{tpu_custom_call.1} parent=11 // pred_check_branch
          %762 = sbr.rel (%p760) target = $region16
        $region15: #{tpu_custom_call.1} parent=11 // pred_region
          _
        $region16: #{tpu_custom_call.1} parent=11 // pred_fallthru
          _
        // Predicated region
        $region17: #{tpu_custom_call.1} parent=11 // pred_check
          %p763 = pneg %p213
        $region18: #{tpu_custom_call.1} parent=11 // pred_check_branch
          %765 = sbr.rel (%p763) target = $region20
        $region19: #{tpu_custom_call.1} parent=11 // pred_region
          _
        $region20: #{tpu_custom_call.1} parent=11 // pred_fallthru
          _
        // Predicated region
        $region21: #{tpu_custom_call.1} parent=11 // pred_check
          %p766 = pneg %p234
        $region22: #{tpu_custom_call.1} parent=11 // pred_check_branch
          %768 = sbr.rel (%p766) target = $region24
        $region23: #{tpu_custom_call.1} parent=11 // pred_region
          _
        $region24: #{tpu_custom_call.1} parent=11 // pred_fallthru
          _
        // Predicated region
        $region25: #{tpu_custom_call.1} parent=11 // pred_check
          %p769 = pneg %p255
        $region26: #{tpu_custom_call.1} parent=11 // pred_check_branch
          %771 = sbr.rel (%p769) target = $region28
        $region27: #{tpu_custom_call.1} parent=11 // pred_region
          _
        $region28: #{tpu_custom_call.1} parent=11 // pred_fallthru
          _
        // Predicated region
        $region29: #{tpu_custom_call.1} parent=11 // pred_check
          %p772 = pneg %p276
        $region30: #{tpu_custom_call.1} parent=11 // pred_check_branch
          %774 = sbr.rel (%p772) target = $region32
        $region31: #{tpu_custom_call.1} parent=11 // pred_region
          _
        $region32: #{tpu_custom_call.1} parent=11 // pred_fallthru
          _
        // Predicated region
        $region33: #{tpu_custom_call.1} parent=11 // pred_check
          %p775 = pneg %p297
        $region34: #{tpu_custom_call.1} parent=11 // pred_check_branch
          %777 = sbr.rel (%p775) target = $region36
        $region35: #{tpu_custom_call.1} parent=11 // pred_region
          _
        $region36: #{tpu_custom_call.1} parent=11 // pred_fallthru
          _
        // Predicated region
        $region37: #{tpu_custom_call.1} parent=11 // pred_check
          %p778 = pneg %p318
        $region38: #{tpu_custom_call.1} parent=11 // pred_check_branch
          %780 = sbr.rel (%p778) target = $region40
        $region39: #{tpu_custom_call.1} parent=11 // pred_region
          %s782 = ssub.s32 2048, 2048
          %783 = vsyncadd [#allocation10], %s782
          %s784 = sshll.u32 [#allocation9], 4
          %s785 = int_to_ptr.vmem [resolvable:$true] %s784
          %790 = dma.hbm_to_vmem [thread:$0]  %s19, 2048, %s785, [#allocation10], 128, 128, 8
        $region40: #{tpu_custom_call.1} parent=11 // pred_fallthru
          _
        // Predicated region
        $region41: #{tpu_custom_call.1} parent=11 // pred_check
          %p791 = pneg %p339
        $region42: #{tpu_custom_call.1} parent=11 // pred_check_branch
          %793 = sbr.rel (%p791) target = $region44
        $region43: #{tpu_custom_call.1} parent=11 // pred_region
          _
        $region44: #{tpu_custom_call.1} parent=11 // pred_fallthru
          _
        // Predicated region
        $region45: #{tpu_custom_call.1} parent=11 // pred_check
          %p794 = pneg %p360
        $region46: #{tpu_custom_call.1} parent=11 // pred_check_branch
          %796 = sbr.rel (%p794) target = $region48
        $region47: #{tpu_custom_call.1} parent=11 // pred_region
          %s798 = ssub.s32 2048, 2048
          %799 = vsyncadd [#allocation10], %s798
          %s800 = sshll.u32 [#allocation11], 4
          %s801 = int_to_ptr.vmem [resolvable:$true] %s800
          %806 = dma.hbm_to_vmem [thread:$0]  %s23, 2048, %s801, [#allocation10], 128, 128, 8
        $region48: #{tpu_custom_call.1} parent=11 // pred_fallthru
          _
        // Predicated region
        $region49: #{tpu_custom_call.1} parent=11 // pred_check
          %p807 = pneg %p381
        $region50: #{tpu_custom_call.1} parent=11 // pred_check_branch
          %809 = sbr.rel (%p807) target = $region52
        $region51: #{tpu_custom_call.1} parent=11 // pred_region
          _
        $region52: #{tpu_custom_call.1} parent=11 // pred_fallthru
          _
        // Predicated region
        $region53: #{tpu_custom_call.1} parent=11 // pred_check
          %p810 = pneg %p402
        $region54: #{tpu_custom_call.1} parent=11 // pred_check_branch
          %812 = sbr.rel (%p810) target = $region56
        $region55: #{tpu_custom_call.1} parent=11 // pred_region
          %s814 = ssub.s32 2048, 2048
          %815 = vsyncadd [#allocation13], %s814
          %s816 = sshll.u32 [#allocation12], 4
          %s817 = int_to_ptr.vmem [resolvable:$true] %s816
          %822 = dma.hbm_to_vmem [thread:$0]  %s27, 2048, %s817, [#allocation13], 128, 128, 8
        $region56: #{tpu_custom_call.1} parent=11 // pred_fallthru
          _
        // Predicated region
        $region57: #{tpu_custom_call.1} parent=11 // pred_check
          %p823 = pneg %p423
        $region58: #{tpu_custom_call.1} parent=11 // pred_check_branch
          %825 = sbr.rel (%p823) target = $region60
        $region59: #{tpu_custom_call.1} parent=11 // pred_region
          _
        $region60: #{tpu_custom_call.1} parent=11 // pred_fallthru
          _
        // Predicated region
        $region61: #{tpu_custom_call.1} parent=11 // pred_check
          %p826 = pneg %p444
        $region62: #{tpu_custom_call.1} parent=11 // pred_check_branch
          %828 = sbr.rel (%p826) target = $region64
        $region63: #{tpu_custom_call.1} parent=11 // pred_region
          %s830 = ssub.s32 2048, 2048
          %831 = vsyncadd [#allocation13], %s830
          %s832 = sshll.u32 [#allocation14], 4
          %s833 = int_to_ptr.vmem [resolvable:$true] %s832
          %838 = dma.hbm_to_vmem [thread:$0]  %s31, 2048, %s833, [#allocation13], 128, 128, 8
        $region64: #{tpu_custom_call.1} parent=11 // pred_fallthru
          _
        // Predicated region
        $region65: #{tpu_custom_call.1} parent=11 // pred_check
          %p839 = pneg %p465
        $region66: #{tpu_custom_call.1} parent=11 // pred_check_branch
          %841 = sbr.rel (%p839) target = $region68
        $region67: #{tpu_custom_call.1} parent=11 // pred_region
          _
        $region68: #{tpu_custom_call.1} parent=11 // pred_fallthru
          _
        // Predicated region
        $region69: #{tpu_custom_call.1} parent=11 // pred_check
          %p842 = pneg %p486
        $region70: #{tpu_custom_call.1} parent=11 // pred_check_branch
          %844 = sbr.rel (%p842) target = $region72
        $region71: #{tpu_custom_call.1} parent=11 // pred_region
          %s846 = ssub.s32 2048, 2048
          %847 = vsyncadd [#allocation16], %s846
          %s848 = sshll.u32 [#allocation15], 4
          %s849 = int_to_ptr.vmem [resolvable:$true] %s848
          %854 = dma.hbm_to_vmem [thread:$0]  %s35, 2048, %s849, [#allocation16], 128, 128, 8
        $region72: #{tpu_custom_call.1} parent=11 // pred_fallthru
          _
        // Predicated region
        $region73: #{tpu_custom_call.1} parent=11 // pred_check
          %p855 = pneg %p507
        $region74: #{tpu_custom_call.1} parent=11 // pred_check_branch
          %857 = sbr.rel (%p855) target = $region76
        $region75: #{tpu_custom_call.1} parent=11 // pred_region
          _
        $region76: #{tpu_custom_call.1} parent=11 // pred_fallthru
          _
        // Predicated region
        $region77: #{tpu_custom_call.1} parent=11 // pred_check
          %p858 = pneg %p528
        $region78: #{tpu_custom_call.1} parent=11 // pred_check_branch
          %860 = sbr.rel (%p858) target = $region80
        $region79: #{tpu_custom_call.1} parent=11 // pred_region
          %s862 = ssub.s32 2048, 2048
          %863 = vsyncadd [#allocation16], %s862
          %s864 = sshll.u32 [#allocation17], 4
          %s865 = int_to_ptr.vmem [resolvable:$true] %s864
          %870 = dma.hbm_to_vmem [thread:$0]  %s39, 2048, %s865, [#allocation16], 128, 128, 8
        $region80: #{tpu_custom_call.1} parent=11 // pred_fallthru
          _
        // Predicated region
        $region81: #{tpu_custom_call.1} parent=11 // pred_check
          %p871 = pneg %p549
        $region82: #{tpu_custom_call.1} parent=11 // pred_check_branch
          %873 = sbr.rel (%p871) target = $region84
        $region83: #{tpu_custom_call.1} parent=11 // pred_region
          _
        $region84: #{tpu_custom_call.1} parent=11 // pred_fallthru
          _
        // Predicated region
        $region85: #{tpu_custom_call.1} parent=11 // pred_check
          %p874 = pneg %p570
        $region86: #{tpu_custom_call.1} parent=11 // pred_check_branch
          %876 = sbr.rel (%p874) target = $region88
        $region87: #{tpu_custom_call.1} parent=11 // pred_region
          %s878 = ssub.s32 2048, 2048
          %879 = vsyncadd [#allocation19], %s878
          %s880 = sshll.u32 [#allocation18], 4
          %s881 = int_to_ptr.vmem [resolvable:$true] %s880
          %886 = dma.hbm_to_vmem [thread:$0]  %s43, 2048, %s881, [#allocation19], 128, 128, 8
        $region88: #{tpu_custom_call.1} parent=11 // pred_fallthru
          _
        // Predicated region
        $region89: #{tpu_custom_call.1} parent=11 // pred_check
          %p887 = pneg %p591
        $region90: #{tpu_custom_call.1} parent=11 // pred_check_branch
          %889 = sbr.rel (%p887) target = $region92
        $region91: #{tpu_custom_call.1} parent=11 // pred_region
          _
        $region92: #{tpu_custom_call.1} parent=11 // pred_fallthru
          _
        // Predicated region
        $region93: #{tpu_custom_call.1} parent=11 // pred_check
          %p890 = pneg %p612
        $region94: #{tpu_custom_call.1} parent=11 // pred_check_branch
          %892 = sbr.rel (%p890) target = $region96
        $region95: #{tpu_custom_call.1} parent=11 // pred_region
          %s894 = ssub.s32 2048, 2048
          %895 = vsyncadd [#allocation19], %s894
          %s896 = sshll.u32 [#allocation20], 4
          %s897 = int_to_ptr.vmem [resolvable:$true] %s896
          %902 = dma.hbm_to_vmem [thread:$0]  %s47, 2048, %s897, [#allocation19], 128, 128, 8
        $region96: #{tpu_custom_call.1} parent=11 // pred_fallthru
          _
        // Predicated region
        $region97: #{tpu_custom_call.1} parent=11 // pred_check
          %p903 = pneg %p633
        $region98: #{tpu_custom_call.1} parent=11 // pred_check_branch
          %905 = sbr.rel (%p903) target = $region100
        $region99: #{tpu_custom_call.1} parent=11 // pred_region
          _
        $region100: #{tpu_custom_call.1} parent=11 // pred_fallthru
          _
        // Predicated region
        $region101: #{tpu_custom_call.1} parent=11 // pred_check
          %p906 = pneg %p654
        $region102: #{tpu_custom_call.1} parent=11 // pred_check_branch
          %908 = sbr.rel (%p906) target = $region104
        $region103: #{tpu_custom_call.1} parent=11 // pred_region
          %s910 = ssub.s32 4096, 4096
          %911 = vsyncadd [#allocation22], %s910
          %s912 = sshll.u32 [#allocation21], 4
          %s913 = int_to_ptr.vmem [resolvable:$true] %s912
          %918 = dma.hbm_to_vmem [thread:$0]  %s51, 4096, %s913, [#allocation22], 256, 256, 16
        $region104: #{tpu_custom_call.1} parent=11 // pred_fallthru
          _
        // Predicated region
        $region105: #{tpu_custom_call.1} parent=11 // pred_check
          %p919 = pneg %p675
        $region106: #{tpu_custom_call.1} parent=11 // pred_check_branch
          %921 = sbr.rel (%p919) target = $region108
        $region107: #{tpu_custom_call.1} parent=11 // pred_region
          _
        $region108: #{tpu_custom_call.1} parent=11 // pred_fallthru
          _
        // Predicated region
        $region109: #{tpu_custom_call.1} parent=11 // pred_check
          %p922 = pneg %p696
        $region110: #{tpu_custom_call.1} parent=11 // pred_check_branch
          %924 = sbr.rel (%p922) target = $region112
        $region111: #{tpu_custom_call.1} parent=11 // pred_region
          %s926 = ssub.s32 4096, 4096
          %927 = vsyncadd [#allocation22], %s926
          %s928 = sshll.u32 [#allocation23], 4
          %s929 = int_to_ptr.vmem [resolvable:$true] %s928
          %934 = dma.hbm_to_vmem [thread:$0]  %s55, 4096, %s929, [#allocation22], 128, 128, 8
        $region112: #{tpu_custom_call.1} parent=11 // pred_fallthru
          _
        // Predicated region
        $region113: #{tpu_custom_call.1} parent=11 // pred_check
          %p935 = pneg %p717
        $region114: #{tpu_custom_call.1} parent=11 // pred_check_branch
          %937 = sbr.rel (%p935) target = $region116
        $region115: #{tpu_custom_call.1} parent=11 // pred_region
          _
        $region116: #{tpu_custom_call.1} parent=11 // pred_fallthru
          _
      $region12: #{tpu_custom_call.1} parent=5 // pred_fallthru
        _
      %p938 = scmp.lt.s32.totalorder %s79, 2
      // Predicated region
      $region117: #{tpu_custom_call.1} parent=5 // pred_check
        %p939 = pneg %p938
      $region118: #{tpu_custom_call.1} parent=5 // pred_check_branch
        %941 = sbr.rel (%p939) target = $region120
      $region119: #{tpu_custom_call.1} parent=5 // pred_region
        // Predicated region
        $region121: #{tpu_custom_call.1} parent=119 // pred_check
          %p942 = pneg %p113
        $region122: #{tpu_custom_call.1} parent=119 // pred_check_branch
          %944 = sbr.rel (%p942) target = $region124
        $region123: #{tpu_custom_call.1} parent=119 // pred_region
          %s945 = sand.u32 %s103, 1
          %s946 = scalar_lea.sflag [#allocation4], %s945
          %s947 = sand.u32 %s103, 1
          %s948 = smul.addr %s947, 16
          %s949 = scalar_lea.vmem [#allocation3], %s948
          %s950 = smul.u32 2, %s87
          %s952 = ssub.s32 256, 256
          %953 = vsyncadd %s946, %s952
          %s954 = smul.addr %s86, 2
          %s955 = sadd.s32 %s950, %s954
          %s956 = smul.addr %s955, 128
          %s957 = scalar_lea.hbm %s1, %s956
          %s958 = sshll.u32 %s949, 4
          %s959 = int_to_ptr.vmem [resolvable:$true] %s958
          %964 = dma.hbm_to_vmem [thread:$0]  %s957, 256, %s959, %s946, 128, 128, 8
        $region124: #{tpu_custom_call.1} parent=119 // pred_fallthru
          _
        // Predicated region
        $region125: #{tpu_custom_call.1} parent=119 // pred_check
          %p965 = pneg %p139
        $region126: #{tpu_custom_call.1} parent=119 // pred_check_branch
          %967 = sbr.rel (%p965) target = $region128
        $region127: #{tpu_custom_call.1} parent=119 // pred_region
          %s968 = sand.u32 %s79, 1
          %s969 = scalar_lea.sflag [#allocation7], %s968
          %s970 = sand.u32 %s129, 1
          %s971 = smul.addr %s970, 16
          %s972 = scalar_lea.vmem [#allocation6], %s971
          %s974 = ssub.s32 256, 256
          %975 = vsyncadd %s969, %s974
          %s976 = smul.addr %s86, 2
          %s977 = smul.addr %s976, 128
          %s978 = scalar_lea.hbm %s3, %s977
          %s979 = sshll.u32 %s972, 4
          %s980 = int_to_ptr.vmem [resolvable:$true] %s979
          %985 = dma.hbm_to_vmem [thread:$0]  %s978, 256, %s980, %s969, 128, 128, 8
        $region128: #{tpu_custom_call.1} parent=119 // pred_fallthru
          _
        // Predicated region
        $region129: #{tpu_custom_call.1} parent=119 // pred_check
          %p986 = pneg %p165
        $region130: #{tpu_custom_call.1} parent=119 // pred_check_branch
          %988 = sbr.rel (%p986) target = $region132
        $region131: #{tpu_custom_call.1} parent=119 // pred_region
          %s989 = sand.u32 %s79, 1
          %s990 = scalar_lea.sflag [#allocation7], %s989
          %s991 = sand.u32 %s155, 1
          %s992 = smul.addr %s991, 8
          %s993 = scalar_lea.vmem [#allocation8], %s992
          %s995 = ssub.s32 128, 128
          %996 = vsyncadd %s990, %s995
          %s997 = smul.addr %s86, 128
          %s998 = scalar_lea.hbm %s5, %s997
          %s1000 = sshll.u32 %s993, 4
          %s1001 = int_to_ptr.vmem [resolvable:$true] %s1000
          %1003 = dma.hbm_to_vmem [thread:$0]  %s998, 128, %s1001, %s990
        $region132: #{tpu_custom_call.1} parent=119 // pred_fallthru
          _
      $region120: #{tpu_custom_call.1} parent=5 // pred_fallthru
        _
      %p1004 = scmp.le.s32.totalorder 1, %s79
      %p1005 = scmp.lt.s32.totalorder %s79, 3
      %p1006 = pnand %p1004, %p1005
      %p1007 = pneg %p1006
      // Predicated region
      $region133: #{tpu_custom_call.1} parent=5 // pred_check
        _
      $region134: #{tpu_custom_call.1} parent=5 // pred_check_branch
        %1009 = sbr.rel (%p1006) target = $region136
      $region135: #{tpu_custom_call.1} parent=5 // pred_region
        %s1010 = ssub.s32 %s79, 1
        %s1011 = sand.u32 %s106, 1
        %s1012 = scalar_lea.sflag [#allocation4], %s1011
        %s1013 = sand.u32 %s106, 1
        %s1014 = smul.addr %s1013, 16
        %s1015 = scalar_lea.vmem [#allocation3], %s1014
        // Predicated region
        $region137: #{tpu_custom_call.1} parent=135 // pred_check
          %p1016 = pneg %p119
        $region138: #{tpu_custom_call.1} parent=135 // pred_check_branch
          %1018 = sbr.rel (%p1016) target = $region140
        $region139: #{tpu_custom_call.1} parent=135 // pred_region
          %1019 = dma.done %s1012, 256
        $region140: #{tpu_custom_call.1} parent=135 // pred_fallthru
          _
        %s1020 = sand.u32 %s84, 1
        %s1021 = scalar_lea.sflag [#allocation7], %s1020
        %s1022 = sand.u32 %s132, 1
        %s1023 = smul.addr %s1022, 16
        %s1024 = scalar_lea.vmem [#allocation6], %s1023
        // Predicated region
        $region141: #{tpu_custom_call.1} parent=135 // pred_check
          %p1025 = pneg %p145
        $region142: #{tpu_custom_call.1} parent=135 // pred_check_branch
          %1027 = sbr.rel (%p1025) target = $region144
        $region143: #{tpu_custom_call.1} parent=135 // pred_region
          %1028 = dma.done %s1021, 256
        $region144: #{tpu_custom_call.1} parent=135 // pred_fallthru
          _
        %s1029 = sand.u32 %s84, 1
        %s1030 = scalar_lea.sflag [#allocation7], %s1029
        %s1031 = sand.u32 %s158, 1
        %s1032 = smul.addr %s1031, 8
        %s1033 = scalar_lea.vmem [#allocation8], %s1032
        // Predicated region
        $region145: #{tpu_custom_call.1} parent=135 // pred_check
          %p1034 = pneg %p171
        $region146: #{tpu_custom_call.1} parent=135 // pred_check_branch
          %1036 = sbr.rel (%p1034) target = $region148
        $region147: #{tpu_custom_call.1} parent=135 // pred_region
          %1037 = dma.done %s1030, 128
        $region148: #{tpu_custom_call.1} parent=135 // pred_fallthru
          _
        // Predicated region
        $region149: #{tpu_custom_call.1} parent=135 // pred_check
          %p1038 = pneg %p318
        $region150: #{tpu_custom_call.1} parent=135 // pred_check_branch
          %1040 = sbr.rel (%p1038) target = $region152
        $region151: #{tpu_custom_call.1} parent=135 // pred_region
          %1041 = dma.done [#allocation10], 2048
        $region152: #{tpu_custom_call.1} parent=135 // pred_fallthru
          _
        // Predicated region
        $region153: #{tpu_custom_call.1} parent=135 // pred_check
          %p1042 = pneg %p360
        $region154: #{tpu_custom_call.1} parent=135 // pred_check_branch
          %1044 = sbr.rel (%p1042) target = $region156
        $region155: #{tpu_custom_call.1} parent=135 // pred_region
          %1045 = dma.done [#allocation10], 2048
        $region156: #{tpu_custom_call.1} parent=135 // pred_fallthru
          _
        // Predicated region
        $region157: #{tpu_custom_call.1} parent=135 // pred_check
          %p1046 = pneg %p402
        $region158: #{tpu_custom_call.1} parent=135 // pred_check_branch
          %1048 = sbr.rel (%p1046) target = $region160
        $region159: #{tpu_custom_call.1} parent=135 // pred_region
          %1049 = dma.done [#allocation13], 2048
        $region160: #{tpu_custom_call.1} parent=135 // pred_fallthru
          _
        // Predicated region
        $region161: #{tpu_custom_call.1} parent=135 // pred_check
          %p1050 = pneg %p444
        $region162: #{tpu_custom_call.1} parent=135 // pred_check_branch
          %1052 = sbr.rel (%p1050) target = $region164
        $region163: #{tpu_custom_call.1} parent=135 // pred_region
          %1053 = dma.done [#allocation13], 2048
        $region164: #{tpu_custom_call.1} parent=135 // pred_fallthru
          _
        // Predicated region
        $region165: #{tpu_custom_call.1} parent=135 // pred_check
          %p1054 = pneg %p486
        $region166: #{tpu_custom_call.1} parent=135 // pred_check_branch
          %1056 = sbr.rel (%p1054) target = $region168
        $region167: #{tpu_custom_call.1} parent=135 // pred_region
          %1057 = dma.done [#allocation16], 2048
        $region168: #{tpu_custom_call.1} parent=135 // pred_fallthru
          _
        // Predicated region
        $region169: #{tpu_custom_call.1} parent=135 // pred_check
          %p1058 = pneg %p528
        $region170: #{tpu_custom_call.1} parent=135 // pred_check_branch
          %1060 = sbr.rel (%p1058) target = $region172
        $region171: #{tpu_custom_call.1} parent=135 // pred_region
          %1061 = dma.done [#allocation16], 2048
        $region172: #{tpu_custom_call.1} parent=135 // pred_fallthru
          _
        // Predicated region
        $region173: #{tpu_custom_call.1} parent=135 // pred_check
          %p1062 = pneg %p570
        $region174: #{tpu_custom_call.1} parent=135 // pred_check_branch
          %1064 = sbr.rel (%p1062) target = $region176
        $region175: #{tpu_custom_call.1} parent=135 // pred_region
          %1065 = dma.done [#allocation19], 2048
        $region176: #{tpu_custom_call.1} parent=135 // pred_fallthru
          _
        // Predicated region
        $region177: #{tpu_custom_call.1} parent=135 // pred_check
          %p1066 = pneg %p612
        $region178: #{tpu_custom_call.1} parent=135 // pred_check_branch
          %1068 = sbr.rel (%p1066) target = $region180
        $region179: #{tpu_custom_call.1} parent=135 // pred_region
          %1069 = dma.done [#allocation19], 2048
        $region180: #{tpu_custom_call.1} parent=135 // pred_fallthru
          _
        // Predicated region
        $region181: #{tpu_custom_call.1} parent=135 // pred_check
          %p1070 = pneg %p654
        $region182: #{tpu_custom_call.1} parent=135 // pred_check_branch
          %1072 = sbr.rel (%p1070) target = $region184
        $region183: #{tpu_custom_call.1} parent=135 // pred_region
          %1073 = dma.done [#allocation22], 4096
        $region184: #{tpu_custom_call.1} parent=135 // pred_fallthru
          _
        // Predicated region
        $region185: #{tpu_custom_call.1} parent=135 // pred_check
          %p1074 = pneg %p696
        $region186: #{tpu_custom_call.1} parent=135 // pred_check_branch
          %1076 = sbr.rel (%p1074) target = $region188
        $region187: #{tpu_custom_call.1} parent=135 // pred_region
          %1077 = dma.done [#allocation22], 4096
        $region188: #{tpu_custom_call.1} parent=135 // pred_fallthru
          _
        %s1078 = sand.u32 %s106, 1
        %s1079 = scalar_lea.sflag [#allocation4], %s1078
        %s1080 = sand.u32 %s106, 1
        %s1081 = smul.addr %s1080, 16
        %s1082 = scalar_lea.vmem [#allocation3], %s1081
        %p1083 = pneg %p119
        %p1084 = pneg %p116
        %s1085 = sand.u32 %s84, 1
        %s1086 = scalar_lea.sflag [#allocation7], %s1085
        %s1087 = sand.u32 %s132, 1
        %s1088 = smul.addr %s1087, 16
        %s1089 = scalar_lea.vmem [#allocation6], %s1088
        %p1090 = pneg %p145
        %p1091 = pneg %p142
        %s1092 = sand.u32 %s84, 1
        %s1093 = scalar_lea.sflag [#allocation7], %s1092
        %s1094 = sand.u32 %s158, 1
        %s1095 = smul.addr %s1094, 8
        %s1096 = scalar_lea.vmem [#allocation8], %s1095
        %p1097 = pneg %p171
        %p1098 = pneg %p168
        %p1099 = pneg %p192
        %p1100 = pneg %p189
        %p1101 = pneg %p213
        %p1102 = pneg %p210
        %p1103 = pneg %p234
        %p1104 = pneg %p231
        %p1105 = pneg %p255
        %p1106 = pneg %p252
        %p1107 = pneg %p276
        %p1108 = pneg %p273
        %p1109 = pneg %p297
        %p1110 = pneg %p294
        %p1111 = pneg %p318
        %p1112 = pneg %p315
        %p1113 = pneg %p339
        %p1114 = pneg %p336
        %p1115 = pneg %p360
        %p1116 = pneg %p357
        %p1117 = pneg %p381
        %p1118 = pneg %p378
        %p1119 = pneg %p402
        %p1120 = pneg %p399
        %p1121 = pneg %p423
        %p1122 = pneg %p420
        %p1123 = pneg %p444
        %p1124 = pneg %p441
        %p1125 = pneg %p465
        %p1126 = pneg %p462
        %p1127 = pneg %p486
        %p1128 = pneg %p483
        %p1129 = pneg %p507
        %p1130 = pneg %p504
        %p1131 = pneg %p528
        %p1132 = pneg %p525
        %p1133 = pneg %p549
        %p1134 = pneg %p546
        %p1135 = pneg %p570
        %p1136 = pneg %p567
        %p1137 = pneg %p591
        %p1138 = pneg %p588
        %p1139 = pneg %p612
        %p1140 = pneg %p609
        %p1141 = pneg %p633
        %p1142 = pneg %p630
        %p1143 = pneg %p654
        %p1144 = pneg %p651
        %p1145 = pneg %p675
        %p1146 = pneg %p672
        %p1147 = pneg %p696
        %p1148 = pneg %p693
        %p1149 = pneg %p717
        %p1150 = pneg %p714
        %p1151 = pneg %p745
        %p1152 = pneg %p742
        %s1153 = sand.u32 %s732, 1
        %s1154 = scalar_lea.sflag [#allocation5], %s1153
        %s1155 = sand.u32 %s732, 1
        %s1156 = smul.addr %s1155, 16
        %s1157 = scalar_lea.vmem [#allocation24], %s1156
        %s1158 = smul.u32 2, %s89
        %s1159 = smul.u32 2, %s89
        %s1160 = smul.u32 %s89, 16
        %v1161 = vlaneseq
        %v1162 = vshrl.u32 %v1161, 7
        %v1163 = vadd.s32 %v1162, 8
        %v1164 = vstv %s1160
        %v1165 = vadd.s32 %v1162, %v1164
        %v1166 = vadd.s32 %v1163, %v1164
        %v1167 = vlaneseq
        %v1168 = vand.u32 %v1167, 127
        %vm1169 = vcmp.le.s32.totalorder %v1168, %v1165
        %vm1170 = vcmp.le.s32.totalorder %v1168, %v1166
        %v1171 = vsel %vm1169, 0.0, -1e+30
        %v1172 = vsel %vm1170, 0.0, -1e+30
        %v1173 = vld [vmem:[%s1015] sm:$0xff]
        %v1174 = vld [vmem:[%s1015 + $0x8] sm:$0xff]
        %v1175 = vld [vmem:[%s7] sm:$0x1]
        %v1176 = vld [vmem:[%s9] sm:$0x1]
        %1177 = vadd.xlane.f32.xlu0 %v1173
        %v1178 = vpop.xlane.xlu0 %1177
        %1179 = vadd.xlane.f32.xlu0 %v1174
        %v1180 = vpop.xlane.xlu0 %1179
        %v1181 = vrcp.pop 128.0
        %v1182 = vmul.f32 %v1178, %v1181
        %v1183 = vmul.f32 %v1180, %v1181
        %v1184 = vsub.f32 %v1173, %v1182
        %v1185 = vsub.f32 %v1174, %v1183
        %v1186 = vmul.f32 %v1184, %v1184
        %v1187 = vmul.f32 %v1185, %v1185
        %1188 = vadd.xlane.f32.xlu0 %v1186
        %v1189 = vpop.xlane.xlu0 %1188
        %1190 = vadd.xlane.f32.xlu0 %v1187
        %v1191 = vpop.xlane.xlu0 %1190
        %v1192 = vmul.f32 %v1189, %v1181
        %v1193 = vmul.f32 %v1191, %v1181
        %v1194 = vadd.f32 %v1192, 1e-05
        %v1195 = vadd.f32 %v1193, 1e-05
        %v1196 = vrsqrt.pop %v1194
        %v1197 = vrsqrt.pop %v1195
        %v1198 = vmul.f32 %v1184, %v1196
        %v1199 = vmul.f32 %v1185, %v1197
        %v1201 = vlaneseq
        %v1202 = vshrl.u32 %v1201, 7
        %v1203 = vsub.s32 0, %v1202
        %v1204 = vrot.slane %v1175, %v1203
        %v1206 = vmul.f32 %v1198, %v1204
        %v1207 = vmul.f32 %v1199, %v1204
        %v1209 = vlaneseq
        %v1210 = vshrl.u32 %v1209, 7
        %v1211 = vsub.s32 0, %v1210
        %v1212 = vrot.slane %v1176, %v1211
        %v1214 = vadd.f32 %v1206, %v1212
        %v1215 = vadd.f32 %v1207, %v1212
        %v1216 = vld [vmem:[%s1024] sm:$0xff]
        %v1217 = vld [vmem:[%s1024 + $0x8] sm:$0xff]
        %1218 = vadd.xlane.f32.xlu0 %v1216
        %v1219 = vpop.xlane.xlu0 %1218
        %1220 = vadd.xlane.f32.xlu0 %v1217
        %v1221 = vpop.xlane.xlu0 %1220
        %v1222 = vmul.f32 %v1219, %v1181
        %v1223 = vmul.f32 %v1221, %v1181
        %v1224 = vsub.f32 %v1216, %v1222
        %v1225 = vsub.f32 %v1217, %v1223
        %v1226 = vmul.f32 %v1224, %v1224
        %v1227 = vmul.f32 %v1225, %v1225
        %1228 = vadd.xlane.f32.xlu0 %v1226
        %v1229 = vpop.xlane.xlu0 %1228
        %1230 = vadd.xlane.f32.xlu0 %v1227
        %v1231 = vpop.xlane.xlu0 %1230
        %v1232 = vmul.f32 %v1229, %v1181
        %v1233 = vmul.f32 %v1231, %v1181
        %v1234 = vadd.f32 %v1232, 1e-05
        %v1235 = vadd.f32 %v1233, 1e-05
        %v1236 = vrsqrt.pop %v1234
        %v1237 = vrsqrt.pop %v1235
        %v1238 = vmul.f32 %v1224, %v1236
        %v1239 = vmul.f32 %v1225, %v1237
        %v1240 = vmul.f32 %v1238, %v1204
        %v1241 = vmul.f32 %v1239, %v1204
        %v1242 = vadd.f32 %v1240, %v1212
        %v1243 = vadd.f32 %v1241, %v1212
        %v1244 = vld [vmem:[#allocation9] sm:$0xff]
        %v1245 = vld [vmem:[#allocation9 + $0x8] sm:$0xff]
        %v1246 = vld [vmem:[#allocation9 + $0x10] sm:$0xff]
        %v1247 = vld [vmem:[#allocation9 + $0x18] sm:$0xff]
        %v1248 = vld [vmem:[#allocation9 + $0x20] sm:$0xff]
        %v1249 = vld [vmem:[#allocation9 + $0x28] sm:$0xff]
        %v1250 = vld [vmem:[#allocation9 + $0x30] sm:$0xff]
        %v1251 = vld [vmem:[#allocation9 + $0x38] sm:$0xff]
        %v1252 = vld [vmem:[#allocation9 + $0x40] sm:$0xff]
        %v1253 = vld [vmem:[#allocation9 + $0x48] sm:$0xff]
        %v1254 = vld [vmem:[#allocation9 + $0x50] sm:$0xff]
        %v1255 = vld [vmem:[#allocation9 + $0x58] sm:$0xff]
        %v1256 = vld [vmem:[#allocation9 + $0x60] sm:$0xff]
        %v1257 = vld [vmem:[#allocation9 + $0x68] sm:$0xff]
        %v1258 = vld [vmem:[#allocation9 + $0x70] sm:$0xff]
        %v1259 = vld [vmem:[#allocation9 + $0x78] sm:$0xff]
        %v1260 = vld [vmem:[%s21] sm:$0x1]
        %v1261 = vld [vmem:[#allocation11] sm:$0xff]
        %v1262 = vld [vmem:[#allocation11 + $0x8] sm:$0xff]
        %v1263 = vld [vmem:[#allocation11 + $0x10] sm:$0xff]
        %v1264 = vld [vmem:[#allocation11 + $0x18] sm:$0xff]
        %v1265 = vld [vmem:[#allocation11 + $0x20] sm:$0xff]
        %v1266 = vld [vmem:[#allocation11 + $0x28] sm:$0xff]
        %v1267 = vld [vmem:[#allocation11 + $0x30] sm:$0xff]
        %v1268 = vld [vmem:[#allocation11 + $0x38] sm:$0xff]
        %v1269 = vld [vmem:[#allocation11 + $0x40] sm:$0xff]
        %v1270 = vld [vmem:[#allocation11 + $0x48] sm:$0xff]
        %v1271 = vld [vmem:[#allocation11 + $0x50] sm:$0xff]
        %v1272 = vld [vmem:[#allocation11 + $0x58] sm:$0xff]
        %v1273 = vld [vmem:[#allocation11 + $0x60] sm:$0xff]
        %v1274 = vld [vmem:[#allocation11 + $0x68] sm:$0xff]
        %v1275 = vld [vmem:[#allocation11 + $0x70] sm:$0xff]
        %v1276 = vld [vmem:[#allocation11 + $0x78] sm:$0xff]
        %v1277 = vld [vmem:[%s25] sm:$0x1]
        %v1278 = vld [vmem:[#allocation12] sm:$0xff]
        %v1279 = vld [vmem:[#allocation12 + $0x8] sm:$0xff]
        %v1280 = vld [vmem:[#allocation12 + $0x10] sm:$0xff]
        %v1281 = vld [vmem:[#allocation12 + $0x18] sm:$0xff]
        %v1282 = vld [vmem:[#allocation12 + $0x20] sm:$0xff]
        %v1283 = vld [vmem:[#allocation12 + $0x28] sm:$0xff]
        %v1284 = vld [vmem:[#allocation12 + $0x30] sm:$0xff]
        %v1285 = vld [vmem:[#allocation12 + $0x38] sm:$0xff]
        %v1286 = vld [vmem:[#allocation12 + $0x40] sm:$0xff]
        %v1287 = vld [vmem:[#allocation12 + $0x48] sm:$0xff]
        %v1288 = vld [vmem:[#allocation12 + $0x50] sm:$0xff]
        %v1289 = vld [vmem:[#allocation12 + $0x58] sm:$0xff]
        %v1290 = vld [vmem:[#allocation12 + $0x60] sm:$0xff]
        %v1291 = vld [vmem:[#allocation12 + $0x68] sm:$0xff]
        %v1292 = vld [vmem:[#allocation12 + $0x70] sm:$0xff]
        %v1293 = vld [vmem:[#allocation12 + $0x78] sm:$0xff]
        %v1294 = vld [vmem:[%s29] sm:$0x1]
        %v1295 = vld [vmem:[#allocation14] sm:$0xff]
        %v1296 = vld [vmem:[#allocation14 + $0x8] sm:$0xff]
        %v1297 = vld [vmem:[#allocation14 + $0x10] sm:$0xff]
        %v1298 = vld [vmem:[#allocation14 + $0x18] sm:$0xff]
        %v1299 = vld [vmem:[#allocation14 + $0x20] sm:$0xff]
        %v1300 = vld [vmem:[#allocation14 + $0x28] sm:$0xff]
        %v1301 = vld [vmem:[#allocation14 + $0x30] sm:$0xff]
        %v1302 = vld [vmem:[#allocation14 + $0x38] sm:$0xff]
        %v1303 = vld [vmem:[#allocation14 + $0x40] sm:$0xff]
        %v1304 = vld [vmem:[#allocation14 + $0x48] sm:$0xff]
        %v1305 = vld [vmem:[#allocation14 + $0x50] sm:$0xff]
        %v1306 = vld [vmem:[#allocation14 + $0x58] sm:$0xff]
        %v1307 = vld [vmem:[#allocation14 + $0x60] sm:$0xff]
        %v1308 = vld [vmem:[#allocation14 + $0x68] sm:$0xff]
        %v1309 = vld [vmem:[#allocation14 + $0x70] sm:$0xff]
        %v1310 = vld [vmem:[#allocation14 + $0x78] sm:$0xff]
        %v1311 = vld [vmem:[%s33] sm:$0x1]
        %v1313 = vlaneseq
        %v1314 = vshrl.u32 %v1313, 7
        %v1315 = vsub.s32 0, %v1314
        %v1316 = vrot.slane %v1260, %v1315
        %1318 = vmatprep.subr.mxu0 0.0
        %1319 = vmatpush1.msra.mxu0 %v1244
        %1320 = vmatprep.subr.mxu0 0.0
        %1321 = vmatpush1.msra.mxu0 %v1245
        %1322 = vmatprep.subr.mxu0 0.0
        %1323 = vmatpush1.msra.mxu0 %v1246
        %1324 = vmatprep.subr.mxu0 0.0
        %1325 = vmatpush1.msra.mxu0 %v1247
        %1326 = vmatprep.subr.mxu0 0.0
        %1327 = vmatpush1.msra.mxu0 %v1248
        %1328 = vmatprep.subr.mxu0 0.0
        %1329 = vmatpush1.msra.mxu0 %v1249
        %1330 = vmatprep.subr.mxu0 0.0
        %1331 = vmatpush1.msra.mxu0 %v1250
        %1332 = vmatprep.subr.mxu0 0.0
        %1333 = vmatpush1.msra.mxu0 %v1251
        %1334 = vmatprep.subr.mxu0 0.0
        %1335 = vmatpush1.msra.mxu0 %v1252
        %1336 = vmatprep.subr.mxu0 0.0
        %1337 = vmatpush1.msra.mxu0 %v1253
        %1338 = vmatprep.subr.mxu0 0.0
        %1339 = vmatpush1.msra.mxu0 %v1254
        %1340 = vmatprep.subr.mxu0 0.0
        %1341 = vmatpush1.msra.mxu0 %v1255
        %1342 = vmatprep.subr.mxu0 0.0
        %1343 = vmatpush1.msra.mxu0 %v1256
        %1344 = vmatprep.subr.mxu0 0.0
        %1345 = vmatpush1.msra.mxu0 %v1257
        %1346 = vmatprep.subr.mxu0 0.0
        %1347 = vmatpush1.msra.mxu0 %v1258
        %1348 = vmatprep.subr.mxu0 0.0
        %1349 = vmatpush1.msra.mxu0 %v1259
        %1350 = vmatprep.subr.mxu0 0.0
        %1351 = vmatpush1.msra.mxu0 0.0
        %1352 = vmatprep.subr.mxu0 0.0
        %1353 = vmatpush1.msra.mxu0 0.0
        %1354 = vmatprep.subr.mxu0 0.0
        %1355 = vmatpush1.msra.mxu0 0.0
        %1356 = vmatprep.subr.mxu0 0.0
        %1357 = vmatpush1.msra.mxu0 0.0
        %1358 = vmatprep.subr.mxu0 0.0
        %1359 = vmatpush1.msra.mxu0 0.0
        %1360 = vmatprep.subr.mxu0 0.0
        %1361 = vmatpush1.msra.mxu0 0.0
        %1362 = vmatprep.subr.mxu0 0.0
        %1363 = vmatpush1.msra.mxu0 0.0
        %1364 = vmatprep.subr.mxu0 0.0
        %1365 = vmatpush1.msra.mxu0 0.0
        %1366 = vmatprep.subr.mxu0 0.0
        %1367 = vmatpush1.msra.mxu0 0.0
        %1368 = vmatprep.subr.mxu0 0.0
        %1369 = vmatpush1.msra.mxu0 0.0
        %1370 = vmatprep.subr.mxu0 0.0
        %1371 = vmatpush1.msra.mxu0 0.0
        %1372 = vmatprep.subr.mxu0 0.0
        %1373 = vmatpush1.msra.mxu0 0.0
        %1374 = vmatprep.subr.mxu0 0.0
        %1375 = vmatpush1.msra.mxu0 0.0
        %1376 = vmatprep.subr.mxu0 0.0
        %1377 = vmatpush1.msra.mxu0 0.0
        %1378 = vmatprep.subr.mxu0 0.0
        %1379 = vmatpush1.msra.mxu0 0.0
        %1380 = vmatprep.subr.mxu0 0.0
        %1381 = vmatpush1.msra.mxu0 0.0
        %1382 = vmatprep.mubr.f32.mxu0 0.0
        %1383 = vmatmul.mubr.f32.gmra.mrb[0].mxu0 %v1214
        %v1384 = vpop.f32.mrb[0].mxu0
        %v1385 = vadd.f32 %v1316, %v1384
        %v1386 = vpop.f32.mrb[0].mxu0
        %1387 = vmatprep.mubr.f32.mxu0 0.0
        %1388 = vmatmul.mubr.f32.gmra.mrb[0].mxu0 %v1215
        %v1389 = vpop.f32.mrb[0].mxu0
        %v1390 = vadd.f32 %v1316, %v1389
        %v1391 = vpop.f32.mrb[0].mxu0
        %1392 = vdwg.mxu0
        %v1394 = vlaneseq
        %v1395 = vshrl.u32 %v1394, 7
        %v1396 = vsub.s32 0, %v1395
        %v1397 = vrot.slane %v1277, %v1396
        %1399 = vmatprep.subr.mxu0 0.0
        %1400 = vmatpush1.msra.mxu0 %v1261
        %1401 = vmatprep.subr.mxu0 0.0
        %1402 = vmatpush1.msra.mxu0 %v1262
        %1403 = vmatprep.subr.mxu0 0.0
        %1404 = vmatpush1.msra.mxu0 %v1263
        %1405 = vmatprep.subr.mxu0 0.0
        %1406 = vmatpush1.msra.mxu0 %v1264
        %1407 = vmatprep.subr.mxu0 0.0
        %1408 = vmatpush1.msra.mxu0 %v1265
        %1409 = vmatprep.subr.mxu0 0.0
        %1410 = vmatpush1.msra.mxu0 %v1266
        %1411 = vmatprep.subr.mxu0 0.0
        %1412 = vmatpush1.msra.mxu0 %v1267
        %1413 = vmatprep.subr.mxu0 0.0
        %1414 = vmatpush1.msra.mxu0 %v1268
        %1415 = vmatprep.subr.mxu0 0.0
        %1416 = vmatpush1.msra.mxu0 %v1269
        %1417 = vmatprep.subr.mxu0 0.0
        %1418 = vmatpush1.msra.mxu0 %v1270
        %1419 = vmatprep.subr.mxu0 0.0
        %1420 = vmatpush1.msra.mxu0 %v1271
        %1421 = vmatprep.subr.mxu0 0.0
        %1422 = vmatpush1.msra.mxu0 %v1272
        %1423 = vmatprep.subr.mxu0 0.0
        %1424 = vmatpush1.msra.mxu0 %v1273
        %1425 = vmatprep.subr.mxu0 0.0
        %1426 = vmatpush1.msra.mxu0 %v1274
        %1427 = vmatprep.subr.mxu0 0.0
        %1428 = vmatpush1.msra.mxu0 %v1275
        %1429 = vmatprep.subr.mxu0 0.0
        %1430 = vmatpush1.msra.mxu0 %v1276
        %1431 = vmatprep.subr.mxu0 0.0
        %1432 = vmatpush1.msra.mxu0 0.0
        %1433 = vmatprep.subr.mxu0 0.0
        %1434 = vmatpush1.msra.mxu0 0.0
        %1435 = vmatprep.subr.mxu0 0.0
        %1436 = vmatpush1.msra.mxu0 0.0
        %1437 = vmatprep.subr.mxu0 0.0
        %1438 = vmatpush1.msra.mxu0 0.0
        %1439 = vmatprep.subr.mxu0 0.0
        %1440 = vmatpush1.msra.mxu0 0.0
        %1441 = vmatprep.subr.mxu0 0.0
        %1442 = vmatpush1.msra.mxu0 0.0
        %1443 = vmatprep.subr.mxu0 0.0
        %1444 = vmatpush1.msra.mxu0 0.0
        %1445 = vmatprep.subr.mxu0 0.0
        %1446 = vmatpush1.msra.mxu0 0.0
        %1447 = vmatprep.subr.mxu0 0.0
        %1448 = vmatpush1.msra.mxu0 0.0
        %1449 = vmatprep.subr.mxu0 0.0
        %1450 = vmatpush1.msra.mxu0 0.0
        %1451 = vmatprep.subr.mxu0 0.0
        %1452 = vmatpush1.msra.mxu0 0.0
        %1453 = vmatprep.subr.mxu0 0.0
        %1454 = vmatpush1.msra.mxu0 0.0
        %1455 = vmatprep.subr.mxu0 0.0
        %1456 = vmatpush1.msra.mxu0 0.0
        %1457 = vmatprep.subr.mxu0 0.0
        %1458 = vmatpush1.msra.mxu0 0.0
        %1459 = vmatprep.subr.mxu0 0.0
        %1460 = vmatpush1.msra.mxu0 0.0
        %1461 = vmatprep.subr.mxu0 0.0
        %1462 = vmatpush1.msra.mxu0 0.0
        %1463 = vmatprep.mubr.f32.mxu0 0.0
        %1464 = vmatmul.mubr.f32.gmra.mrb[0].mxu0 %v1242
        %v1465 = vpop.f32.mrb[0].mxu0
        %v1466 = vadd.f32 %v1397, %v1465
        %v1467 = vpop.f32.mrb[0].mxu0
        %1468 = vmatprep.mubr.f32.mxu0 0.0
        %1469 = vmatmul.mubr.f32.gmra.mrb[0].mxu0 %v1243
        %v1470 = vpop.f32.mrb[0].mxu0
        %v1471 = vadd.f32 %v1397, %v1470
        %v1472 = vpop.f32.mrb[0].mxu0
        %1473 = vdwg.mxu0
        %v1475 = vlaneseq
        %v1476 = vshrl.u32 %v1475, 7
        %v1477 = vsub.s32 0, %v1476
        %v1478 = vrot.slane %v1294, %v1477
        %1480 = vmatprep.subr.mxu0 0.0
        %1481 = vmatpush1.msra.mxu0 %v1278
        %1482 = vmatprep.subr.mxu0 0.0
        %1483 = vmatpush1.msra.mxu0 %v1279
        %1484 = vmatprep.subr.mxu0 0.0
        %1485 = vmatpush1.msra.mxu0 %v1280
        %1486 = vmatprep.subr.mxu0 0.0
        %1487 = vmatpush1.msra.mxu0 %v1281
        %1488 = vmatprep.subr.mxu0 0.0
        %1489 = vmatpush1.msra.mxu0 %v1282
        %1490 = vmatprep.subr.mxu0 0.0
        %1491 = vmatpush1.msra.mxu0 %v1283
        %1492 = vmatprep.subr.mxu0 0.0
        %1493 = vmatpush1.msra.mxu0 %v1284
        %1494 = vmatprep.subr.mxu0 0.0
        %1495 = vmatpush1.msra.mxu0 %v1285
        %1496 = vmatprep.subr.mxu0 0.0
        %1497 = vmatpush1.msra.mxu0 %v1286
        %1498 = vmatprep.subr.mxu0 0.0
        %1499 = vmatpush1.msra.mxu0 %v1287
        %1500 = vmatprep.subr.mxu0 0.0
        %1501 = vmatpush1.msra.mxu0 %v1288
        %1502 = vmatprep.subr.mxu0 0.0
        %1503 = vmatpush1.msra.mxu0 %v1289
        %1504 = vmatprep.subr.mxu0 0.0
        %1505 = vmatpush1.msra.mxu0 %v1290
        %1506 = vmatprep.subr.mxu0 0.0
        %1507 = vmatpush1.msra.mxu0 %v1291
        %1508 = vmatprep.subr.mxu0 0.0
        %1509 = vmatpush1.msra.mxu0 %v1292
        %1510 = vmatprep.subr.mxu0 0.0
        %1511 = vmatpush1.msra.mxu0 %v1293
        %1512 = vmatprep.subr.mxu0 0.0
        %1513 = vmatpush1.msra.mxu0 0.0
        %1514 = vmatprep.subr.mxu0 0.0
        %1515 = vmatpush1.msra.mxu0 0.0
        %1516 = vmatprep.subr.mxu0 0.0
        %1517 = vmatpush1.msra.mxu0 0.0
        %1518 = vmatprep.subr.mxu0 0.0
        %1519 = vmatpush1.msra.mxu0 0.0
        %1520 = vmatprep.subr.mxu0 0.0
        %1521 = vmatpush1.msra.mxu0 0.0
        %1522 = vmatprep.subr.mxu0 0.0
        %1523 = vmatpush1.msra.mxu0 0.0
        %1524 = vmatprep.subr.mxu0 0.0
        %1525 = vmatpush1.msra.mxu0 0.0
        %1526 = vmatprep.subr.mxu0 0.0
        %1527 = vmatpush1.msra.mxu0 0.0
        %1528 = vmatprep.subr.mxu0 0.0
        %1529 = vmatpush1.msra.mxu0 0.0
        %1530 = vmatprep.subr.mxu0 0.0
        %1531 = vmatpush1.msra.mxu0 0.0
        %1532 = vmatprep.subr.mxu0 0.0
        %1533 = vmatpush1.msra.mxu0 0.0
        %1534 = vmatprep.subr.mxu0 0.0
        %1535 = vmatpush1.msra.mxu0 0.0
        %1536 = vmatprep.subr.mxu0 0.0
        %1537 = vmatpush1.msra.mxu0 0.0
        %1538 = vmatprep.subr.mxu0 0.0
        %1539 = vmatpush1.msra.mxu0 0.0
        %1540 = vmatprep.subr.mxu0 0.0
        %1541 = vmatpush1.msra.mxu0 0.0
        %1542 = vmatprep.subr.mxu0 0.0
        %1543 = vmatpush1.msra.mxu0 0.0
        %1544 = vmatprep.mubr.f32.mxu0 0.0
        %1545 = vmatmul.mubr.f32.gmra.mrb[0].mxu0 %v1242
        %v1546 = vpop.f32.mrb[0].mxu0
        %v1547 = vadd.f32 %v1478, %v1546
        %v1548 = vpop.f32.mrb[0].mxu0
        %1549 = vmatprep.mubr.f32.mxu0 0.0
        %1550 = vmatmul.mubr.f32.gmra.mrb[0].mxu0 %v1243
        %v1551 = vpop.f32.mrb[0].mxu0
        %v1552 = vadd.f32 %v1478, %v1551
        %v1553 = vpop.f32.mrb[0].mxu0
        %1554 = vdwg.mxu0
        %1557 = vrot.lane.b32.xlu0 %v1385, 96
        %v1558 = vpop.permute.xlu0 %1557
        %1559 = vrot.lane.b32.xlu0 %v1390, 96
        %v1560 = vpop.permute.xlu0 %1559
        %1561 = vrot.lane.b32.xlu0 %v1385, 64
        %v1562 = vpop.permute.xlu0 %1561
        %1563 = vrot.lane.b32.xlu0 %v1390, 64
        %v1564 = vpop.permute.xlu0 %1563
        %1565 = vrot.lane.b32.xlu0 %v1385, 32
        %v1566 = vpop.permute.xlu0 %1565
        %1567 = vrot.lane.b32.xlu0 %v1390, 32
        %v1568 = vpop.permute.xlu0 %1567
        %1571 = vrot.lane.b32.xlu0 %v1466, 96
        %v1572 = vpop.permute.xlu0 %1571
        %1573 = vrot.lane.b32.xlu0 %v1471, 96
        %v1574 = vpop.permute.xlu0 %1573
        %1575 = vrot.lane.b32.xlu0 %v1466, 64
        %v1576 = vpop.permute.xlu0 %1575
        %1577 = vrot.lane.b32.xlu0 %v1471, 64
        %v1578 = vpop.permute.xlu0 %1577
        %1579 = vrot.lane.b32.xlu0 %v1466, 32
        %v1580 = vpop.permute.xlu0 %1579
        %1581 = vrot.lane.b32.xlu0 %v1471, 32
        %v1582 = vpop.permute.xlu0 %1581
        %1585 = vrot.lane.b32.xlu0 %v1547, 96
        %v1586 = vpop.permute.xlu0 %1585
        %1587 = vrot.lane.b32.xlu0 %v1552, 96
        %v1588 = vpop.permute.xlu0 %1587
        %1591 = vrot.lane.b32.xlu0 %v1547, 64
        %v1592 = vpop.permute.xlu0 %1591
        %1593 = vrot.lane.b32.xlu0 %v1552, 64
        %v1594 = vpop.permute.xlu0 %1593
        %1597 = vrot.lane.b32.xlu0 %v1547, 32
        %v1598 = vpop.permute.xlu0 %1597
        %1599 = vrot.lane.b32.xlu0 %v1552, 32
        %v1600 = vpop.permute.xlu0 %1599
        %vm1603 = vcmask 261120
        %v1604 = vsel %vm1603, %v1385, 0
        %v1606 = vsel %vm1603, %v1390, 0
        %v1608 = vsel %vm1603, %v1466, 0
        %v1610 = vsel %vm1603, %v1471, 0
        %1612 = vmatprep.subr.mxu0 0.0
        %1613 = vmatpush1.xpose.msra.mxu0 %v1608
        %1614 = vmatprep.subr.mxu0 0.0
        %1615 = vmatpush1.xpose.msra.mxu0 %v1610
        %1616 = vmatprep.subr.mxu0 0.0
        %1617 = vmatpush1.xpose.msra.mxu0 0.0
        %1618 = vmatprep.subr.mxu0 0.0
        %1619 = vmatpush1.xpose.msra.mxu0 0.0
        %1620 = vmatprep.subr.mxu0 0.0
        %1621 = vmatpush1.xpose.msra.mxu0 0.0
        %1622 = vmatprep.subr.mxu0 0.0
        %1623 = vmatpush1.xpose.msra.mxu0 0.0
        %1624 = vmatprep.subr.mxu0 0.0
        %1625 = vmatpush1.xpose.msra.mxu0 0.0
        %1626 = vmatprep.subr.mxu0 0.0
        %1627 = vmatpush1.xpose.msra.mxu0 0.0
        %1628 = vmatprep.subr.mxu0 0.0
        %1629 = vmatpush1.xpose.msra.mxu0 0.0
        %1630 = vmatprep.subr.mxu0 0.0
        %1631 = vmatpush1.xpose.msra.mxu0 0.0
        %1632 = vmatprep.subr.mxu0 0.0
        %1633 = vmatpush1.xpose.msra.mxu0 0.0
        %1634 = vmatprep.subr.mxu0 0.0
        %1635 = vmatpush1.xpose.msra.mxu0 0.0
        %1636 = vmatprep.subr.mxu0 0.0
        %1637 = vmatpush1.xpose.msra.mxu0 0.0
        %1638 = vmatprep.subr.mxu0 0.0
        %1639 = vmatpush1.xpose.msra.mxu0 0.0
        %1640 = vmatprep.subr.mxu0 0.0
        %1641 = vmatpush1.xpose.msra.mxu0 0.0
        %1642 = vmatprep.subr.mxu0 0.0
        %1643 = vmatpush1.xpose.msra.mxu0 0.0
        %1644 = vmatprep.subr.mxu0 0.0
        %1645 = vmatpush1.xpose.msra.mxu0 0.0
        %1646 = vmatprep.subr.mxu0 0.0
        %1647 = vmatpush1.xpose.msra.mxu0 0.0
        %1648 = vmatprep.subr.mxu0 0.0
        %1649 = vmatpush1.xpose.msra.mxu0 0.0
        %1650 = vmatprep.subr.mxu0 0.0
        %1651 = vmatpush1.xpose.msra.mxu0 0.0
        %1652 = vmatprep.subr.mxu0 0.0
        %1653 = vmatpush1.xpose.msra.mxu0 0.0
        %1654 = vmatprep.subr.mxu0 0.0
        %1655 = vmatpush1.xpose.msra.mxu0 0.0
        %1656 = vmatprep.subr.mxu0 0.0
        %1657 = vmatpush1.xpose.msra.mxu0 0.0
        %1658 = vmatprep.subr.mxu0 0.0
        %1659 = vmatpush1.xpose.msra.mxu0 0.0
        %1660 = vmatprep.subr.mxu0 0.0
        %1661 = vmatpush1.xpose.msra.mxu0 0.0
        %1662 = vmatprep.subr.mxu0 0.0
        %1663 = vmatpush1.xpose.msra.mxu0 0.0
        %1664 = vmatprep.subr.mxu0 0.0
        %1665 = vmatpush1.xpose.msra.mxu0 0.0
        %1666 = vmatprep.subr.mxu0 0.0
        %1667 = vmatpush1.xpose.msra.mxu0 0.0
        %1668 = vmatprep.subr.mxu0 0.0
        %1669 = vmatpush1.xpose.msra.mxu0 0.0
        %1670 = vmatprep.subr.mxu0 0.0
        %1671 = vmatpush1.xpose.msra.mxu0 0.0
        %1672 = vmatprep.subr.mxu0 0.0
        %1673 = vmatpush1.xpose.msra.mxu0 0.0
        %1674 = vmatprep.subr.mxu0 0.0
        %1675 = vmatpush1.xpose.msra.mxu0 0.0
        %1676 = vmatprep.mubr.f32.mxu0 0.0
        %1677 = vmatmul.mubr.f32.gmra.mrb[0].mxu0 %v1604
        %v1678 = vpop.f32.mrb[0].mxu0
        %v1679 = vadd.f32 0.0, %v1678
        %v1680 = vpop.f32.mrb[0].mxu0
        %1681 = vmatprep.mubr.f32.mxu0 0.0
        %1682 = vmatmul.mubr.f32.gmra.mrb[0].mxu0 %v1606
        %v1683 = vpop.f32.mrb[0].mxu0
        %v1684 = vadd.f32 0.0, %v1683
        %v1685 = vpop.f32.mrb[0].mxu0
        %1686 = vdwg.mxu0
        %v1687 = vsel %vm1603, %v1558, 0
        %v1689 = vsel %vm1603, %v1560, 0
        %v1691 = vsel %vm1603, %v1572, 0
        %v1693 = vsel %vm1603, %v1574, 0
        %1695 = vmatprep.subr.mxu0 0.0
        %1696 = vmatpush1.xpose.msra.mxu0 %v1691
        %1697 = vmatprep.subr.mxu0 0.0
        %1698 = vmatpush1.xpose.msra.mxu0 %v1693
        %1699 = vmatprep.subr.mxu0 0.0
        %1700 = vmatpush1.xpose.msra.mxu0 0.0
        %1701 = vmatprep.subr.mxu0 0.0
        %1702 = vmatpush1.xpose.msra.mxu0 0.0
        %1703 = vmatprep.subr.mxu0 0.0
        %1704 = vmatpush1.xpose.msra.mxu0 0.0
        %1705 = vmatprep.subr.mxu0 0.0
        %1706 = vmatpush1.xpose.msra.mxu0 0.0
        %1707 = vmatprep.subr.mxu0 0.0
        %1708 = vmatpush1.xpose.msra.mxu0 0.0
        %1709 = vmatprep.subr.mxu0 0.0
        %1710 = vmatpush1.xpose.msra.mxu0 0.0
        %1711 = vmatprep.subr.mxu0 0.0
        %1712 = vmatpush1.xpose.msra.mxu0 0.0
        %1713 = vmatprep.subr.mxu0 0.0
        %1714 = vmatpush1.xpose.msra.mxu0 0.0
        %1715 = vmatprep.subr.mxu0 0.0
        %1716 = vmatpush1.xpose.msra.mxu0 0.0
        %1717 = vmatprep.subr.mxu0 0.0
        %1718 = vmatpush1.xpose.msra.mxu0 0.0
        %1719 = vmatprep.subr.mxu0 0.0
        %1720 = vmatpush1.xpose.msra.mxu0 0.0
        %1721 = vmatprep.subr.mxu0 0.0
        %1722 = vmatpush1.xpose.msra.mxu0 0.0
        %1723 = vmatprep.subr.mxu0 0.0
        %1724 = vmatpush1.xpose.msra.mxu0 0.0
        %1725 = vmatprep.subr.mxu0 0.0
        %1726 = vmatpush1.xpose.msra.mxu0 0.0
        %1727 = vmatprep.subr.mxu0 0.0
        %1728 = vmatpush1.xpose.msra.mxu0 0.0
        %1729 = vmatprep.subr.mxu0 0.0
        %1730 = vmatpush1.xpose.msra.mxu0 0.0
        %1731 = vmatprep.subr.mxu0 0.0
        %1732 = vmatpush1.xpose.msra.mxu0 0.0
        %1733 = vmatprep.subr.mxu0 0.0
        %1734 = vmatpush1.xpose.msra.mxu0 0.0
        %1735 = vmatprep.subr.mxu0 0.0
        %1736 = vmatpush1.xpose.msra.mxu0 0.0
        %1737 = vmatprep.subr.mxu0 0.0
        %1738 = vmatpush1.xpose.msra.mxu0 0.0
        %1739 = vmatprep.subr.mxu0 0.0
        %1740 = vmatpush1.xpose.msra.mxu0 0.0
        %1741 = vmatprep.subr.mxu0 0.0
        %1742 = vmatpush1.xpose.msra.mxu0 0.0
        %1743 = vmatprep.subr.mxu0 0.0
        %1744 = vmatpush1.xpose.msra.mxu0 0.0
        %1745 = vmatprep.subr.mxu0 0.0
        %1746 = vmatpush1.xpose.msra.mxu0 0.0
        %1747 = vmatprep.subr.mxu0 0.0
        %1748 = vmatpush1.xpose.msra.mxu0 0.0
        %1749 = vmatprep.subr.mxu0 0.0
        %1750 = vmatpush1.xpose.msra.mxu0 0.0
        %1751 = vmatprep.subr.mxu0 0.0
        %1752 = vmatpush1.xpose.msra.mxu0 0.0
        %1753 = vmatprep.subr.mxu0 0.0
        %1754 = vmatpush1.xpose.msra.mxu0 0.0
        %1755 = vmatprep.subr.mxu0 0.0
        %1756 = vmatpush1.xpose.msra.mxu0 0.0
        %1757 = vmatprep.subr.mxu0 0.0
        %1758 = vmatpush1.xpose.msra.mxu0 0.0
        %1759 = vmatprep.mubr.f32.mxu0 0.0
        %1760 = vmatmul.mubr.f32.gmra.mrb[0].mxu0 %v1687
        %v1761 = vpop.f32.mrb[0].mxu0
        %v1762 = vadd.f32 0.0, %v1761
        %v1763 = vpop.f32.mrb[0].mxu0
        %1764 = vmatprep.mubr.f32.mxu0 0.0
        %1765 = vmatmul.mubr.f32.gmra.mrb[0].mxu0 %v1689
        %v1766 = vpop.f32.mrb[0].mxu0
        %v1767 = vadd.f32 0.0, %v1766
        %v1768 = vpop.f32.mrb[0].mxu0
        %1769 = vdwg.mxu0
        %v1770 = vsel %vm1603, %v1562, 0
        %v1772 = vsel %vm1603, %v1564, 0
        %v1774 = vsel %vm1603, %v1576, 0
        %v1776 = vsel %vm1603, %v1578, 0
        %1778 = vmatprep.subr.mxu0 0.0
        %1779 = vmatpush1.xpose.msra.mxu0 %v1774
        %1780 = vmatprep.subr.mxu0 0.0
        %1781 = vmatpush1.xpose.msra.mxu0 %v1776
        %1782 = vmatprep.subr.mxu0 0.0
        %1783 = vmatpush1.xpose.msra.mxu0 0.0
        %1784 = vmatprep.subr.mxu0 0.0
        %1785 = vmatpush1.xpose.msra.mxu0 0.0
        %1786 = vmatprep.subr.mxu0 0.0
        %1787 = vmatpush1.xpose.msra.mxu0 0.0
        %1788 = vmatprep.subr.mxu0 0.0
        %1789 = vmatpush1.xpose.msra.mxu0 0.0
        %1790 = vmatprep.subr.mxu0 0.0
        %1791 = vmatpush1.xpose.msra.mxu0 0.0
        %1792 = vmatprep.subr.mxu0 0.0
        %1793 = vmatpush1.xpose.msra.mxu0 0.0
        %1794 = vmatprep.subr.mxu0 0.0
        %1795 = vmatpush1.xpose.msra.mxu0 0.0
        %1796 = vmatprep.subr.mxu0 0.0
        %1797 = vmatpush1.xpose.msra.mxu0 0.0
        %1798 = vmatprep.subr.mxu0 0.0
        %1799 = vmatpush1.xpose.msra.mxu0 0.0
        %1800 = vmatprep.subr.mxu0 0.0
        %1801 = vmatpush1.xpose.msra.mxu0 0.0
        %1802 = vmatprep.subr.mxu0 0.0
        %1803 = vmatpush1.xpose.msra.mxu0 0.0
        %1804 = vmatprep.subr.mxu0 0.0
        %1805 = vmatpush1.xpose.msra.mxu0 0.0
        %1806 = vmatprep.subr.mxu0 0.0
        %1807 = vmatpush1.xpose.msra.mxu0 0.0
        %1808 = vmatprep.subr.mxu0 0.0
        %1809 = vmatpush1.xpose.msra.mxu0 0.0
        %1810 = vmatprep.subr.mxu0 0.0
        %1811 = vmatpush1.xpose.msra.mxu0 0.0
        %1812 = vmatprep.subr.mxu0 0.0
        %1813 = vmatpush1.xpose.msra.mxu0 0.0
        %1814 = vmatprep.subr.mxu0 0.0
        %1815 = vmatpush1.xpose.msra.mxu0 0.0
        %1816 = vmatprep.subr.mxu0 0.0
        %1817 = vmatpush1.xpose.msra.mxu0 0.0
        %1818 = vmatprep.subr.mxu0 0.0
        %1819 = vmatpush1.xpose.msra.mxu0 0.0
        %1820 = vmatprep.subr.mxu0 0.0
        %1821 = vmatpush1.xpose.msra.mxu0 0.0
        %1822 = vmatprep.subr.mxu0 0.0
        %1823 = vmatpush1.xpose.msra.mxu0 0.0
        %1824 = vmatprep.subr.mxu0 0.0
        %1825 = vmatpush1.xpose.msra.mxu0 0.0
        %1826 = vmatprep.subr.mxu0 0.0
        %1827 = vmatpush1.xpose.msra.mxu0 0.0
        %1828 = vmatprep.subr.mxu0 0.0
        %1829 = vmatpush1.xpose.msra.mxu0 0.0
        %1830 = vmatprep.subr.mxu0 0.0
        %1831 = vmatpush1.xpose.msra.mxu0 0.0
        %1832 = vmatprep.subr.mxu0 0.0
        %1833 = vmatpush1.xpose.msra.mxu0 0.0
        %1834 = vmatprep.subr.mxu0 0.0
        %1835 = vmatpush1.xpose.msra.mxu0 0.0
        %1836 = vmatprep.subr.mxu0 0.0
        %1837 = vmatpush1.xpose.msra.mxu0 0.0
        %1838 = vmatprep.subr.mxu0 0.0
        %1839 = vmatpush1.xpose.msra.mxu0 0.0
        %1840 = vmatprep.subr.mxu0 0.0
        %1841 = vmatpush1.xpose.msra.mxu0 0.0
        %1842 = vmatprep.mubr.f32.mxu0 0.0
        %1843 = vmatmul.mubr.f32.gmra.mrb[0].mxu0 %v1770
        %v1844 = vpop.f32.mrb[0].mxu0
        %v1845 = vadd.f32 0.0, %v1844
        %v1846 = vpop.f32.mrb[0].mxu0
        %1847 = vmatprep.mubr.f32.mxu0 0.0
        %1848 = vmatmul.mubr.f32.gmra.mrb[0].mxu0 %v1772
        %v1849 = vpop.f32.mrb[0].mxu0
        %v1850 = vadd.f32 0.0, %v1849
        %v1851 = vpop.f32.mrb[0].mxu0
        %1852 = vdwg.mxu0
        %v1853 = vsel %vm1603, %v1566, 0
        %v1855 = vsel %vm1603, %v1568, 0
        %v1857 = vsel %vm1603, %v1580, 0
        %v1859 = vsel %vm1603, %v1582, 0
        %1861 = vmatprep.subr.mxu0 0.0
        %1862 = vmatpush1.xpose.msra.mxu0 %v1857
        %1863 = vmatprep.subr.mxu0 0.0
        %1864 = vmatpush1.xpose.msra.mxu0 %v1859
        %1865 = vmatprep.subr.mxu0 0.0
        %1866 = vmatpush1.xpose.msra.mxu0 0.0
        %1867 = vmatprep.subr.mxu0 0.0
        %1868 = vmatpush1.xpose.msra.mxu0 0.0
        %1869 = vmatprep.subr.mxu0 0.0
        %1870 = vmatpush1.xpose.msra.mxu0 0.0
        %1871 = vmatprep.subr.mxu0 0.0
        %1872 = vmatpush1.xpose.msra.mxu0 0.0
        %1873 = vmatprep.subr.mxu0 0.0
        %1874 = vmatpush1.xpose.msra.mxu0 0.0
        %1875 = vmatprep.subr.mxu0 0.0
        %1876 = vmatpush1.xpose.msra.mxu0 0.0
        %1877 = vmatprep.subr.mxu0 0.0
        %1878 = vmatpush1.xpose.msra.mxu0 0.0
        %1879 = vmatprep.subr.mxu0 0.0
        %1880 = vmatpush1.xpose.msra.mxu0 0.0
        %1881 = vmatprep.subr.mxu0 0.0
        %1882 = vmatpush1.xpose.msra.mxu0 0.0
        %1883 = vmatprep.subr.mxu0 0.0
        %1884 = vmatpush1.xpose.msra.mxu0 0.0
        %1885 = vmatprep.subr.mxu0 0.0
        %1886 = vmatpush1.xpose.msra.mxu0 0.0
        %1887 = vmatprep.subr.mxu0 0.0
        %1888 = vmatpush1.xpose.msra.mxu0 0.0
        %1889 = vmatprep.subr.mxu0 0.0
        %1890 = vmatpush1.xpose.msra.mxu0 0.0
        %1891 = vmatprep.subr.mxu0 0.0
        %1892 = vmatpush1.xpose.msra.mxu0 0.0
        %1893 = vmatprep.subr.mxu0 0.0
        %1894 = vmatpush1.xpose.msra.mxu0 0.0
        %1895 = vmatprep.subr.mxu0 0.0
        %1896 = vmatpush1.xpose.msra.mxu0 0.0
        %1897 = vmatprep.subr.mxu0 0.0
        %1898 = vmatpush1.xpose.msra.mxu0 0.0
        %1899 = vmatprep.subr.mxu0 0.0
        %1900 = vmatpush1.xpose.msra.mxu0 0.0
        %1901 = vmatprep.subr.mxu0 0.0
        %1902 = vmatpush1.xpose.msra.mxu0 0.0
        %1903 = vmatprep.subr.mxu0 0.0
        %1904 = vmatpush1.xpose.msra.mxu0 0.0
        %1905 = vmatprep.subr.mxu0 0.0
        %1906 = vmatpush1.xpose.msra.mxu0 0.0
        %1907 = vmatprep.subr.mxu0 0.0
        %1908 = vmatpush1.xpose.msra.mxu0 0.0
        %1909 = vmatprep.subr.mxu0 0.0
        %1910 = vmatpush1.xpose.msra.mxu0 0.0
        %1911 = vmatprep.subr.mxu0 0.0
        %1912 = vmatpush1.xpose.msra.mxu0 0.0
        %1913 = vmatprep.subr.mxu0 0.0
        %1914 = vmatpush1.xpose.msra.mxu0 0.0
        %1915 = vmatprep.subr.mxu0 0.0
        %1916 = vmatpush1.xpose.msra.mxu0 0.0
        %1917 = vmatprep.subr.mxu0 0.0
        %1918 = vmatpush1.xpose.msra.mxu0 0.0
        %1919 = vmatprep.subr.mxu0 0.0
        %1920 = vmatpush1.xpose.msra.mxu0 0.0
        %1921 = vmatprep.subr.mxu0 0.0
        %1922 = vmatpush1.xpose.msra.mxu0 0.0
        %1923 = vmatprep.subr.mxu0 0.0
        %1924 = vmatpush1.xpose.msra.mxu0 0.0
        %1925 = vmatprep.mubr.f32.mxu0 0.0
        %1926 = vmatmul.mubr.f32.gmra.mrb[0].mxu0 %v1853
        %v1927 = vpop.f32.mrb[0].mxu0
        %v1928 = vadd.f32 0.0, %v1927
        %v1929 = vpop.f32.mrb[0].mxu0
        %1930 = vmatprep.mubr.f32.mxu0 0.0
        %1931 = vmatmul.mubr.f32.gmra.mrb[0].mxu0 %v1855
        %v1932 = vpop.f32.mrb[0].mxu0
        %v1933 = vadd.f32 0.0, %v1932
        %v1934 = vpop.f32.mrb[0].mxu0
        %1935 = vdwg.mxu0
        %v1936 = vmul.f32 %v1679, 0.17677669
        %v1937 = vmul.f32 %v1684, 0.17677669
        %v1938 = vmul.f32 %v1762, 0.17677669
        %v1939 = vmul.f32 %v1767, 0.17677669
        %v1940 = vmul.f32 %v1845, 0.17677669
        %v1941 = vmul.f32 %v1850, 0.17677669
        %v1942 = vmul.f32 %v1928, 0.17677669
        %v1943 = vmul.f32 %v1933, 0.17677669
        %v1944 = vadd.f32 %v1936, %v1171
        %v1945 = vadd.f32 %v1937, %v1172
        %v1946 = vadd.f32 %v1938, %v1171
        %v1947 = vadd.f32 %v1939, %v1172
        %v1948 = vadd.f32 %v1940, %v1171
        %v1949 = vadd.f32 %v1941, %v1172
        %v1950 = vadd.f32 %v1942, %v1171
        %v1951 = vadd.f32 %v1943, %v1172
        %vm1952 = vcmask 130048
        %v1953 = vsel %vm1952, %v1944, -inf
        %1954 = vmax.xlane.f32.xlu0 %v1953
        %v1955 = vpop.xlane.xlu0 %1954
        %v1956 = vsel %vm1952, %v1945, -inf
        %1957 = vmax.xlane.f32.xlu0 %v1956
        %v1958 = vpop.xlane.xlu0 %1957
        %v1959 = vsel %vm1952, %v1946, -inf
        %1960 = vmax.xlane.f32.xlu0 %v1959
        %v1961 = vpop.xlane.xlu0 %1960
        %v1962 = vsel %vm1952, %v1947, -inf
        %1963 = vmax.xlane.f32.xlu0 %v1962
        %v1964 = vpop.xlane.xlu0 %1963
        %v1965 = vsel %vm1952, %v1948, -inf
        %1966 = vmax.xlane.f32.xlu0 %v1965
        %v1967 = vpop.xlane.xlu0 %1966
        %v1968 = vsel %vm1952, %v1949, -inf
        %1969 = vmax.xlane.f32.xlu0 %v1968
        %v1970 = vpop.xlane.xlu0 %1969
        %v1971 = vsel %vm1952, %v1950, -inf
        %1972 = vmax.xlane.f32.xlu0 %v1971
        %v1973 = vpop.xlane.xlu0 %1972
        %v1974 = vsel %vm1952, %v1951, -inf
        %1975 = vmax.xlane.f32.xlu0 %v1974
        %v1976 = vpop.xlane.xlu0 %1975
        %v1977 = vsub.f32 %v1944, %v1955
        %v1978 = vsub.f32 %v1945, %v1958
        %v1979 = vsub.f32 %v1946, %v1961
        %v1980 = vsub.f32 %v1947, %v1964
        %v1981 = vsub.f32 %v1948, %v1967
        %v1982 = vsub.f32 %v1949, %v1970
        %v1983 = vsub.f32 %v1950, %v1973
        %v1984 = vsub.f32 %v1951, %v1976
        %v1985 = vmul.f32 %v1977, 1.442695
        %v1986 = vpow.pop %v1985
        %v1987 = vmul.f32 %v1978, 1.442695
        %v1988 = vpow.pop %v1987
        %v1989 = vmul.f32 %v1979, 1.442695
        %v1990 = vpow.pop %v1989
        %v1991 = vmul.f32 %v1980, 1.442695
        %v1992 = vpow.pop %v1991
        %v1993 = vmul.f32 %v1981, 1.442695
        %v1994 = vpow.pop %v1993
        %v1995 = vmul.f32 %v1982, 1.442695
        %v1996 = vpow.pop %v1995
        %v1997 = vmul.f32 %v1983, 1.442695
        %v1998 = vpow.pop %v1997
        %v1999 = vmul.f32 %v1984, 1.442695
        %v2000 = vpow.pop %v1999
        %v2001 = vsel %vm1952, %v1986, 0.0
        %2002 = vadd.xlane.f32.xlu0 %v2001
        %v2003 = vpop.xlane.xlu0 %2002
        %v2004 = vsel %vm1952, %v1988, 0.0
        %2005 = vadd.xlane.f32.xlu0 %v2004
        %v2006 = vpop.xlane.xlu0 %2005
        %v2007 = vsel %vm1952, %v1990, 0.0
        %2008 = vadd.xlane.f32.xlu0 %v2007
        %v2009 = vpop.xlane.xlu0 %2008
        %v2010 = vsel %vm1952, %v1992, 0.0
        %2011 = vadd.xlane.f32.xlu0 %v2010
        %v2012 = vpop.xlane.xlu0 %2011
        %v2013 = vsel %vm1952, %v1994, 0.0
        %2014 = vadd.xlane.f32.xlu0 %v2013
        %v2015 = vpop.xlane.xlu0 %2014
        %v2016 = vsel %vm1952, %v1996, 0.0
        %2017 = vadd.xlane.f32.xlu0 %v2016
        %v2018 = vpop.xlane.xlu0 %2017
        %v2019 = vsel %vm1952, %v1998, 0.0
        %2020 = vadd.xlane.f32.xlu0 %v2019
        %v2021 = vpop.xlane.xlu0 %2020
        %v2022 = vsel %vm1952, %v2000, 0.0
        %2023 = vadd.xlane.f32.xlu0 %v2022
        %v2024 = vpop.xlane.xlu0 %2023
        %v2025 = vrcp.pop %v2003
        %v2026 = vrcp.pop %v2006
        %v2027 = vrcp.pop %v2009
        %v2028 = vrcp.pop %v2012
        %v2029 = vrcp.pop %v2015
        %v2030 = vrcp.pop %v2018
        %v2031 = vrcp.pop %v2021
        %v2032 = vrcp.pop %v2024
        %v2033 = vmul.f32 %v1986, %v2025
        %v2034 = vmul.f32 %v1988, %v2026
        %v2035 = vmul.f32 %v1990, %v2027
        %v2036 = vmul.f32 %v1992, %v2028
        %v2037 = vmul.f32 %v1994, %v2029
        %v2038 = vmul.f32 %v1996, %v2030
        %v2039 = vmul.f32 %v1998, %v2031
        %v2040 = vmul.f32 %v2000, %v2032
        %v2042 = vsel %vm1952, %v2033, 0
        %v2045 = vsel %vm1952, %v2034, 0
        %2047 = vmatprep.subr.mxu0 0.0
        %2048 = vmatpush1.msra.mxu0 %v1547
        %2049 = vmatprep.subr.mxu0 0.0
        %2050 = vmatpush1.msra.mxu0 %v1552
        %2051 = vmatprep.subr.mxu0 0.0
        %2052 = vmatpush1.msra.mxu0 0.0
        %2053 = vmatprep.subr.mxu0 0.0
        %2054 = vmatpush1.msra.mxu0 0.0
        %2055 = vmatprep.subr.mxu0 0.0
        %2056 = vmatpush1.msra.mxu0 0.0
        %2057 = vmatprep.subr.mxu0 0.0
        %2058 = vmatpush1.msra.mxu0 0.0
        %2059 = vmatprep.subr.mxu0 0.0
        %2060 = vmatpush1.msra.mxu0 0.0
        %2061 = vmatprep.subr.mxu0 0.0
        %2062 = vmatpush1.msra.mxu0 0.0
        %2063 = vmatprep.subr.mxu0 0.0
        %2064 = vmatpush1.msra.mxu0 0.0
        %2065 = vmatprep.subr.mxu0 0.0
        %2066 = vmatpush1.msra.mxu0 0.0
        %2067 = vmatprep.subr.mxu0 0.0
        %2068 = vmatpush1.msra.mxu0 0.0
        %2069 = vmatprep.subr.mxu0 0.0
        %2070 = vmatpush1.msra.mxu0 0.0
        %2071 = vmatprep.subr.mxu0 0.0
        %2072 = vmatpush1.msra.mxu0 0.0
        %2073 = vmatprep.subr.mxu0 0.0
        %2074 = vmatpush1.msra.mxu0 0.0
        %2075 = vmatprep.subr.mxu0 0.0
        %2076 = vmatpush1.msra.mxu0 0.0
        %2077 = vmatprep.subr.mxu0 0.0
        %2078 = vmatpush1.msra.mxu0 0.0
        %2079 = vmatprep.subr.mxu0 0.0
        %2080 = vmatpush1.msra.mxu0 0.0
        %2081 = vmatprep.subr.mxu0 0.0
        %2082 = vmatpush1.msra.mxu0 0.0
        %2083 = vmatprep.subr.mxu0 0.0
        %2084 = vmatpush1.msra.mxu0 0.0
        %2085 = vmatprep.subr.mxu0 0.0
        %2086 = vmatpush1.msra.mxu0 0.0
        %2087 = vmatprep.subr.mxu0 0.0
        %2088 = vmatpush1.msra.mxu0 0.0
        %2089 = vmatprep.subr.mxu0 0.0
        %2090 = vmatpush1.msra.mxu0 0.0
        %2091 = vmatprep.subr.mxu0 0.0
        %2092 = vmatpush1.msra.mxu0 0.0
        %2093 = vmatprep.subr.mxu0 0.0
        %2094 = vmatpush1.msra.mxu0 0.0
        %2095 = vmatprep.subr.mxu0 0.0
        %2096 = vmatpush1.msra.mxu0 0.0
        %2097 = vmatprep.subr.mxu0 0.0
        %2098 = vmatpush1.msra.mxu0 0.0
        %2099 = vmatprep.subr.mxu0 0.0
        %2100 = vmatpush1.msra.mxu0 0.0
        %2101 = vmatprep.subr.mxu0 0.0
        %2102 = vmatpush1.msra.mxu0 0.0
        %2103 = vmatprep.subr.mxu0 0.0
        %2104 = vmatpush1.msra.mxu0 0.0
        %2105 = vmatprep.subr.mxu0 0.0
        %2106 = vmatpush1.msra.mxu0 0.0
        %2107 = vmatprep.subr.mxu0 0.0
        %2108 = vmatpush1.msra.mxu0 0.0
        %2109 = vmatprep.subr.mxu0 0.0
        %2110 = vmatpush1.msra.mxu0 0.0
        %2111 = vmatprep.mubr.f32.mxu0 0.0
        %2112 = vmatmul.mubr.f32.gmra.mrb[0].mxu0 %v2042
        %v2113 = vpop.f32.mrb[0].mxu0
        %v2114 = vadd.f32 0.0, %v2113
        %v2115 = vpop.f32.mrb[0].mxu0
        %2116 = vmatprep.mubr.f32.mxu0 0.0
        %2117 = vmatmul.mubr.f32.gmra.mrb[0].mxu0 %v2045
        %v2118 = vpop.f32.mrb[0].mxu0
        %v2119 = vadd.f32 0.0, %v2118
        %v2120 = vpop.f32.mrb[0].mxu0
        %2121 = vdwg.mxu0
        %v2123 = vsel %vm1952, %v2035, 0
        %v2126 = vsel %vm1952, %v2036, 0
        %2128 = vmatprep.subr.mxu0 0.0
        %2129 = vmatpush1.msra.mxu0 %v1586
        %2130 = vmatprep.subr.mxu0 0.0
        %2131 = vmatpush1.msra.mxu0 %v1588
        %2132 = vmatprep.subr.mxu0 0.0
        %2133 = vmatpush1.msra.mxu0 0.0
        %2134 = vmatprep.subr.mxu0 0.0
        %2135 = vmatpush1.msra.mxu0 0.0
        %2136 = vmatprep.subr.mxu0 0.0
        %2137 = vmatpush1.msra.mxu0 0.0
        %2138 = vmatprep.subr.mxu0 0.0
        %2139 = vmatpush1.msra.mxu0 0.0
        %2140 = vmatprep.subr.mxu0 0.0
        %2141 = vmatpush1.msra.mxu0 0.0
        %2142 = vmatprep.subr.mxu0 0.0
        %2143 = vmatpush1.msra.mxu0 0.0
        %2144 = vmatprep.subr.mxu0 0.0
        %2145 = vmatpush1.msra.mxu0 0.0
        %2146 = vmatprep.subr.mxu0 0.0
        %2147 = vmatpush1.msra.mxu0 0.0
        %2148 = vmatprep.subr.mxu0 0.0
        %2149 = vmatpush1.msra.mxu0 0.0
        %2150 = vmatprep.subr.mxu0 0.0
        %2151 = vmatpush1.msra.mxu0 0.0
        %2152 = vmatprep.subr.mxu0 0.0
        %2153 = vmatpush1.msra.mxu0 0.0
        %2154 = vmatprep.subr.mxu0 0.0
        %2155 = vmatpush1.msra.mxu0 0.0
        %2156 = vmatprep.subr.mxu0 0.0
        %2157 = vmatpush1.msra.mxu0 0.0
        %2158 = vmatprep.subr.mxu0 0.0
        %2159 = vmatpush1.msra.mxu0 0.0
        %2160 = vmatprep.subr.mxu0 0.0
        %2161 = vmatpush1.msra.mxu0 0.0
        %2162 = vmatprep.subr.mxu0 0.0
        %2163 = vmatpush1.msra.mxu0 0.0
        %2164 = vmatprep.subr.mxu0 0.0
        %2165 = vmatpush1.msra.mxu0 0.0
        %2166 = vmatprep.subr.mxu0 0.0
        %2167 = vmatpush1.msra.mxu0 0.0
        %2168 = vmatprep.subr.mxu0 0.0
        %2169 = vmatpush1.msra.mxu0 0.0
        %2170 = vmatprep.subr.mxu0 0.0
        %2171 = vmatpush1.msra.mxu0 0.0
        %2172 = vmatprep.subr.mxu0 0.0
        %2173 = vmatpush1.msra.mxu0 0.0
        %2174 = vmatprep.subr.mxu0 0.0
        %2175 = vmatpush1.msra.mxu0 0.0
        %2176 = vmatprep.subr.mxu0 0.0
        %2177 = vmatpush1.msra.mxu0 0.0
        %2178 = vmatprep.subr.mxu0 0.0
        %2179 = vmatpush1.msra.mxu0 0.0
        %2180 = vmatprep.subr.mxu0 0.0
        %2181 = vmatpush1.msra.mxu0 0.0
        %2182 = vmatprep.subr.mxu0 0.0
        %2183 = vmatpush1.msra.mxu0 0.0
        %2184 = vmatprep.subr.mxu0 0.0
        %2185 = vmatpush1.msra.mxu0 0.0
        %2186 = vmatprep.subr.mxu0 0.0
        %2187 = vmatpush1.msra.mxu0 0.0
        %2188 = vmatprep.subr.mxu0 0.0
        %2189 = vmatpush1.msra.mxu0 0.0
        %2190 = vmatprep.subr.mxu0 0.0
        %2191 = vmatpush1.msra.mxu0 0.0
        %2192 = vmatprep.mubr.f32.mxu0 0.0
        %2193 = vmatmul.mubr.f32.gmra.mrb[0].mxu0 %v2123
        %v2194 = vpop.f32.mrb[0].mxu0
        %v2195 = vadd.f32 0.0, %v2194
        %v2196 = vpop.f32.mrb[0].mxu0
        %2197 = vmatprep.mubr.f32.mxu0 0.0
        %2198 = vmatmul.mubr.f32.gmra.mrb[0].mxu0 %v2126
        %v2199 = vpop.f32.mrb[0].mxu0
        %v2200 = vadd.f32 0.0, %v2199
        %v2201 = vpop.f32.mrb[0].mxu0
        %2202 = vdwg.mxu0
        %v2204 = vsel %vm1952, %v2037, 0
        %v2207 = vsel %vm1952, %v2038, 0
        %2209 = vmatprep.subr.mxu0 0.0
        %2210 = vmatpush1.msra.mxu0 %v1592
        %2211 = vmatprep.subr.mxu0 0.0
        %2212 = vmatpush1.msra.mxu0 %v1594
        %2213 = vmatprep.subr.mxu0 0.0
        %2214 = vmatpush1.msra.mxu0 0.0
        %2215 = vmatprep.subr.mxu0 0.0
        %2216 = vmatpush1.msra.mxu0 0.0
        %2217 = vmatprep.subr.mxu0 0.0
        %2218 = vmatpush1.msra.mxu0 0.0
        %2219 = vmatprep.subr.mxu0 0.0
        %2220 = vmatpush1.msra.mxu0 0.0
        %2221 = vmatprep.subr.mxu0 0.0
        %2222 = vmatpush1.msra.mxu0 0.0
        %2223 = vmatprep.subr.mxu0 0.0
        %2224 = vmatpush1.msra.mxu0 0.0
        %2225 = vmatprep.subr.mxu0 0.0
        %2226 = vmatpush1.msra.mxu0 0.0
        %2227 = vmatprep.subr.mxu0 0.0
        %2228 = vmatpush1.msra.mxu0 0.0
        %2229 = vmatprep.subr.mxu0 0.0
        %2230 = vmatpush1.msra.mxu0 0.0
        %2231 = vmatprep.subr.mxu0 0.0
        %2232 = vmatpush1.msra.mxu0 0.0
        %2233 = vmatprep.subr.mxu0 0.0
        %2234 = vmatpush1.msra.mxu0 0.0
        %2235 = vmatprep.subr.mxu0 0.0
        %2236 = vmatpush1.msra.mxu0 0.0
        %2237 = vmatprep.subr.mxu0 0.0
        %2238 = vmatpush1.msra.mxu0 0.0
        %2239 = vmatprep.subr.mxu0 0.0
        %2240 = vmatpush1.msra.mxu0 0.0
        %2241 = vmatprep.subr.mxu0 0.0
        %2242 = vmatpush1.msra.mxu0 0.0
        %2243 = vmatprep.subr.mxu0 0.0
        %2244 = vmatpush1.msra.mxu0 0.0
        %2245 = vmatprep.subr.mxu0 0.0
        %2246 = vmatpush1.msra.mxu0 0.0
        %2247 = vmatprep.subr.mxu0 0.0
        %2248 = vmatpush1.msra.mxu0 0.0
        %2249 = vmatprep.subr.mxu0 0.0
        %2250 = vmatpush1.msra.mxu0 0.0
        %2251 = vmatprep.subr.mxu0 0.0
        %2252 = vmatpush1.msra.mxu0 0.0
        %2253 = vmatprep.subr.mxu0 0.0
        %2254 = vmatpush1.msra.mxu0 0.0
        %2255 = vmatprep.subr.mxu0 0.0
        %2256 = vmatpush1.msra.mxu0 0.0
        %2257 = vmatprep.subr.mxu0 0.0
        %2258 = vmatpush1.msra.mxu0 0.0
        %2259 = vmatprep.subr.mxu0 0.0
        %2260 = vmatpush1.msra.mxu0 0.0
        %2261 = vmatprep.subr.mxu0 0.0
        %2262 = vmatpush1.msra.mxu0 0.0
        %2263 = vmatprep.subr.mxu0 0.0
        %2264 = vmatpush1.msra.mxu0 0.0
        %2265 = vmatprep.subr.mxu0 0.0
        %2266 = vmatpush1.msra.mxu0 0.0
        %2267 = vmatprep.subr.mxu0 0.0
        %2268 = vmatpush1.msra.mxu0 0.0
        %2269 = vmatprep.subr.mxu0 0.0
        %2270 = vmatpush1.msra.mxu0 0.0
        %2271 = vmatprep.subr.mxu0 0.0
        %2272 = vmatpush1.msra.mxu0 0.0
        %2273 = vmatprep.mubr.f32.mxu0 0.0
        %2274 = vmatmul.mubr.f32.gmra.mrb[0].mxu0 %v2204
        %v2275 = vpop.f32.mrb[0].mxu0
        %v2276 = vadd.f32 0.0, %v2275
        %v2277 = vpop.f32.mrb[0].mxu0
        %2278 = vmatprep.mubr.f32.mxu0 0.0
        %2279 = vmatmul.mubr.f32.gmra.mrb[0].mxu0 %v2207
        %v2280 = vpop.f32.mrb[0].mxu0
        %v2281 = vadd.f32 0.0, %v2280
        %v2282 = vpop.f32.mrb[0].mxu0
        %2283 = vdwg.mxu0
        %v2285 = vsel %vm1952, %v2039, 0
        %v2288 = vsel %vm1952, %v2040, 0
        %2290 = vmatprep.subr.mxu0 0.0
        %2291 = vmatpush1.msra.mxu0 %v1598
        %2292 = vmatprep.subr.mxu0 0.0
        %2293 = vmatpush1.msra.mxu0 %v1600
        %2294 = vmatprep.subr.mxu0 0.0
        %2295 = vmatpush1.msra.mxu0 0.0
        %2296 = vmatprep.subr.mxu0 0.0
        %2297 = vmatpush1.msra.mxu0 0.0
        %2298 = vmatprep.subr.mxu0 0.0
        %2299 = vmatpush1.msra.mxu0 0.0
        %2300 = vmatprep.subr.mxu0 0.0
        %2301 = vmatpush1.msra.mxu0 0.0
        %2302 = vmatprep.subr.mxu0 0.0
        %2303 = vmatpush1.msra.mxu0 0.0
        %2304 = vmatprep.subr.mxu0 0.0
        %2305 = vmatpush1.msra.mxu0 0.0
        %2306 = vmatprep.subr.mxu0 0.0
        %2307 = vmatpush1.msra.mxu0 0.0
        %2308 = vmatprep.subr.mxu0 0.0
        %2309 = vmatpush1.msra.mxu0 0.0
        %2310 = vmatprep.subr.mxu0 0.0
        %2311 = vmatpush1.msra.mxu0 0.0
        %2312 = vmatprep.subr.mxu0 0.0
        %2313 = vmatpush1.msra.mxu0 0.0
        %2314 = vmatprep.subr.mxu0 0.0
        %2315 = vmatpush1.msra.mxu0 0.0
        %2316 = vmatprep.subr.mxu0 0.0
        %2317 = vmatpush1.msra.mxu0 0.0
        %2318 = vmatprep.subr.mxu0 0.0
        %2319 = vmatpush1.msra.mxu0 0.0
        %2320 = vmatprep.subr.mxu0 0.0
        %2321 = vmatpush1.msra.mxu0 0.0
        %2322 = vmatprep.subr.mxu0 0.0
        %2323 = vmatpush1.msra.mxu0 0.0
        %2324 = vmatprep.subr.mxu0 0.0
        %2325 = vmatpush1.msra.mxu0 0.0
        %2326 = vmatprep.subr.mxu0 0.0
        %2327 = vmatpush1.msra.mxu0 0.0
        %2328 = vmatprep.subr.mxu0 0.0
        %2329 = vmatpush1.msra.mxu0 0.0
        %2330 = vmatprep.subr.mxu0 0.0
        %2331 = vmatpush1.msra.mxu0 0.0
        %2332 = vmatprep.subr.mxu0 0.0
        %2333 = vmatpush1.msra.mxu0 0.0
        %2334 = vmatprep.subr.mxu0 0.0
        %2335 = vmatpush1.msra.mxu0 0.0
        %2336 = vmatprep.subr.mxu0 0.0
        %2337 = vmatpush1.msra.mxu0 0.0
        %2338 = vmatprep.subr.mxu0 0.0
        %2339 = vmatpush1.msra.mxu0 0.0
        %2340 = vmatprep.subr.mxu0 0.0
        %2341 = vmatpush1.msra.mxu0 0.0
        %2342 = vmatprep.subr.mxu0 0.0
        %2343 = vmatpush1.msra.mxu0 0.0
        %2344 = vmatprep.subr.mxu0 0.0
        %2345 = vmatpush1.msra.mxu0 0.0
        %2346 = vmatprep.subr.mxu0 0.0
        %2347 = vmatpush1.msra.mxu0 0.0
        %2348 = vmatprep.subr.mxu0 0.0
        %2349 = vmatpush1.msra.mxu0 0.0
        %2350 = vmatprep.subr.mxu0 0.0
        %2351 = vmatpush1.msra.mxu0 0.0
        %2352 = vmatprep.subr.mxu0 0.0
        %2353 = vmatpush1.msra.mxu0 0.0
        %2354 = vmatprep.mubr.f32.mxu0 0.0
        %2355 = vmatmul.mubr.f32.gmra.mrb[0].mxu0 %v2285
        %v2356 = vpop.f32.mrb[0].mxu0
        %v2357 = vadd.f32 0.0, %v2356
        %v2358 = vpop.f32.mrb[0].mxu0
        %2359 = vmatprep.mubr.f32.mxu0 0.0
        %2360 = vmatmul.mubr.f32.gmra.mrb[0].mxu0 %v2288
        %v2361 = vpop.f32.mrb[0].mxu0
        %v2362 = vadd.f32 0.0, %v2361
        %v2363 = vpop.f32.mrb[0].mxu0
        %2364 = vdwg.mxu0
        %2365 = vst.msk [vmem:[#allocation2] sm:$0xff] %vm1603, %v2114
        %2366 = vst.msk [vmem:[#allocation2 + $0x8] sm:$0xff] %vm1603, %v2119
        %2369 = vrot.lane.b32.xlu0 %v2195, 32
        %v2370 = vpop.permute.xlu0 %2369
        %2371 = vrot.lane.b32.xlu0 %v2200, 32
        %v2372 = vpop.permute.xlu0 %2371
        %vm2375 = vcmask 523520
        %2376 = vst.msk [vmem:[#allocation2] sm:$0xff] %vm2375, %v2370
        %2377 = vst.msk [vmem:[#allocation2 + $0x8] sm:$0xff] %vm2375, %v2372
        %2380 = vrot.lane.b32.xlu0 %v2276, 64
        %v2381 = vpop.permute.xlu0 %2380
        %2382 = vrot.lane.b32.xlu0 %v2281, 64
        %v2383 = vpop.permute.xlu0 %2382
        %vm2386 = vcmask 785920
        %2387 = vst.msk [vmem:[#allocation2] sm:$0xff] %vm2386, %v2381
        %2388 = vst.msk [vmem:[#allocation2 + $0x8] sm:$0xff] %vm2386, %v2383
        %2391 = vrot.lane.b32.xlu0 %v2357, 96
        %v2392 = vpop.permute.xlu0 %2391
        %2393 = vrot.lane.b32.xlu0 %v2362, 96
        %v2394 = vpop.permute.xlu0 %2393
        %vm2397 = vcmask 1048320
        %2398 = vst.msk [vmem:[#allocation2] sm:$0xff] %vm2397, %v2392
        %2399 = vst.msk [vmem:[#allocation2 + $0x8] sm:$0xff] %vm2397, %v2394
        %v2400 = vld [vmem:[#allocation2] sm:$0xff]
        %v2401 = vld [vmem:[#allocation2 + $0x8] sm:$0xff]
        %v2403 = vlaneseq
        %v2404 = vshrl.u32 %v2403, 7
        %v2405 = vsub.s32 0, %v2404
        %v2406 = vrot.slane %v1311, %v2405
        %2408 = vmatprep.subr.mxu0 0.0
        %2409 = vmatpush1.msra.mxu0 %v1295
        %2410 = vmatprep.subr.mxu0 0.0
        %2411 = vmatpush1.msra.mxu0 %v1296
        %2412 = vmatprep.subr.mxu0 0.0
        %2413 = vmatpush1.msra.mxu0 %v1297
        %2414 = vmatprep.subr.mxu0 0.0
        %2415 = vmatpush1.msra.mxu0 %v1298
        %2416 = vmatprep.subr.mxu0 0.0
        %2417 = vmatpush1.msra.mxu0 %v1299
        %2418 = vmatprep.subr.mxu0 0.0
        %2419 = vmatpush1.msra.mxu0 %v1300
        %2420 = vmatprep.subr.mxu0 0.0
        %2421 = vmatpush1.msra.mxu0 %v1301
        %2422 = vmatprep.subr.mxu0 0.0
        %2423 = vmatpush1.msra.mxu0 %v1302
        %2424 = vmatprep.subr.mxu0 0.0
        %2425 = vmatpush1.msra.mxu0 %v1303
        %2426 = vmatprep.subr.mxu0 0.0
        %2427 = vmatpush1.msra.mxu0 %v1304
        %2428 = vmatprep.subr.mxu0 0.0
        %2429 = vmatpush1.msra.mxu0 %v1305
        %2430 = vmatprep.subr.mxu0 0.0
        %2431 = vmatpush1.msra.mxu0 %v1306
        %2432 = vmatprep.subr.mxu0 0.0
        %2433 = vmatpush1.msra.mxu0 %v1307
        %2434 = vmatprep.subr.mxu0 0.0
        %2435 = vmatpush1.msra.mxu0 %v1308
        %2436 = vmatprep.subr.mxu0 0.0
        %2437 = vmatpush1.msra.mxu0 %v1309
        %2438 = vmatprep.subr.mxu0 0.0
        %2439 = vmatpush1.msra.mxu0 %v1310
        %2440 = vmatprep.subr.mxu0 0.0
        %2441 = vmatpush1.msra.mxu0 0.0
        %2442 = vmatprep.subr.mxu0 0.0
        %2443 = vmatpush1.msra.mxu0 0.0
        %2444 = vmatprep.subr.mxu0 0.0
        %2445 = vmatpush1.msra.mxu0 0.0
        %2446 = vmatprep.subr.mxu0 0.0
        %2447 = vmatpush1.msra.mxu0 0.0
        %2448 = vmatprep.subr.mxu0 0.0
        %2449 = vmatpush1.msra.mxu0 0.0
        %2450 = vmatprep.subr.mxu0 0.0
        %2451 = vmatpush1.msra.mxu0 0.0
        %2452 = vmatprep.subr.mxu0 0.0
        %2453 = vmatpush1.msra.mxu0 0.0
        %2454 = vmatprep.subr.mxu0 0.0
        %2455 = vmatpush1.msra.mxu0 0.0
        %2456 = vmatprep.subr.mxu0 0.0
        %2457 = vmatpush1.msra.mxu0 0.0
        %2458 = vmatprep.subr.mxu0 0.0
        %2459 = vmatpush1.msra.mxu0 0.0
        %2460 = vmatprep.subr.mxu0 0.0
        %2461 = vmatpush1.msra.mxu0 0.0
        %2462 = vmatprep.subr.mxu0 0.0
        %2463 = vmatpush1.msra.mxu0 0.0
        %2464 = vmatprep.subr.mxu0 0.0
        %2465 = vmatpush1.msra.mxu0 0.0
        %2466 = vmatprep.subr.mxu0 0.0
        %2467 = vmatpush1.msra.mxu0 0.0
        %2468 = vmatprep.subr.mxu0 0.0
        %2469 = vmatpush1.msra.mxu0 0.0
        %2470 = vmatprep.subr.mxu0 0.0
        %2471 = vmatpush1.msra.mxu0 0.0
        %2472 = vmatprep.mubr.f32.mxu0 0.0
        %2473 = vmatmul.mubr.f32.gmra.mrb[0].mxu0 %v2400
        %v2474 = vpop.f32.mrb[0].mxu0
        %v2475 = vadd.f32 %v2406, %v2474
        %v2476 = vpop.f32.mrb[0].mxu0
        %2477 = vmatprep.mubr.f32.mxu0 0.0
        %2478 = vmatmul.mubr.f32.gmra.mrb[0].mxu0 %v2401
        %v2479 = vpop.f32.mrb[0].mxu0
        %v2480 = vadd.f32 %v2406, %v2479
        %v2481 = vpop.f32.mrb[0].mxu0
        %2482 = vdwg.mxu0
        %v2483 = vadd.f32 %v1214, %v2475
        %v2484 = vadd.f32 %v1215, %v2480
        %v2485 = vld [vmem:[%s11] sm:$0x1]
        %v2486 = vld [vmem:[%s13] sm:$0x1]
        %2487 = vadd.xlane.f32.xlu0 %v2483
        %v2488 = vpop.xlane.xlu0 %2487
        %2489 = vadd.xlane.f32.xlu0 %v2484
        %v2490 = vpop.xlane.xlu0 %2489
        %v2491 = vmul.f32 %v2488, %v1181
        %v2492 = vmul.f32 %v2490, %v1181
        %v2493 = vsub.f32 %v2483, %v2491
        %v2494 = vsub.f32 %v2484, %v2492
        %v2495 = vmul.f32 %v2493, %v2493
        %v2496 = vmul.f32 %v2494, %v2494
        %2497 = vadd.xlane.f32.xlu0 %v2495
        %v2498 = vpop.xlane.xlu0 %2497
        %2499 = vadd.xlane.f32.xlu0 %v2496
        %v2500 = vpop.xlane.xlu0 %2499
        %v2501 = vmul.f32 %v2498, %v1181
        %v2502 = vmul.f32 %v2500, %v1181
        %v2503 = vadd.f32 %v2501, 1e-05
        %v2504 = vadd.f32 %v2502, 1e-05
        %v2505 = vrsqrt.pop %v2503
        %v2506 = vrsqrt.pop %v2504
        %v2507 = vmul.f32 %v2493, %v2505
        %v2508 = vmul.f32 %v2494, %v2506
        %v2510 = vlaneseq
        %v2511 = vshrl.u32 %v2510, 7
        %v2512 = vsub.s32 0, %v2511
        %v2513 = vrot.slane %v2485, %v2512
        %v2515 = vmul.f32 %v2507, %v2513
        %v2516 = vmul.f32 %v2508, %v2513
        %v2518 = vlaneseq
        %v2519 = vshrl.u32 %v2518, 7
        %v2520 = vsub.s32 0, %v2519
        %v2521 = vrot.slane %v2486, %v2520
        %v2523 = vadd.f32 %v2515, %v2521
        %v2524 = vadd.f32 %v2516, %v2521
        %v2525 = vld [vmem:[%s1033] sm:$0xff]
        %v2526 = vld [vmem:[#allocation15] sm:$0xff]
        %v2527 = vld [vmem:[#allocation15 + $0x8] sm:$0xff]
        %v2528 = vld [vmem:[#allocation15 + $0x10] sm:$0xff]
        %v2529 = vld [vmem:[#allocation15 + $0x18] sm:$0xff]
        %v2530 = vld [vmem:[#allocation15 + $0x20] sm:$0xff]
        %v2531 = vld [vmem:[#allocation15 + $0x28] sm:$0xff]
        %v2532 = vld [vmem:[#allocation15 + $0x30] sm:$0xff]
        %v2533 = vld [vmem:[#allocation15 + $0x38] sm:$0xff]
        %v2534 = vld [vmem:[#allocation15 + $0x40] sm:$0xff]
        %v2535 = vld [vmem:[#allocation15 + $0x48] sm:$0xff]
        %v2536 = vld [vmem:[#allocation15 + $0x50] sm:$0xff]
        %v2537 = vld [vmem:[#allocation15 + $0x58] sm:$0xff]
        %v2538 = vld [vmem:[#allocation15 + $0x60] sm:$0xff]
        %v2539 = vld [vmem:[#allocation15 + $0x68] sm:$0xff]
        %v2540 = vld [vmem:[#allocation15 + $0x70] sm:$0xff]
        %v2541 = vld [vmem:[#allocation15 + $0x78] sm:$0xff]
        %v2542 = vld [vmem:[%s37] sm:$0x1]
        %v2543 = vld [vmem:[#allocation17] sm:$0xff]
        %v2544 = vld [vmem:[#allocation17 + $0x8] sm:$0xff]
        %v2545 = vld [vmem:[#allocation17 + $0x10] sm:$0xff]
        %v2546 = vld [vmem:[#allocation17 + $0x18] sm:$0xff]
        %v2547 = vld [vmem:[#allocation17 + $0x20] sm:$0xff]
        %v2548 = vld [vmem:[#allocation17 + $0x28] sm:$0xff]
        %v2549 = vld [vmem:[#allocation17 + $0x30] sm:$0xff]
        %v2550 = vld [vmem:[#allocation17 + $0x38] sm:$0xff]
        %v2551 = vld [vmem:[#allocation17 + $0x40] sm:$0xff]
        %v2552 = vld [vmem:[#allocation17 + $0x48] sm:$0xff]
        %v2553 = vld [vmem:[#allocation17 + $0x50] sm:$0xff]
        %v2554 = vld [vmem:[#allocation17 + $0x58] sm:$0xff]
        %v2555 = vld [vmem:[#allocation17 + $0x60] sm:$0xff]
        %v2556 = vld [vmem:[#allocation17 + $0x68] sm:$0xff]
        %v2557 = vld [vmem:[#allocation17 + $0x70] sm:$0xff]
        %v2558 = vld [vmem:[#allocation17 + $0x78] sm:$0xff]
        %v2559 = vld [vmem:[%s41] sm:$0x1]
        %v2560 = vld [vmem:[#allocation18] sm:$0xff]
        %v2561 = vld [vmem:[#allocation18 + $0x8] sm:$0xff]
        %v2562 = vld [vmem:[#allocation18 + $0x10] sm:$0xff]
        %v2563 = vld [vmem:[#allocation18 + $0x18] sm:$0xff]
        %v2564 = vld [vmem:[#allocation18 + $0x20] sm:$0xff]
        %v2565 = vld [vmem:[#allocation18 + $0x28] sm:$0xff]
        %v2566 = vld [vmem:[#allocation18 + $0x30] sm:$0xff]
        %v2567 = vld [vmem:[#allocation18 + $0x38] sm:$0xff]
        %v2568 = vld [vmem:[#allocation18 + $0x40] sm:$0xff]
        %v2569 = vld [vmem:[#allocation18 + $0x48] sm:$0xff]
        %v2570 = vld [vmem:[#allocation18 + $0x50] sm:$0xff]
        %v2571 = vld [vmem:[#allocation18 + $0x58] sm:$0xff]
        %v2572 = vld [vmem:[#allocation18 + $0x60] sm:$0xff]
        %v2573 = vld [vmem:[#allocation18 + $0x68] sm:$0xff]
        %v2574 = vld [vmem:[#allocation18 + $0x70] sm:$0xff]
        %v2575 = vld [vmem:[#allocation18 + $0x78] sm:$0xff]
        %v2576 = vld [vmem:[%s45] sm:$0x1]
        %v2577 = vld [vmem:[#allocation20] sm:$0xff]
        %v2578 = vld [vmem:[#allocation20 + $0x8] sm:$0xff]
        %v2579 = vld [vmem:[#allocation20 + $0x10] sm:$0xff]
        %v2580 = vld [vmem:[#allocation20 + $0x18] sm:$0xff]
        %v2581 = vld [vmem:[#allocation20 + $0x20] sm:$0xff]
        %v2582 = vld [vmem:[#allocation20 + $0x28] sm:$0xff]
        %v2583 = vld [vmem:[#allocation20 + $0x30] sm:$0xff]
        %v2584 = vld [vmem:[#allocation20 + $0x38] sm:$0xff]
        %v2585 = vld [vmem:[#allocation20 + $0x40] sm:$0xff]
        %v2586 = vld [vmem:[#allocation20 + $0x48] sm:$0xff]
        %v2587 = vld [vmem:[#allocation20 + $0x50] sm:$0xff]
        %v2588 = vld [vmem:[#allocation20 + $0x58] sm:$0xff]
        %v2589 = vld [vmem:[#allocation20 + $0x60] sm:$0xff]
        %v2590 = vld [vmem:[#allocation20 + $0x68] sm:$0xff]
        %v2591 = vld [vmem:[#allocation20 + $0x70] sm:$0xff]
        %v2592 = vld [vmem:[#allocation20 + $0x78] sm:$0xff]
        %v2593 = vld [vmem:[%s49] sm:$0x1]
        %v2595 = vlaneseq
        %v2596 = vshrl.u32 %v2595, 7
        %v2597 = vsub.s32 0, %v2596
        %v2598 = vrot.slane %v2542, %v2597
        %2600 = vmatprep.subr.mxu0 0.0
        %2601 = vmatpush1.msra.mxu0 %v2526
        %2602 = vmatprep.subr.mxu0 0.0
        %2603 = vmatpush1.msra.mxu0 %v2527
        %2604 = vmatprep.subr.mxu0 0.0
        %2605 = vmatpush1.msra.mxu0 %v2528
        %2606 = vmatprep.subr.mxu0 0.0
        %2607 = vmatpush1.msra.mxu0 %v2529
        %2608 = vmatprep.subr.mxu0 0.0
        %2609 = vmatpush1.msra.mxu0 %v2530
        %2610 = vmatprep.subr.mxu0 0.0
        %2611 = vmatpush1.msra.mxu0 %v2531
        %2612 = vmatprep.subr.mxu0 0.0
        %2613 = vmatpush1.msra.mxu0 %v2532
        %2614 = vmatprep.subr.mxu0 0.0
        %2615 = vmatpush1.msra.mxu0 %v2533
        %2616 = vmatprep.subr.mxu0 0.0
        %2617 = vmatpush1.msra.mxu0 %v2534
        %2618 = vmatprep.subr.mxu0 0.0
        %2619 = vmatpush1.msra.mxu0 %v2535
        %2620 = vmatprep.subr.mxu0 0.0
        %2621 = vmatpush1.msra.mxu0 %v2536
        %2622 = vmatprep.subr.mxu0 0.0
        %2623 = vmatpush1.msra.mxu0 %v2537
        %2624 = vmatprep.subr.mxu0 0.0
        %2625 = vmatpush1.msra.mxu0 %v2538
        %2626 = vmatprep.subr.mxu0 0.0
        %2627 = vmatpush1.msra.mxu0 %v2539
        %2628 = vmatprep.subr.mxu0 0.0
        %2629 = vmatpush1.msra.mxu0 %v2540
        %2630 = vmatprep.subr.mxu0 0.0
        %2631 = vmatpush1.msra.mxu0 %v2541
        %2632 = vmatprep.subr.mxu0 0.0
        %2633 = vmatpush1.msra.mxu0 0.0
        %2634 = vmatprep.subr.mxu0 0.0
        %2635 = vmatpush1.msra.mxu0 0.0
        %2636 = vmatprep.subr.mxu0 0.0
        %2637 = vmatpush1.msra.mxu0 0.0
        %2638 = vmatprep.subr.mxu0 0.0
        %2639 = vmatpush1.msra.mxu0 0.0
        %2640 = vmatprep.subr.mxu0 0.0
        %2641 = vmatpush1.msra.mxu0 0.0
        %2642 = vmatprep.subr.mxu0 0.0
        %2643 = vmatpush1.msra.mxu0 0.0
        %2644 = vmatprep.subr.mxu0 0.0
        %2645 = vmatpush1.msra.mxu0 0.0
        %2646 = vmatprep.subr.mxu0 0.0
        %2647 = vmatpush1.msra.mxu0 0.0
        %2648 = vmatprep.subr.mxu0 0.0
        %2649 = vmatpush1.msra.mxu0 0.0
        %2650 = vmatprep.subr.mxu0 0.0
        %2651 = vmatpush1.msra.mxu0 0.0
        %2652 = vmatprep.subr.mxu0 0.0
        %2653 = vmatpush1.msra.mxu0 0.0
        %2654 = vmatprep.subr.mxu0 0.0
        %2655 = vmatpush1.msra.mxu0 0.0
        %2656 = vmatprep.subr.mxu0 0.0
        %2657 = vmatpush1.msra.mxu0 0.0
        %2658 = vmatprep.subr.mxu0 0.0
        %2659 = vmatpush1.msra.mxu0 0.0
        %2660 = vmatprep.subr.mxu0 0.0
        %2661 = vmatpush1.msra.mxu0 0.0
        %2662 = vmatprep.subr.mxu0 0.0
        %2663 = vmatpush1.msra.mxu0 0.0
        %2664 = vmatprep.mubr.f32.mxu0 0.0
        %2665 = vmatmul.mubr.f32.gmra.mrb[0].mxu0 %v2523
        %v2666 = vpop.f32.mrb[0].mxu0
        %v2667 = vadd.f32 %v2598, %v2666
        %v2668 = vpop.f32.mrb[0].mxu0
        %2669 = vmatprep.mubr.f32.mxu0 0.0
        %2670 = vmatmul.mubr.f32.gmra.mrb[0].mxu0 %v2524
        %v2671 = vpop.f32.mrb[0].mxu0
        %v2672 = vadd.f32 %v2598, %v2671
        %v2673 = vpop.f32.mrb[0].mxu0
        %2674 = vdwg.mxu0
        %v2676 = vlaneseq
        %v2677 = vshrl.u32 %v2676, 7
        %v2678 = vsub.s32 0, %v2677
        %v2679 = vrot.slane %v2559, %v2678
        %2681 = vmatprep.subr.mxu0 0.0
        %2682 = vmatpush1.msra.mxu0 %v2543
        %2683 = vmatprep.subr.mxu0 0.0
        %2684 = vmatpush1.msra.mxu0 %v2544
        %2685 = vmatprep.subr.mxu0 0.0
        %2686 = vmatpush1.msra.mxu0 %v2545
        %2687 = vmatprep.subr.mxu0 0.0
        %2688 = vmatpush1.msra.mxu0 %v2546
        %2689 = vmatprep.subr.mxu0 0.0
        %2690 = vmatpush1.msra.mxu0 %v2547
        %2691 = vmatprep.subr.mxu0 0.0
        %2692 = vmatpush1.msra.mxu0 %v2548
        %2693 = vmatprep.subr.mxu0 0.0
        %2694 = vmatpush1.msra.mxu0 %v2549
        %2695 = vmatprep.subr.mxu0 0.0
        %2696 = vmatpush1.msra.mxu0 %v2550
        %2697 = vmatprep.subr.mxu0 0.0
        %2698 = vmatpush1.msra.mxu0 %v2551
        %2699 = vmatprep.subr.mxu0 0.0
        %2700 = vmatpush1.msra.mxu0 %v2552
        %2701 = vmatprep.subr.mxu0 0.0
        %2702 = vmatpush1.msra.mxu0 %v2553
        %2703 = vmatprep.subr.mxu0 0.0
        %2704 = vmatpush1.msra.mxu0 %v2554
        %2705 = vmatprep.subr.mxu0 0.0
        %2706 = vmatpush1.msra.mxu0 %v2555
        %2707 = vmatprep.subr.mxu0 0.0
        %2708 = vmatpush1.msra.mxu0 %v2556
        %2709 = vmatprep.subr.mxu0 0.0
        %2710 = vmatpush1.msra.mxu0 %v2557
        %2711 = vmatprep.subr.mxu0 0.0
        %2712 = vmatpush1.msra.mxu0 %v2558
        %2713 = vmatprep.subr.mxu0 0.0
        %2714 = vmatpush1.msra.mxu0 0.0
        %2715 = vmatprep.subr.mxu0 0.0
        %2716 = vmatpush1.msra.mxu0 0.0
        %2717 = vmatprep.subr.mxu0 0.0
        %2718 = vmatpush1.msra.mxu0 0.0
        %2719 = vmatprep.subr.mxu0 0.0
        %2720 = vmatpush1.msra.mxu0 0.0
        %2721 = vmatprep.subr.mxu0 0.0
        %2722 = vmatpush1.msra.mxu0 0.0
        %2723 = vmatprep.subr.mxu0 0.0
        %2724 = vmatpush1.msra.mxu0 0.0
        %2725 = vmatprep.subr.mxu0 0.0
        %2726 = vmatpush1.msra.mxu0 0.0
        %2727 = vmatprep.subr.mxu0 0.0
        %2728 = vmatpush1.msra.mxu0 0.0
        %2729 = vmatprep.subr.mxu0 0.0
        %2730 = vmatpush1.msra.mxu0 0.0
        %2731 = vmatprep.subr.mxu0 0.0
        %2732 = vmatpush1.msra.mxu0 0.0
        %2733 = vmatprep.subr.mxu0 0.0
        %2734 = vmatpush1.msra.mxu0 0.0
        %2735 = vmatprep.subr.mxu0 0.0
        %2736 = vmatpush1.msra.mxu0 0.0
        %2737 = vmatprep.subr.mxu0 0.0
        %2738 = vmatpush1.msra.mxu0 0.0
        %2739 = vmatprep.subr.mxu0 0.0
        %2740 = vmatpush1.msra.mxu0 0.0
        %2741 = vmatprep.subr.mxu0 0.0
        %2742 = vmatpush1.msra.mxu0 0.0
        %2743 = vmatprep.subr.mxu0 0.0
        %2744 = vmatpush1.msra.mxu0 0.0
        %2745 = vmatprep.mubr.f32.mxu0 0.0
        %2746 = vmatmul.mubr.f32.gmra.mrb[0].mxu0 %v2525
        %v2747 = vpop.f32.mrb[0].mxu0
        %v2748 = vadd.f32 %v2679, %v2747
        %v2749 = vpop.f32.mrb[0].mxu0
        %2750 = vdwg.mxu0
        %v2752 = vlaneseq
        %v2753 = vshrl.u32 %v2752, 7
        %v2754 = vsub.s32 0, %v2753
        %v2755 = vrot.slane %v2576, %v2754
        %2757 = vmatprep.subr.mxu0 0.0
        %2758 = vmatpush1.msra.mxu0 %v2560
        %2759 = vmatprep.subr.mxu0 0.0
        %2760 = vmatpush1.msra.mxu0 %v2561
        %2761 = vmatprep.subr.mxu0 0.0
        %2762 = vmatpush1.msra.mxu0 %v2562
        %2763 = vmatprep.subr.mxu0 0.0
        %2764 = vmatpush1.msra.mxu0 %v2563
        %2765 = vmatprep.subr.mxu0 0.0
        %2766 = vmatpush1.msra.mxu0 %v2564
        %2767 = vmatprep.subr.mxu0 0.0
        %2768 = vmatpush1.msra.mxu0 %v2565
        %2769 = vmatprep.subr.mxu0 0.0
        %2770 = vmatpush1.msra.mxu0 %v2566
        %2771 = vmatprep.subr.mxu0 0.0
        %2772 = vmatpush1.msra.mxu0 %v2567
        %2773 = vmatprep.subr.mxu0 0.0
        %2774 = vmatpush1.msra.mxu0 %v2568
        %2775 = vmatprep.subr.mxu0 0.0
        %2776 = vmatpush1.msra.mxu0 %v2569
        %2777 = vmatprep.subr.mxu0 0.0
        %2778 = vmatpush1.msra.mxu0 %v2570
        %2779 = vmatprep.subr.mxu0 0.0
        %2780 = vmatpush1.msra.mxu0 %v2571
        %2781 = vmatprep.subr.mxu0 0.0
        %2782 = vmatpush1.msra.mxu0 %v2572
        %2783 = vmatprep.subr.mxu0 0.0
        %2784 = vmatpush1.msra.mxu0 %v2573
        %2785 = vmatprep.subr.mxu0 0.0
        %2786 = vmatpush1.msra.mxu0 %v2574
        %2787 = vmatprep.subr.mxu0 0.0
        %2788 = vmatpush1.msra.mxu0 %v2575
        %2789 = vmatprep.subr.mxu0 0.0
        %2790 = vmatpush1.msra.mxu0 0.0
        %2791 = vmatprep.subr.mxu0 0.0
        %2792 = vmatpush1.msra.mxu0 0.0
        %2793 = vmatprep.subr.mxu0 0.0
        %2794 = vmatpush1.msra.mxu0 0.0
        %2795 = vmatprep.subr.mxu0 0.0
        %2796 = vmatpush1.msra.mxu0 0.0
        %2797 = vmatprep.subr.mxu0 0.0
        %2798 = vmatpush1.msra.mxu0 0.0
        %2799 = vmatprep.subr.mxu0 0.0
        %2800 = vmatpush1.msra.mxu0 0.0
        %2801 = vmatprep.subr.mxu0 0.0
        %2802 = vmatpush1.msra.mxu0 0.0
        %2803 = vmatprep.subr.mxu0 0.0
        %2804 = vmatpush1.msra.mxu0 0.0
        %2805 = vmatprep.subr.mxu0 0.0
        %2806 = vmatpush1.msra.mxu0 0.0
        %2807 = vmatprep.subr.mxu0 0.0
        %2808 = vmatpush1.msra.mxu0 0.0
        %2809 = vmatprep.subr.mxu0 0.0
        %2810 = vmatpush1.msra.mxu0 0.0
        %2811 = vmatprep.subr.mxu0 0.0
        %2812 = vmatpush1.msra.mxu0 0.0
        %2813 = vmatprep.subr.mxu0 0.0
        %2814 = vmatpush1.msra.mxu0 0.0
        %2815 = vmatprep.subr.mxu0 0.0
        %2816 = vmatpush1.msra.mxu0 0.0
        %2817 = vmatprep.subr.mxu0 0.0
        %2818 = vmatpush1.msra.mxu0 0.0
        %2819 = vmatprep.subr.mxu0 0.0
        %2820 = vmatpush1.msra.mxu0 0.0
        %2821 = vmatprep.mubr.f32.mxu0 0.0
        %2822 = vmatmul.mubr.f32.gmra.mrb[0].mxu0 %v2525
        %v2823 = vpop.f32.mrb[0].mxu0
        %v2824 = vadd.f32 %v2755, %v2823
        %v2825 = vpop.f32.mrb[0].mxu0
        %2826 = vdwg.mxu0
        %2829 = vrot.lane.b32.xlu0 %v2667, 96
        %v2830 = vpop.permute.xlu0 %2829
        %2831 = vrot.lane.b32.xlu0 %v2672, 96
        %v2832 = vpop.permute.xlu0 %2831
        %2833 = vrot.lane.b32.xlu0 %v2667, 64
        %v2834 = vpop.permute.xlu0 %2833
        %2835 = vrot.lane.b32.xlu0 %v2672, 64
        %v2836 = vpop.permute.xlu0 %2835
        %2837 = vrot.lane.b32.xlu0 %v2667, 32
        %v2838 = vpop.permute.xlu0 %2837
        %2839 = vrot.lane.b32.xlu0 %v2672, 32
        %v2840 = vpop.permute.xlu0 %2839
        %2842 = vrot.lane.b32.xlu0 %v2748, 96
        %v2843 = vpop.permute.xlu0 %2842
        %2844 = vrot.lane.b32.xlu0 %v2748, 64
        %v2845 = vpop.permute.xlu0 %2844
        %2846 = vrot.lane.b32.xlu0 %v2748, 32
        %v2847 = vpop.permute.xlu0 %2846
        %2849 = vrot.lane.b32.xlu0 %v2824, 96
        %v2850 = vpop.permute.xlu0 %2849
        %2852 = vrot.lane.b32.xlu0 %v2824, 64
        %v2853 = vpop.permute.xlu0 %2852
        %2855 = vrot.lane.b32.xlu0 %v2824, 32
        %v2856 = vpop.permute.xlu0 %2855
        %v2858 = vsel %vm1603, %v2667, 0
        %v2860 = vsel %vm1603, %v2672, 0
        %v2862 = vsel %vm1603, %v2748, 0
        %2864 = vmatprep.subr.mxu0 0.0
        %2865 = vmatpush1.xpose.msra.mxu0 %v2862
        %2866 = vmatprep.subr.mxu0 0.0
        %2867 = vmatpush1.xpose.msra.mxu0 0.0
        %2868 = vmatprep.subr.mxu0 0.0
        %2869 = vmatpush1.xpose.msra.mxu0 0.0
        %2870 = vmatprep.subr.mxu0 0.0
        %2871 = vmatpush1.xpose.msra.mxu0 0.0
        %2872 = vmatprep.subr.mxu0 0.0
        %2873 = vmatpush1.xpose.msra.mxu0 0.0
        %2874 = vmatprep.subr.mxu0 0.0
        %2875 = vmatpush1.xpose.msra.mxu0 0.0
        %2876 = vmatprep.subr.mxu0 0.0
        %2877 = vmatpush1.xpose.msra.mxu0 0.0
        %2878 = vmatprep.subr.mxu0 0.0
        %2879 = vmatpush1.xpose.msra.mxu0 0.0
        %2880 = vmatprep.subr.mxu0 0.0
        %2881 = vmatpush1.xpose.msra.mxu0 0.0
        %2882 = vmatprep.subr.mxu0 0.0
        %2883 = vmatpush1.xpose.msra.mxu0 0.0
        %2884 = vmatprep.subr.mxu0 0.0
        %2885 = vmatpush1.xpose.msra.mxu0 0.0
        %2886 = vmatprep.subr.mxu0 0.0
        %2887 = vmatpush1.xpose.msra.mxu0 0.0
        %2888 = vmatprep.subr.mxu0 0.0
        %2889 = vmatpush1.xpose.msra.mxu0 0.0
        %2890 = vmatprep.subr.mxu0 0.0
        %2891 = vmatpush1.xpose.msra.mxu0 0.0
        %2892 = vmatprep.subr.mxu0 0.0
        %2893 = vmatpush1.xpose.msra.mxu0 0.0
        %2894 = vmatprep.subr.mxu0 0.0
        %2895 = vmatpush1.xpose.msra.mxu0 0.0
        %2896 = vmatprep.subr.mxu0 0.0
        %2897 = vmatpush1.xpose.msra.mxu0 0.0
        %2898 = vmatprep.subr.mxu0 0.0
        %2899 = vmatpush1.xpose.msra.mxu0 0.0
        %2900 = vmatprep.subr.mxu0 0.0
        %2901 = vmatpush1.xpose.msra.mxu0 0.0
        %2902 = vmatprep.subr.mxu0 0.0
        %2903 = vmatpush1.xpose.msra.mxu0 0.0
        %2904 = vmatprep.subr.mxu0 0.0
        %2905 = vmatpush1.xpose.msra.mxu0 0.0
        %2906 = vmatprep.subr.mxu0 0.0
        %2907 = vmatpush1.xpose.msra.mxu0 0.0
        %2908 = vmatprep.subr.mxu0 0.0
        %2909 = vmatpush1.xpose.msra.mxu0 0.0
        %2910 = vmatprep.subr.mxu0 0.0
        %2911 = vmatpush1.xpose.msra.mxu0 0.0
        %2912 = vmatprep.subr.mxu0 0.0
        %2913 = vmatpush1.xpose.msra.mxu0 0.0
        %2914 = vmatprep.subr.mxu0 0.0
        %2915 = vmatpush1.xpose.msra.mxu0 0.0
        %2916 = vmatprep.subr.mxu0 0.0
        %2917 = vmatpush1.xpose.msra.mxu0 0.0
        %2918 = vmatprep.subr.mxu0 0.0
        %2919 = vmatpush1.xpose.msra.mxu0 0.0
        %2920 = vmatprep.subr.mxu0 0.0
        %2921 = vmatpush1.xpose.msra.mxu0 0.0
        %2922 = vmatprep.subr.mxu0 0.0
        %2923 = vmatpush1.xpose.msra.mxu0 0.0
        %2924 = vmatprep.subr.mxu0 0.0
        %2925 = vmatpush1.xpose.msra.mxu0 0.0
        %2926 = vmatprep.subr.mxu0 0.0
        %2927 = vmatpush1.xpose.msra.mxu0 0.0
        %2928 = vmatprep.mubr.f32.mxu0 0.0
        %2929 = vmatmul.mubr.f32.gmra.mrb[0].mxu0 %v2858
        %v2930 = vpop.f32.mrb[0].mxu0
        %v2931 = vadd.f32 0.0, %v2930
        %v2932 = vpop.f32.mrb[0].mxu0
        %2933 = vmatprep.mubr.f32.mxu0 0.0
        %2934 = vmatmul.mubr.f32.gmra.mrb[0].mxu0 %v2860
        %v2935 = vpop.f32.mrb[0].mxu0
        %v2936 = vadd.f32 0.0, %v2935
        %v2937 = vpop.f32.mrb[0].mxu0
        %2938 = vdwg.mxu0
        %v2939 = vsel %vm1603, %v2830, 0
        %v2941 = vsel %vm1603, %v2832, 0
        %v2943 = vsel %vm1603, %v2843, 0
        %2945 = vmatprep.subr.mxu0 0.0
        %2946 = vmatpush1.xpose.msra.mxu0 %v2943
        %2947 = vmatprep.subr.mxu0 0.0
        %2948 = vmatpush1.xpose.msra.mxu0 0.0
        %2949 = vmatprep.subr.mxu0 0.0
        %2950 = vmatpush1.xpose.msra.mxu0 0.0
        %2951 = vmatprep.subr.mxu0 0.0
        %2952 = vmatpush1.xpose.msra.mxu0 0.0
        %2953 = vmatprep.subr.mxu0 0.0
        %2954 = vmatpush1.xpose.msra.mxu0 0.0
        %2955 = vmatprep.subr.mxu0 0.0
        %2956 = vmatpush1.xpose.msra.mxu0 0.0
        %2957 = vmatprep.subr.mxu0 0.0
        %2958 = vmatpush1.xpose.msra.mxu0 0.0
        %2959 = vmatprep.subr.mxu0 0.0
        %2960 = vmatpush1.xpose.msra.mxu0 0.0
        %2961 = vmatprep.subr.mxu0 0.0
        %2962 = vmatpush1.xpose.msra.mxu0 0.0
        %2963 = vmatprep.subr.mxu0 0.0
        %2964 = vmatpush1.xpose.msra.mxu0 0.0
        %2965 = vmatprep.subr.mxu0 0.0
        %2966 = vmatpush1.xpose.msra.mxu0 0.0
        %2967 = vmatprep.subr.mxu0 0.0
        %2968 = vmatpush1.xpose.msra.mxu0 0.0
        %2969 = vmatprep.subr.mxu0 0.0
        %2970 = vmatpush1.xpose.msra.mxu0 0.0
        %2971 = vmatprep.subr.mxu0 0.0
        %2972 = vmatpush1.xpose.msra.mxu0 0.0
        %2973 = vmatprep.subr.mxu0 0.0
        %2974 = vmatpush1.xpose.msra.mxu0 0.0
        %2975 = vmatprep.subr.mxu0 0.0
        %2976 = vmatpush1.xpose.msra.mxu0 0.0
        %2977 = vmatprep.subr.mxu0 0.0
        %2978 = vmatpush1.xpose.msra.mxu0 0.0
        %2979 = vmatprep.subr.mxu0 0.0
        %2980 = vmatpush1.xpose.msra.mxu0 0.0
        %2981 = vmatprep.subr.mxu0 0.0
        %2982 = vmatpush1.xpose.msra.mxu0 0.0
        %2983 = vmatprep.subr.mxu0 0.0
        %2984 = vmatpush1.xpose.msra.mxu0 0.0
        %2985 = vmatprep.subr.mxu0 0.0
        %2986 = vmatpush1.xpose.msra.mxu0 0.0
        %2987 = vmatprep.subr.mxu0 0.0
        %2988 = vmatpush1.xpose.msra.mxu0 0.0
        %2989 = vmatprep.subr.mxu0 0.0
        %2990 = vmatpush1.xpose.msra.mxu0 0.0
        %2991 = vmatprep.subr.mxu0 0.0
        %2992 = vmatpush1.xpose.msra.mxu0 0.0
        %2993 = vmatprep.subr.mxu0 0.0
        %2994 = vmatpush1.xpose.msra.mxu0 0.0
        %2995 = vmatprep.subr.mxu0 0.0
        %2996 = vmatpush1.xpose.msra.mxu0 0.0
        %2997 = vmatprep.subr.mxu0 0.0
        %2998 = vmatpush1.xpose.msra.mxu0 0.0
        %2999 = vmatprep.subr.mxu0 0.0
        %3000 = vmatpush1.xpose.msra.mxu0 0.0
        %3001 = vmatprep.subr.mxu0 0.0
        %3002 = vmatpush1.xpose.msra.mxu0 0.0
        %3003 = vmatprep.subr.mxu0 0.0
        %3004 = vmatpush1.xpose.msra.mxu0 0.0
        %3005 = vmatprep.subr.mxu0 0.0
        %3006 = vmatpush1.xpose.msra.mxu0 0.0
        %3007 = vmatprep.subr.mxu0 0.0
        %3008 = vmatpush1.xpose.msra.mxu0 0.0
        %3009 = vmatprep.mubr.f32.mxu0 0.0
        %3010 = vmatmul.mubr.f32.gmra.mrb[0].mxu0 %v2939
        %v3011 = vpop.f32.mrb[0].mxu0
        %v3012 = vadd.f32 0.0, %v3011
        %v3013 = vpop.f32.mrb[0].mxu0
        %3014 = vmatprep.mubr.f32.mxu0 0.0
        %3015 = vmatmul.mubr.f32.gmra.mrb[0].mxu0 %v2941
        %v3016 = vpop.f32.mrb[0].mxu0
        %v3017 = vadd.f32 0.0, %v3016
        %v3018 = vpop.f32.mrb[0].mxu0
        %3019 = vdwg.mxu0
        %v3020 = vsel %vm1603, %v2834, 0
        %v3022 = vsel %vm1603, %v2836, 0
        %v3024 = vsel %vm1603, %v2845, 0
        %3026 = vmatprep.subr.mxu0 0.0
        %3027 = vmatpush1.xpose.msra.mxu0 %v3024
        %3028 = vmatprep.subr.mxu0 0.0
        %3029 = vmatpush1.xpose.msra.mxu0 0.0
        %3030 = vmatprep.subr.mxu0 0.0
        %3031 = vmatpush1.xpose.msra.mxu0 0.0
        %3032 = vmatprep.subr.mxu0 0.0
        %3033 = vmatpush1.xpose.msra.mxu0 0.0
        %3034 = vmatprep.subr.mxu0 0.0
        %3035 = vmatpush1.xpose.msra.mxu0 0.0
        %3036 = vmatprep.subr.mxu0 0.0
        %3037 = vmatpush1.xpose.msra.mxu0 0.0
        %3038 = vmatprep.subr.mxu0 0.0
        %3039 = vmatpush1.xpose.msra.mxu0 0.0
        %3040 = vmatprep.subr.mxu0 0.0
        %3041 = vmatpush1.xpose.msra.mxu0 0.0
        %3042 = vmatprep.subr.mxu0 0.0
        %3043 = vmatpush1.xpose.msra.mxu0 0.0
        %3044 = vmatprep.subr.mxu0 0.0
        %3045 = vmatpush1.xpose.msra.mxu0 0.0
        %3046 = vmatprep.subr.mxu0 0.0
        %3047 = vmatpush1.xpose.msra.mxu0 0.0
        %3048 = vmatprep.subr.mxu0 0.0
        %3049 = vmatpush1.xpose.msra.mxu0 0.0
        %3050 = vmatprep.subr.mxu0 0.0
        %3051 = vmatpush1.xpose.msra.mxu0 0.0
        %3052 = vmatprep.subr.mxu0 0.0
        %3053 = vmatpush1.xpose.msra.mxu0 0.0
        %3054 = vmatprep.subr.mxu0 0.0
        %3055 = vmatpush1.xpose.msra.mxu0 0.0
        %3056 = vmatprep.subr.mxu0 0.0
        %3057 = vmatpush1.xpose.msra.mxu0 0.0
        %3058 = vmatprep.subr.mxu0 0.0
        %3059 = vmatpush1.xpose.msra.mxu0 0.0
        %3060 = vmatprep.subr.mxu0 0.0
        %3061 = vmatpush1.xpose.msra.mxu0 0.0
        %3062 = vmatprep.subr.mxu0 0.0
        %3063 = vmatpush1.xpose.msra.mxu0 0.0
        %3064 = vmatprep.subr.mxu0 0.0
        %3065 = vmatpush1.xpose.msra.mxu0 0.0
        %3066 = vmatprep.subr.mxu0 0.0
        %3067 = vmatpush1.xpose.msra.mxu0 0.0
        %3068 = vmatprep.subr.mxu0 0.0
        %3069 = vmatpush1.xpose.msra.mxu0 0.0
        %3070 = vmatprep.subr.mxu0 0.0
        %3071 = vmatpush1.xpose.msra.mxu0 0.0
        %3072 = vmatprep.subr.mxu0 0.0
        %3073 = vmatpush1.xpose.msra.mxu0 0.0
        %3074 = vmatprep.subr.mxu0 0.0
        %3075 = vmatpush1.xpose.msra.mxu0 0.0
        %3076 = vmatprep.subr.mxu0 0.0
        %3077 = vmatpush1.xpose.msra.mxu0 0.0
        %3078 = vmatprep.subr.mxu0 0.0
        %3079 = vmatpush1.xpose.msra.mxu0 0.0
        %3080 = vmatprep.subr.mxu0 0.0
        %3081 = vmatpush1.xpose.msra.mxu0 0.0
        %3082 = vmatprep.subr.mxu0 0.0
        %3083 = vmatpush1.xpose.msra.mxu0 0.0
        %3084 = vmatprep.subr.mxu0 0.0
        %3085 = vmatpush1.xpose.msra.mxu0 0.0
        %3086 = vmatprep.subr.mxu0 0.0
        %3087 = vmatpush1.xpose.msra.mxu0 0.0
        %3088 = vmatprep.subr.mxu0 0.0
        %3089 = vmatpush1.xpose.msra.mxu0 0.0
        %3090 = vmatprep.mubr.f32.mxu0 0.0
        %3091 = vmatmul.mubr.f32.gmra.mrb[0].mxu0 %v3020
        %v3092 = vpop.f32.mrb[0].mxu0
        %v3093 = vadd.f32 0.0, %v3092
        %v3094 = vpop.f32.mrb[0].mxu0
        %3095 = vmatprep.mubr.f32.mxu0 0.0
        %3096 = vmatmul.mubr.f32.gmra.mrb[0].mxu0 %v3022
        %v3097 = vpop.f32.mrb[0].mxu0
        %v3098 = vadd.f32 0.0, %v3097
        %v3099 = vpop.f32.mrb[0].mxu0
        %3100 = vdwg.mxu0
        %v3101 = vsel %vm1603, %v2838, 0
        %v3103 = vsel %vm1603, %v2840, 0
        %v3105 = vsel %vm1603, %v2847, 0
        %3107 = vmatprep.subr.mxu0 0.0
        %3108 = vmatpush1.xpose.msra.mxu0 %v3105
        %3109 = vmatprep.subr.mxu0 0.0
        %3110 = vmatpush1.xpose.msra.mxu0 0.0
        %3111 = vmatprep.subr.mxu0 0.0
        %3112 = vmatpush1.xpose.msra.mxu0 0.0
        %3113 = vmatprep.subr.mxu0 0.0
        %3114 = vmatpush1.xpose.msra.mxu0 0.0
        %3115 = vmatprep.subr.mxu0 0.0
        %3116 = vmatpush1.xpose.msra.mxu0 0.0
        %3117 = vmatprep.subr.mxu0 0.0
        %3118 = vmatpush1.xpose.msra.mxu0 0.0
        %3119 = vmatprep.subr.mxu0 0.0
        %3120 = vmatpush1.xpose.msra.mxu0 0.0
        %3121 = vmatprep.subr.mxu0 0.0
        %3122 = vmatpush1.xpose.msra.mxu0 0.0
        %3123 = vmatprep.subr.mxu0 0.0
        %3124 = vmatpush1.xpose.msra.mxu0 0.0
        %3125 = vmatprep.subr.mxu0 0.0
        %3126 = vmatpush1.xpose.msra.mxu0 0.0
        %3127 = vmatprep.subr.mxu0 0.0
        %3128 = vmatpush1.xpose.msra.mxu0 0.0
        %3129 = vmatprep.subr.mxu0 0.0
        %3130 = vmatpush1.xpose.msra.mxu0 0.0
        %3131 = vmatprep.subr.mxu0 0.0
        %3132 = vmatpush1.xpose.msra.mxu0 0.0
        %3133 = vmatprep.subr.mxu0 0.0
        %3134 = vmatpush1.xpose.msra.mxu0 0.0
        %3135 = vmatprep.subr.mxu0 0.0
        %3136 = vmatpush1.xpose.msra.mxu0 0.0
        %3137 = vmatprep.subr.mxu0 0.0
        %3138 = vmatpush1.xpose.msra.mxu0 0.0
        %3139 = vmatprep.subr.mxu0 0.0
        %3140 = vmatpush1.xpose.msra.mxu0 0.0
        %3141 = vmatprep.subr.mxu0 0.0
        %3142 = vmatpush1.xpose.msra.mxu0 0.0
        %3143 = vmatprep.subr.mxu0 0.0
        %3144 = vmatpush1.xpose.msra.mxu0 0.0
        %3145 = vmatprep.subr.mxu0 0.0
        %3146 = vmatpush1.xpose.msra.mxu0 0.0
        %3147 = vmatprep.subr.mxu0 0.0
        %3148 = vmatpush1.xpose.msra.mxu0 0.0
        %3149 = vmatprep.subr.mxu0 0.0
        %3150 = vmatpush1.xpose.msra.mxu0 0.0
        %3151 = vmatprep.subr.mxu0 0.0
        %3152 = vmatpush1.xpose.msra.mxu0 0.0
        %3153 = vmatprep.subr.mxu0 0.0
        %3154 = vmatpush1.xpose.msra.mxu0 0.0
        %3155 = vmatprep.subr.mxu0 0.0
        %3156 = vmatpush1.xpose.msra.mxu0 0.0
        %3157 = vmatprep.subr.mxu0 0.0
        %3158 = vmatpush1.xpose.msra.mxu0 0.0
        %3159 = vmatprep.subr.mxu0 0.0
        %3160 = vmatpush1.xpose.msra.mxu0 0.0
        %3161 = vmatprep.subr.mxu0 0.0
        %3162 = vmatpush1.xpose.msra.mxu0 0.0
        %3163 = vmatprep.subr.mxu0 0.0
        %3164 = vmatpush1.xpose.msra.mxu0 0.0
        %3165 = vmatprep.subr.mxu0 0.0
        %3166 = vmatpush1.xpose.msra.mxu0 0.0
        %3167 = vmatprep.subr.mxu0 0.0
        %3168 = vmatpush1.xpose.msra.mxu0 0.0
        %3169 = vmatprep.subr.mxu0 0.0
        %3170 = vmatpush1.xpose.msra.mxu0 0.0
        %3171 = vmatprep.mubr.f32.mxu0 0.0
        %3172 = vmatmul.mubr.f32.gmra.mrb[0].mxu0 %v3101
        %v3173 = vpop.f32.mrb[0].mxu0
        %v3174 = vadd.f32 0.0, %v3173
        %v3175 = vpop.f32.mrb[0].mxu0
        %3176 = vmatprep.mubr.f32.mxu0 0.0
        %3177 = vmatmul.mubr.f32.gmra.mrb[0].mxu0 %v3103
        %v3178 = vpop.f32.mrb[0].mxu0
        %v3179 = vadd.f32 0.0, %v3178
        %v3180 = vpop.f32.mrb[0].mxu0
        %3181 = vdwg.mxu0
        %v3182 = vmul.f32 %v2931, 0.17677669
        %v3183 = vmul.f32 %v2936, 0.17677669
        %v3184 = vmul.f32 %v3012, 0.17677669
        %v3185 = vmul.f32 %v3017, 0.17677669
        %v3186 = vmul.f32 %v3093, 0.17677669
        %v3187 = vmul.f32 %v3098, 0.17677669
        %v3188 = vmul.f32 %v3174, 0.17677669
        %v3189 = vmul.f32 %v3179, 0.17677669
        %vm3190 = vcmask 64512
        %v3191 = vsel %vm3190, %v3182, -inf
        %3192 = vmax.xlane.f32.xlu0 %v3191
        %v3193 = vpop.xlane.xlu0 %3192
        %v3194 = vsel %vm3190, %v3183, -inf
        %3195 = vmax.xlane.f32.xlu0 %v3194
        %v3196 = vpop.xlane.xlu0 %3195
        %v3197 = vsel %vm3190, %v3184, -inf
        %3198 = vmax.xlane.f32.xlu0 %v3197
        %v3199 = vpop.xlane.xlu0 %3198
        %v3200 = vsel %vm3190, %v3185, -inf
        %3201 = vmax.xlane.f32.xlu0 %v3200
        %v3202 = vpop.xlane.xlu0 %3201
        %v3203 = vsel %vm3190, %v3186, -inf
        %3204 = vmax.xlane.f32.xlu0 %v3203
        %v3205 = vpop.xlane.xlu0 %3204
        %v3206 = vsel %vm3190, %v3187, -inf
        %3207 = vmax.xlane.f32.xlu0 %v3206
        %v3208 = vpop.xlane.xlu0 %3207
        %v3209 = vsel %vm3190, %v3188, -inf
        %3210 = vmax.xlane.f32.xlu0 %v3209
        %v3211 = vpop.xlane.xlu0 %3210
        %v3212 = vsel %vm3190, %v3189, -inf
        %3213 = vmax.xlane.f32.xlu0 %v3212
        %v3214 = vpop.xlane.xlu0 %3213
        %v3215 = vsub.f32 %v3182, %v3193
        %v3216 = vsub.f32 %v3183, %v3196
        %v3217 = vsub.f32 %v3184, %v3199
        %v3218 = vsub.f32 %v3185, %v3202
        %v3219 = vsub.f32 %v3186, %v3205
        %v3220 = vsub.f32 %v3187, %v3208
        %v3221 = vsub.f32 %v3188, %v3211
        %v3222 = vsub.f32 %v3189, %v3214
        %v3223 = vmul.f32 %v3215, 1.442695
        %v3224 = vpow.pop %v3223
        %v3225 = vmul.f32 %v3216, 1.442695
        %v3226 = vpow.pop %v3225
        %v3227 = vmul.f32 %v3217, 1.442695
        %v3228 = vpow.pop %v3227
        %v3229 = vmul.f32 %v3218, 1.442695
        %v3230 = vpow.pop %v3229
        %v3231 = vmul.f32 %v3219, 1.442695
        %v3232 = vpow.pop %v3231
        %v3233 = vmul.f32 %v3220, 1.442695
        %v3234 = vpow.pop %v3233
        %v3235 = vmul.f32 %v3221, 1.442695
        %v3236 = vpow.pop %v3235
        %v3237 = vmul.f32 %v3222, 1.442695
        %v3238 = vpow.pop %v3237
        %v3239 = vsel %vm3190, %v3224, 0.0
        %3240 = vadd.xlane.f32.xlu0 %v3239
        %v3241 = vpop.xlane.xlu0 %3240
        %v3242 = vsel %vm3190, %v3226, 0.0
        %3243 = vadd.xlane.f32.xlu0 %v3242
        %v3244 = vpop.xlane.xlu0 %3243
        %v3245 = vsel %vm3190, %v3228, 0.0
        %3246 = vadd.xlane.f32.xlu0 %v3245
        %v3247 = vpop.xlane.xlu0 %3246
        %v3248 = vsel %vm3190, %v3230, 0.0
        %3249 = vadd.xlane.f32.xlu0 %v3248
        %v3250 = vpop.xlane.xlu0 %3249
        %v3251 = vsel %vm3190, %v3232, 0.0
        %3252 = vadd.xlane.f32.xlu0 %v3251
        %v3253 = vpop.xlane.xlu0 %3252
        %v3254 = vsel %vm3190, %v3234, 0.0
        %3255 = vadd.xlane.f32.xlu0 %v3254
        %v3256 = vpop.xlane.xlu0 %3255
        %v3257 = vsel %vm3190, %v3236, 0.0
        %3258 = vadd.xlane.f32.xlu0 %v3257
        %v3259 = vpop.xlane.xlu0 %3258
        %v3260 = vsel %vm3190, %v3238, 0.0
        %3261 = vadd.xlane.f32.xlu0 %v3260
        %v3262 = vpop.xlane.xlu0 %3261
        %v3263 = vrcp.pop %v3241
        %v3264 = vrcp.pop %v3244
        %v3265 = vrcp.pop %v3247
        %v3266 = vrcp.pop %v3250
        %v3267 = vrcp.pop %v3253
        %v3268 = vrcp.pop %v3256
        %v3269 = vrcp.pop %v3259
        %v3270 = vrcp.pop %v3262
        %v3271 = vmul.f32 %v3224, %v3263
        %v3272 = vmul.f32 %v3226, %v3264
        %v3273 = vmul.f32 %v3228, %v3265
        %v3274 = vmul.f32 %v3230, %v3266
        %v3275 = vmul.f32 %v3232, %v3267
        %v3276 = vmul.f32 %v3234, %v3268
        %v3277 = vmul.f32 %v3236, %v3269
        %v3278 = vmul.f32 %v3238, %v3270
        %v3280 = vsel %vm3190, %v3271, 0
        %v3283 = vsel %vm3190, %v3272, 0
        %3285 = vmatprep.subr.mxu0 0.0
        %3286 = vmatpush1.msra.mxu0 %v2824
        %3287 = vmatprep.subr.mxu0 0.0
        %3288 = vmatpush1.msra.mxu0 0.0
        %3289 = vmatprep.subr.mxu0 0.0
        %3290 = vmatpush1.msra.mxu0 0.0
        %3291 = vmatprep.subr.mxu0 0.0
        %3292 = vmatpush1.msra.mxu0 0.0
        %3293 = vmatprep.subr.mxu0 0.0
        %3294 = vmatpush1.msra.mxu0 0.0
        %3295 = vmatprep.subr.mxu0 0.0
        %3296 = vmatpush1.msra.mxu0 0.0
        %3297 = vmatprep.subr.mxu0 0.0
        %3298 = vmatpush1.msra.mxu0 0.0
        %3299 = vmatprep.subr.mxu0 0.0
        %3300 = vmatpush1.msra.mxu0 0.0
        %3301 = vmatprep.subr.mxu0 0.0
        %3302 = vmatpush1.msra.mxu0 0.0
        %3303 = vmatprep.subr.mxu0 0.0
        %3304 = vmatpush1.msra.mxu0 0.0
        %3305 = vmatprep.subr.mxu0 0.0
        %3306 = vmatpush1.msra.mxu0 0.0
        %3307 = vmatprep.subr.mxu0 0.0
        %3308 = vmatpush1.msra.mxu0 0.0
        %3309 = vmatprep.subr.mxu0 0.0
        %3310 = vmatpush1.msra.mxu0 0.0
        %3311 = vmatprep.subr.mxu0 0.0
        %3312 = vmatpush1.msra.mxu0 0.0
        %3313 = vmatprep.subr.mxu0 0.0
        %3314 = vmatpush1.msra.mxu0 0.0
        %3315 = vmatprep.subr.mxu0 0.0
        %3316 = vmatpush1.msra.mxu0 0.0
        %3317 = vmatprep.subr.mxu0 0.0
        %3318 = vmatpush1.msra.mxu0 0.0
        %3319 = vmatprep.subr.mxu0 0.0
        %3320 = vmatpush1.msra.mxu0 0.0
        %3321 = vmatprep.subr.mxu0 0.0
        %3322 = vmatpush1.msra.mxu0 0.0
        %3323 = vmatprep.subr.mxu0 0.0
        %3324 = vmatpush1.msra.mxu0 0.0
        %3325 = vmatprep.subr.mxu0 0.0
        %3326 = vmatpush1.msra.mxu0 0.0
        %3327 = vmatprep.subr.mxu0 0.0
        %3328 = vmatpush1.msra.mxu0 0.0
        %3329 = vmatprep.subr.mxu0 0.0
        %3330 = vmatpush1.msra.mxu0 0.0
        %3331 = vmatprep.subr.mxu0 0.0
        %3332 = vmatpush1.msra.mxu0 0.0
        %3333 = vmatprep.subr.mxu0 0.0
        %3334 = vmatpush1.msra.mxu0 0.0
        %3335 = vmatprep.subr.mxu0 0.0
        %3336 = vmatpush1.msra.mxu0 0.0
        %3337 = vmatprep.subr.mxu0 0.0
        %3338 = vmatpush1.msra.mxu0 0.0
        %3339 = vmatprep.subr.mxu0 0.0
        %3340 = vmatpush1.msra.mxu0 0.0
        %3341 = vmatprep.subr.mxu0 0.0
        %3342 = vmatpush1.msra.mxu0 0.0
        %3343 = vmatprep.subr.mxu0 0.0
        %3344 = vmatpush1.msra.mxu0 0.0
        %3345 = vmatprep.subr.mxu0 0.0
        %3346 = vmatpush1.msra.mxu0 0.0
        %3347 = vmatprep.subr.mxu0 0.0
        %3348 = vmatpush1.msra.mxu0 0.0
        %3349 = vmatprep.mubr.f32.mxu0 0.0
        %3350 = vmatmul.mubr.f32.gmra.mrb[0].mxu0 %v3280
        %v3351 = vpop.f32.mrb[0].mxu0
        %v3352 = vadd.f32 0.0, %v3351
        %v3353 = vpop.f32.mrb[0].mxu0
        %3354 = vmatprep.mubr.f32.mxu0 0.0
        %3355 = vmatmul.mubr.f32.gmra.mrb[0].mxu0 %v3283
        %v3356 = vpop.f32.mrb[0].mxu0
        %v3357 = vadd.f32 0.0, %v3356
        %v3358 = vpop.f32.mrb[0].mxu0
        %3359 = vdwg.mxu0
        %v3361 = vsel %vm3190, %v3273, 0
        %v3364 = vsel %vm3190, %v3274, 0
        %3366 = vmatprep.subr.mxu0 0.0
        %3367 = vmatpush1.msra.mxu0 %v2850
        %3368 = vmatprep.subr.mxu0 0.0
        %3369 = vmatpush1.msra.mxu0 0.0
        %3370 = vmatprep.subr.mxu0 0.0
        %3371 = vmatpush1.msra.mxu0 0.0
        %3372 = vmatprep.subr.mxu0 0.0
        %3373 = vmatpush1.msra.mxu0 0.0
        %3374 = vmatprep.subr.mxu0 0.0
        %3375 = vmatpush1.msra.mxu0 0.0
        %3376 = vmatprep.subr.mxu0 0.0
        %3377 = vmatpush1.msra.mxu0 0.0
        %3378 = vmatprep.subr.mxu0 0.0
        %3379 = vmatpush1.msra.mxu0 0.0
        %3380 = vmatprep.subr.mxu0 0.0
        %3381 = vmatpush1.msra.mxu0 0.0
        %3382 = vmatprep.subr.mxu0 0.0
        %3383 = vmatpush1.msra.mxu0 0.0
        %3384 = vmatprep.subr.mxu0 0.0
        %3385 = vmatpush1.msra.mxu0 0.0
        %3386 = vmatprep.subr.mxu0 0.0
        %3387 = vmatpush1.msra.mxu0 0.0
        %3388 = vmatprep.subr.mxu0 0.0
        %3389 = vmatpush1.msra.mxu0 0.0
        %3390 = vmatprep.subr.mxu0 0.0
        %3391 = vmatpush1.msra.mxu0 0.0
        %3392 = vmatprep.subr.mxu0 0.0
        %3393 = vmatpush1.msra.mxu0 0.0
        %3394 = vmatprep.subr.mxu0 0.0
        %3395 = vmatpush1.msra.mxu0 0.0
        %3396 = vmatprep.subr.mxu0 0.0
        %3397 = vmatpush1.msra.mxu0 0.0
        %3398 = vmatprep.subr.mxu0 0.0
        %3399 = vmatpush1.msra.mxu0 0.0
        %3400 = vmatprep.subr.mxu0 0.0
        %3401 = vmatpush1.msra.mxu0 0.0
        %3402 = vmatprep.subr.mxu0 0.0
        %3403 = vmatpush1.msra.mxu0 0.0
        %3404 = vmatprep.subr.mxu0 0.0
        %3405 = vmatpush1.msra.mxu0 0.0
        %3406 = vmatprep.subr.mxu0 0.0
        %3407 = vmatpush1.msra.mxu0 0.0
        %3408 = vmatprep.subr.mxu0 0.0
        %3409 = vmatpush1.msra.mxu0 0.0
        %3410 = vmatprep.subr.mxu0 0.0
        %3411 = vmatpush1.msra.mxu0 0.0
        %3412 = vmatprep.subr.mxu0 0.0
        %3413 = vmatpush1.msra.mxu0 0.0
        %3414 = vmatprep.subr.mxu0 0.0
        %3415 = vmatpush1.msra.mxu0 0.0
        %3416 = vmatprep.subr.mxu0 0.0
        %3417 = vmatpush1.msra.mxu0 0.0
        %3418 = vmatprep.subr.mxu0 0.0
        %3419 = vmatpush1.msra.mxu0 0.0
        %3420 = vmatprep.subr.mxu0 0.0
        %3421 = vmatpush1.msra.mxu0 0.0
        %3422 = vmatprep.subr.mxu0 0.0
        %3423 = vmatpush1.msra.mxu0 0.0
        %3424 = vmatprep.subr.mxu0 0.0
        %3425 = vmatpush1.msra.mxu0 0.0
        %3426 = vmatprep.subr.mxu0 0.0
        %3427 = vmatpush1.msra.mxu0 0.0
        %3428 = vmatprep.subr.mxu0 0.0
        %3429 = vmatpush1.msra.mxu0 0.0
        %3430 = vmatprep.mubr.f32.mxu0 0.0
        %3431 = vmatmul.mubr.f32.gmra.mrb[0].mxu0 %v3361
        %v3432 = vpop.f32.mrb[0].mxu0
        %v3433 = vadd.f32 0.0, %v3432
        %v3434 = vpop.f32.mrb[0].mxu0
        %3435 = vmatprep.mubr.f32.mxu0 0.0
        %3436 = vmatmul.mubr.f32.gmra.mrb[0].mxu0 %v3364
        %v3437 = vpop.f32.mrb[0].mxu0
        %v3438 = vadd.f32 0.0, %v3437
        %v3439 = vpop.f32.mrb[0].mxu0
        %3440 = vdwg.mxu0
        %v3442 = vsel %vm3190, %v3275, 0
        %v3445 = vsel %vm3190, %v3276, 0
        %3447 = vmatprep.subr.mxu0 0.0
        %3448 = vmatpush1.msra.mxu0 %v2853
        %3449 = vmatprep.subr.mxu0 0.0
        %3450 = vmatpush1.msra.mxu0 0.0
        %3451 = vmatprep.subr.mxu0 0.0
        %3452 = vmatpush1.msra.mxu0 0.0
        %3453 = vmatprep.subr.mxu0 0.0
        %3454 = vmatpush1.msra.mxu0 0.0
        %3455 = vmatprep.subr.mxu0 0.0
        %3456 = vmatpush1.msra.mxu0 0.0
        %3457 = vmatprep.subr.mxu0 0.0
        %3458 = vmatpush1.msra.mxu0 0.0
        %3459 = vmatprep.subr.mxu0 0.0
        %3460 = vmatpush1.msra.mxu0 0.0
        %3461 = vmatprep.subr.mxu0 0.0
        %3462 = vmatpush1.msra.mxu0 0.0
        %3463 = vmatprep.subr.mxu0 0.0
        %3464 = vmatpush1.msra.mxu0 0.0
        %3465 = vmatprep.subr.mxu0 0.0
        %3466 = vmatpush1.msra.mxu0 0.0
        %3467 = vmatprep.subr.mxu0 0.0
        %3468 = vmatpush1.msra.mxu0 0.0
        %3469 = vmatprep.subr.mxu0 0.0
        %3470 = vmatpush1.msra.mxu0 0.0
        %3471 = vmatprep.subr.mxu0 0.0
        %3472 = vmatpush1.msra.mxu0 0.0
        %3473 = vmatprep.subr.mxu0 0.0
        %3474 = vmatpush1.msra.mxu0 0.0
        %3475 = vmatprep.subr.mxu0 0.0
        %3476 = vmatpush1.msra.mxu0 0.0
        %3477 = vmatprep.subr.mxu0 0.0
        %3478 = vmatpush1.msra.mxu0 0.0
        %3479 = vmatprep.subr.mxu0 0.0
        %3480 = vmatpush1.msra.mxu0 0.0
        %3481 = vmatprep.subr.mxu0 0.0
        %3482 = vmatpush1.msra.mxu0 0.0
        %3483 = vmatprep.subr.mxu0 0.0
        %3484 = vmatpush1.msra.mxu0 0.0
        %3485 = vmatprep.subr.mxu0 0.0
        %3486 = vmatpush1.msra.mxu0 0.0
        %3487 = vmatprep.subr.mxu0 0.0
        %3488 = vmatpush1.msra.mxu0 0.0
        %3489 = vmatprep.subr.mxu0 0.0
        %3490 = vmatpush1.msra.mxu0 0.0
        %3491 = vmatprep.subr.mxu0 0.0
        %3492 = vmatpush1.msra.mxu0 0.0
        %3493 = vmatprep.subr.mxu0 0.0
        %3494 = vmatpush1.msra.mxu0 0.0
        %3495 = vmatprep.subr.mxu0 0.0
        %3496 = vmatpush1.msra.mxu0 0.0
        %3497 = vmatprep.subr.mxu0 0.0
        %3498 = vmatpush1.msra.mxu0 0.0
        %3499 = vmatprep.subr.mxu0 0.0
        %3500 = vmatpush1.msra.mxu0 0.0
        %3501 = vmatprep.subr.mxu0 0.0
        %3502 = vmatpush1.msra.mxu0 0.0
        %3503 = vmatprep.subr.mxu0 0.0
        %3504 = vmatpush1.msra.mxu0 0.0
        %3505 = vmatprep.subr.mxu0 0.0
        %3506 = vmatpush1.msra.mxu0 0.0
        %3507 = vmatprep.subr.mxu0 0.0
        %3508 = vmatpush1.msra.mxu0 0.0
        %3509 = vmatprep.subr.mxu0 0.0
        %3510 = vmatpush1.msra.mxu0 0.0
        %3511 = vmatprep.mubr.f32.mxu0 0.0
        %3512 = vmatmul.mubr.f32.gmra.mrb[0].mxu0 %v3442
        %v3513 = vpop.f32.mrb[0].mxu0
        %v3514 = vadd.f32 0.0, %v3513
        %v3515 = vpop.f32.mrb[0].mxu0
        %3516 = vmatprep.mubr.f32.mxu0 0.0
        %3517 = vmatmul.mubr.f32.gmra.mrb[0].mxu0 %v3445
        %v3518 = vpop.f32.mrb[0].mxu0
        %v3519 = vadd.f32 0.0, %v3518
        %v3520 = vpop.f32.mrb[0].mxu0
        %3521 = vdwg.mxu0
        %v3523 = vsel %vm3190, %v3277, 0
        %v3526 = vsel %vm3190, %v3278, 0
        %3528 = vmatprep.subr.mxu0 0.0
        %3529 = vmatpush1.msra.mxu0 %v2856
        %3530 = vmatprep.subr.mxu0 0.0
        %3531 = vmatpush1.msra.mxu0 0.0
        %3532 = vmatprep.subr.mxu0 0.0
        %3533 = vmatpush1.msra.mxu0 0.0
        %3534 = vmatprep.subr.mxu0 0.0
        %3535 = vmatpush1.msra.mxu0 0.0
        %3536 = vmatprep.subr.mxu0 0.0
        %3537 = vmatpush1.msra.mxu0 0.0
        %3538 = vmatprep.subr.mxu0 0.0
        %3539 = vmatpush1.msra.mxu0 0.0
        %3540 = vmatprep.subr.mxu0 0.0
        %3541 = vmatpush1.msra.mxu0 0.0
        %3542 = vmatprep.subr.mxu0 0.0
        %3543 = vmatpush1.msra.mxu0 0.0
        %3544 = vmatprep.subr.mxu0 0.0
        %3545 = vmatpush1.msra.mxu0 0.0
        %3546 = vmatprep.subr.mxu0 0.0
        %3547 = vmatpush1.msra.mxu0 0.0
        %3548 = vmatprep.subr.mxu0 0.0
        %3549 = vmatpush1.msra.mxu0 0.0
        %3550 = vmatprep.subr.mxu0 0.0
        %3551 = vmatpush1.msra.mxu0 0.0
        %3552 = vmatprep.subr.mxu0 0.0
        %3553 = vmatpush1.msra.mxu0 0.0
        %3554 = vmatprep.subr.mxu0 0.0
        %3555 = vmatpush1.msra.mxu0 0.0
        %3556 = vmatprep.subr.mxu0 0.0
        %3557 = vmatpush1.msra.mxu0 0.0
        %3558 = vmatprep.subr.mxu0 0.0
        %3559 = vmatpush1.msra.mxu0 0.0
        %3560 = vmatprep.subr.mxu0 0.0
        %3561 = vmatpush1.msra.mxu0 0.0
        %3562 = vmatprep.subr.mxu0 0.0
        %3563 = vmatpush1.msra.mxu0 0.0
        %3564 = vmatprep.subr.mxu0 0.0
        %3565 = vmatpush1.msra.mxu0 0.0
        %3566 = vmatprep.subr.mxu0 0.0
        %3567 = vmatpush1.msra.mxu0 0.0
        %3568 = vmatprep.subr.mxu0 0.0
        %3569 = vmatpush1.msra.mxu0 0.0
        %3570 = vmatprep.subr.mxu0 0.0
        %3571 = vmatpush1.msra.mxu0 0.0
        %3572 = vmatprep.subr.mxu0 0.0
        %3573 = vmatpush1.msra.mxu0 0.0
        %3574 = vmatprep.subr.mxu0 0.0
        %3575 = vmatpush1.msra.mxu0 0.0
        %3576 = vmatprep.subr.mxu0 0.0
        %3577 = vmatpush1.msra.mxu0 0.0
        %3578 = vmatprep.subr.mxu0 0.0
        %3579 = vmatpush1.msra.mxu0 0.0
        %3580 = vmatprep.subr.mxu0 0.0
        %3581 = vmatpush1.msra.mxu0 0.0
        %3582 = vmatprep.subr.mxu0 0.0
        %3583 = vmatpush1.msra.mxu0 0.0
        %3584 = vmatprep.subr.mxu0 0.0
        %3585 = vmatpush1.msra.mxu0 0.0
        %3586 = vmatprep.subr.mxu0 0.0
        %3587 = vmatpush1.msra.mxu0 0.0
        %3588 = vmatprep.subr.mxu0 0.0
        %3589 = vmatpush1.msra.mxu0 0.0
        %3590 = vmatprep.subr.mxu0 0.0
        %3591 = vmatpush1.msra.mxu0 0.0
        %3592 = vmatprep.mubr.f32.mxu0 0.0
        %3593 = vmatmul.mubr.f32.gmra.mrb[0].mxu0 %v3523
        %v3594 = vpop.f32.mrb[0].mxu0
        %v3595 = vadd.f32 0.0, %v3594
        %v3596 = vpop.f32.mrb[0].mxu0
        %3597 = vmatprep.mubr.f32.mxu0 0.0
        %3598 = vmatmul.mubr.f32.gmra.mrb[0].mxu0 %v3526
        %v3599 = vpop.f32.mrb[0].mxu0
        %v3600 = vadd.f32 0.0, %v3599
        %v3601 = vpop.f32.mrb[0].mxu0
        %3602 = vdwg.mxu0
        %3603 = vst.msk [vmem:[#allocation2] sm:$0xff] %vm1603, %v3352
        %3604 = vst.msk [vmem:[#allocation2 + $0x8] sm:$0xff] %vm1603, %v3357
        %3607 = vrot.lane.b32.xlu0 %v3433, 32
        %v3608 = vpop.permute.xlu0 %3607
        %3609 = vrot.lane.b32.xlu0 %v3438, 32
        %v3610 = vpop.permute.xlu0 %3609
        %3613 = vst.msk [vmem:[#allocation2] sm:$0xff] %vm2375, %v3608
        %3614 = vst.msk [vmem:[#allocation2 + $0x8] sm:$0xff] %vm2375, %v3610
        %3617 = vrot.lane.b32.xlu0 %v3514, 64
        %v3618 = vpop.permute.xlu0 %3617
        %3619 = vrot.lane.b32.xlu0 %v3519, 64
        %v3620 = vpop.permute.xlu0 %3619
        %3623 = vst.msk [vmem:[#allocation2] sm:$0xff] %vm2386, %v3618
        %3624 = vst.msk [vmem:[#allocation2 + $0x8] sm:$0xff] %vm2386, %v3620
        %3627 = vrot.lane.b32.xlu0 %v3595, 96
        %v3628 = vpop.permute.xlu0 %3627
        %3629 = vrot.lane.b32.xlu0 %v3600, 96
        %v3630 = vpop.permute.xlu0 %3629
        %3633 = vst.msk [vmem:[#allocation2] sm:$0xff] %vm2397, %v3628
        %3634 = vst.msk [vmem:[#allocation2 + $0x8] sm:$0xff] %vm2397, %v3630
        %v3635 = vld [vmem:[#allocation2] sm:$0xff]
        %v3636 = vld [vmem:[#allocation2 + $0x8] sm:$0xff]
        %v3638 = vlaneseq
        %v3639 = vshrl.u32 %v3638, 7
        %v3640 = vsub.s32 0, %v3639
        %v3641 = vrot.slane %v2593, %v3640
        %3643 = vmatprep.subr.mxu0 0.0
        %3644 = vmatpush1.msra.mxu0 %v2577
        %3645 = vmatprep.subr.mxu0 0.0
        %3646 = vmatpush1.msra.mxu0 %v2578
        %3647 = vmatprep.subr.mxu0 0.0
        %3648 = vmatpush1.msra.mxu0 %v2579
        %3649 = vmatprep.subr.mxu0 0.0
        %3650 = vmatpush1.msra.mxu0 %v2580
        %3651 = vmatprep.subr.mxu0 0.0
        %3652 = vmatpush1.msra.mxu0 %v2581
        %3653 = vmatprep.subr.mxu0 0.0
        %3654 = vmatpush1.msra.mxu0 %v2582
        %3655 = vmatprep.subr.mxu0 0.0
        %3656 = vmatpush1.msra.mxu0 %v2583
        %3657 = vmatprep.subr.mxu0 0.0
        %3658 = vmatpush1.msra.mxu0 %v2584
        %3659 = vmatprep.subr.mxu0 0.0
        %3660 = vmatpush1.msra.mxu0 %v2585
        %3661 = vmatprep.subr.mxu0 0.0
        %3662 = vmatpush1.msra.mxu0 %v2586
        %3663 = vmatprep.subr.mxu0 0.0
        %3664 = vmatpush1.msra.mxu0 %v2587
        %3665 = vmatprep.subr.mxu0 0.0
        %3666 = vmatpush1.msra.mxu0 %v2588
        %3667 = vmatprep.subr.mxu0 0.0
        %3668 = vmatpush1.msra.mxu0 %v2589
        %3669 = vmatprep.subr.mxu0 0.0
        %3670 = vmatpush1.msra.mxu0 %v2590
        %3671 = vmatprep.subr.mxu0 0.0
        %3672 = vmatpush1.msra.mxu0 %v2591
        %3673 = vmatprep.subr.mxu0 0.0
        %3674 = vmatpush1.msra.mxu0 %v2592
        %3675 = vmatprep.subr.mxu0 0.0
        %3676 = vmatpush1.msra.mxu0 0.0
        %3677 = vmatprep.subr.mxu0 0.0
        %3678 = vmatpush1.msra.mxu0 0.0
        %3679 = vmatprep.subr.mxu0 0.0
        %3680 = vmatpush1.msra.mxu0 0.0
        %3681 = vmatprep.subr.mxu0 0.0
        %3682 = vmatpush1.msra.mxu0 0.0
        %3683 = vmatprep.subr.mxu0 0.0
        %3684 = vmatpush1.msra.mxu0 0.0
        %3685 = vmatprep.subr.mxu0 0.0
        %3686 = vmatpush1.msra.mxu0 0.0
        %3687 = vmatprep.subr.mxu0 0.0
        %3688 = vmatpush1.msra.mxu0 0.0
        %3689 = vmatprep.subr.mxu0 0.0
        %3690 = vmatpush1.msra.mxu0 0.0
        %3691 = vmatprep.subr.mxu0 0.0
        %3692 = vmatpush1.msra.mxu0 0.0
        %3693 = vmatprep.subr.mxu0 0.0
        %3694 = vmatpush1.msra.mxu0 0.0
        %3695 = vmatprep.subr.mxu0 0.0
        %3696 = vmatpush1.msra.mxu0 0.0
        %3697 = vmatprep.subr.mxu0 0.0
        %3698 = vmatpush1.msra.mxu0 0.0
        %3699 = vmatprep.subr.mxu0 0.0
        %3700 = vmatpush1.msra.mxu0 0.0
        %3701 = vmatprep.subr.mxu0 0.0
        %3702 = vmatpush1.msra.mxu0 0.0
        %3703 = vmatprep.subr.mxu0 0.0
        %3704 = vmatpush1.msra.mxu0 0.0
        %3705 = vmatprep.subr.mxu0 0.0
        %3706 = vmatpush1.msra.mxu0 0.0
        %3707 = vmatprep.mubr.f32.mxu0 0.0
        %3708 = vmatmul.mubr.f32.gmra.mrb[0].mxu0 %v3635
        %v3709 = vpop.f32.mrb[0].mxu0
        %v3710 = vadd.f32 %v3641, %v3709
        %v3711 = vpop.f32.mrb[0].mxu0
        %3712 = vmatprep.mubr.f32.mxu0 0.0
        %3713 = vmatmul.mubr.f32.gmra.mrb[0].mxu0 %v3636
        %v3714 = vpop.f32.mrb[0].mxu0
        %v3715 = vadd.f32 %v3641, %v3714
        %v3716 = vpop.f32.mrb[0].mxu0
        %3717 = vdwg.mxu0
        %v3718 = vadd.f32 %v2523, %v3710
        %v3719 = vadd.f32 %v2524, %v3715
        %v3720 = vld [vmem:[%s15] sm:$0x1]
        %v3721 = vld [vmem:[%s17] sm:$0x1]
        %3722 = vadd.xlane.f32.xlu0 %v3718
        %v3723 = vpop.xlane.xlu0 %3722
        %3724 = vadd.xlane.f32.xlu0 %v3719
        %v3725 = vpop.xlane.xlu0 %3724
        %v3726 = vmul.f32 %v3723, %v1181
        %v3727 = vmul.f32 %v3725, %v1181
        %v3728 = vsub.f32 %v3718, %v3726
        %v3729 = vsub.f32 %v3719, %v3727
        %v3730 = vmul.f32 %v3728, %v3728
        %v3731 = vmul.f32 %v3729, %v3729
        %3732 = vadd.xlane.f32.xlu0 %v3730
        %v3733 = vpop.xlane.xlu0 %3732
        %3734 = vadd.xlane.f32.xlu0 %v3731
        %v3735 = vpop.xlane.xlu0 %3734
        %v3736 = vmul.f32 %v3733, %v1181
        %v3737 = vmul.f32 %v3735, %v1181
        %v3738 = vadd.f32 %v3736, 1e-05
        %v3739 = vadd.f32 %v3737, 1e-05
        %v3740 = vrsqrt.pop %v3738
        %v3741 = vrsqrt.pop %v3739
        %v3742 = vmul.f32 %v3728, %v3740
        %v3743 = vmul.f32 %v3729, %v3741
        %v3745 = vlaneseq
        %v3746 = vshrl.u32 %v3745, 7
        %v3747 = vsub.s32 0, %v3746
        %v3748 = vrot.slane %v3720, %v3747
        %v3750 = vmul.f32 %v3742, %v3748
        %v3751 = vmul.f32 %v3743, %v3748
        %v3753 = vlaneseq
        %v3754 = vshrl.u32 %v3753, 7
        %v3755 = vsub.s32 0, %v3754
        %v3756 = vrot.slane %v3721, %v3755
        %v3758 = vadd.f32 %v3750, %v3756
        %v3759 = vadd.f32 %v3751, %v3756
        %v3760 = vld [vmem:[%s57] sm:$0x1]
        %v3762 = vlaneseq
        %v3763 = vshrl.u32 %v3762, 7
        %v3764 = vsub.s32 0, %v3763
        %v3765 = vrot.slane %v3760, %v3764
        %v3767 = vadd.f32 %v3758, %v3765
        %v3768 = vadd.f32 %v3759, %v3765
        %v3769 = vld [vmem:[#allocation21] sm:$0xff]
        %v3770 = vld [vmem:[#allocation21 + $0x8] sm:$0xff]
        %v3771 = vld [vmem:[#allocation21 + $0x10] sm:$0xff]
        %v3772 = vld [vmem:[#allocation21 + $0x18] sm:$0xff]
        %v3773 = vld [vmem:[#allocation21 + $0x20] sm:$0xff]
        %v3774 = vld [vmem:[#allocation21 + $0x28] sm:$0xff]
        %v3775 = vld [vmem:[#allocation21 + $0x30] sm:$0xff]
        %v3776 = vld [vmem:[#allocation21 + $0x38] sm:$0xff]
        %v3777 = vld [vmem:[#allocation21 + $0x40] sm:$0xff]
        %v3778 = vld [vmem:[#allocation21 + $0x48] sm:$0xff]
        %v3779 = vld [vmem:[#allocation21 + $0x50] sm:$0xff]
        %v3780 = vld [vmem:[#allocation21 + $0x58] sm:$0xff]
        %v3781 = vld [vmem:[#allocation21 + $0x60] sm:$0xff]
        %v3782 = vld [vmem:[#allocation21 + $0x68] sm:$0xff]
        %v3783 = vld [vmem:[#allocation21 + $0x70] sm:$0xff]
        %v3784 = vld [vmem:[#allocation21 + $0x78] sm:$0xff]
        %v3785 = vld [vmem:[#allocation21 + $0x80] sm:$0xff]
        %v3786 = vld [vmem:[#allocation21 + $0x88] sm:$0xff]
        %v3787 = vld [vmem:[#allocation21 + $0x90] sm:$0xff]
        %v3788 = vld [vmem:[#allocation21 + $0x98] sm:$0xff]
        %v3789 = vld [vmem:[#allocation21 + $0xa0] sm:$0xff]
        %v3790 = vld [vmem:[#allocation21 + $0xa8] sm:$0xff]
        %v3791 = vld [vmem:[#allocation21 + $0xb0] sm:$0xff]
        %v3792 = vld [vmem:[#allocation21 + $0xb8] sm:$0xff]
        %v3793 = vld [vmem:[#allocation21 + $0xc0] sm:$0xff]
        %v3794 = vld [vmem:[#allocation21 + $0xc8] sm:$0xff]
        %v3795 = vld [vmem:[#allocation21 + $0xd0] sm:$0xff]
        %v3796 = vld [vmem:[#allocation21 + $0xd8] sm:$0xff]
        %v3797 = vld [vmem:[#allocation21 + $0xe0] sm:$0xff]
        %v3798 = vld [vmem:[#allocation21 + $0xe8] sm:$0xff]
        %v3799 = vld [vmem:[#allocation21 + $0xf0] sm:$0xff]
        %v3800 = vld [vmem:[#allocation21 + $0xf8] sm:$0xff]
        %v3801 = vld [vmem:[%s53] sm:$0x3]
        %v3803 = vlaneseq
        %v3804 = vshrl.u32 %v3803, 7
        %v3805 = vsub.s32 0, %v3804
        %v3806 = vrot.slane %v3801, %v3805
        %v3807 = vlaneseq
        %v3808 = vshrl.u32 %v3807, 7
        %v3809 = vsub.s32 1, %v3808
        %v3810 = vrot.slane %v3801, %v3809
        %3813 = vmatprep.subr.mxu0 %v3770
        %3814 = vmatpush1.msra.mxu0 %v3769
        %3815 = vmatprep.subr.mxu0 %v3772
        %3816 = vmatpush1.msra.mxu0 %v3771
        %3817 = vmatprep.subr.mxu0 %v3774
        %3818 = vmatpush1.msra.mxu0 %v3773
        %3819 = vmatprep.subr.mxu0 %v3776
        %3820 = vmatpush1.msra.mxu0 %v3775
        %3821 = vmatprep.subr.mxu0 %v3778
        %3822 = vmatpush1.msra.mxu0 %v3777
        %3823 = vmatprep.subr.mxu0 %v3780
        %3824 = vmatpush1.msra.mxu0 %v3779
        %3825 = vmatprep.subr.mxu0 %v3782
        %3826 = vmatpush1.msra.mxu0 %v3781
        %3827 = vmatprep.subr.mxu0 %v3784
        %3828 = vmatpush1.msra.mxu0 %v3783
        %3829 = vmatprep.subr.mxu0 %v3786
        %3830 = vmatpush1.msra.mxu0 %v3785
        %3831 = vmatprep.subr.mxu0 %v3788
        %3832 = vmatpush1.msra.mxu0 %v3787
        %3833 = vmatprep.subr.mxu0 %v3790
        %3834 = vmatpush1.msra.mxu0 %v3789
        %3835 = vmatprep.subr.mxu0 %v3792
        %3836 = vmatpush1.msra.mxu0 %v3791
        %3837 = vmatprep.subr.mxu0 %v3794
        %3838 = vmatpush1.msra.mxu0 %v3793
        %3839 = vmatprep.subr.mxu0 %v3796
        %3840 = vmatpush1.msra.mxu0 %v3795
        %3841 = vmatprep.subr.mxu0 %v3798
        %3842 = vmatpush1.msra.mxu0 %v3797
        %3843 = vmatprep.subr.mxu0 %v3800
        %3844 = vmatpush1.msra.mxu0 %v3799
        %3845 = vmatprep.subr.mxu0 0.0
        %3846 = vmatpush1.msra.mxu0 0.0
        %3847 = vmatprep.subr.mxu0 0.0
        %3848 = vmatpush1.msra.mxu0 0.0
        %3849 = vmatprep.subr.mxu0 0.0
        %3850 = vmatpush1.msra.mxu0 0.0
        %3851 = vmatprep.subr.mxu0 0.0
        %3852 = vmatpush1.msra.mxu0 0.0
        %3853 = vmatprep.subr.mxu0 0.0
        %3854 = vmatpush1.msra.mxu0 0.0
        %3855 = vmatprep.subr.mxu0 0.0
        %3856 = vmatpush1.msra.mxu0 0.0
        %3857 = vmatprep.subr.mxu0 0.0
        %3858 = vmatpush1.msra.mxu0 0.0
        %3859 = vmatprep.subr.mxu0 0.0
        %3860 = vmatpush1.msra.mxu0 0.0
        %3861 = vmatprep.subr.mxu0 0.0
        %3862 = vmatpush1.msra.mxu0 0.0
        %3863 = vmatprep.subr.mxu0 0.0
        %3864 = vmatpush1.msra.mxu0 0.0
        %3865 = vmatprep.subr.mxu0 0.0
        %3866 = vmatpush1.msra.mxu0 0.0
        %3867 = vmatprep.subr.mxu0 0.0
        %3868 = vmatpush1.msra.mxu0 0.0
        %3869 = vmatprep.subr.mxu0 0.0
        %3870 = vmatpush1.msra.mxu0 0.0
        %3871 = vmatprep.subr.mxu0 0.0
        %3872 = vmatpush1.msra.mxu0 0.0
        %3873 = vmatprep.subr.mxu0 0.0
        %3874 = vmatpush1.msra.mxu0 0.0
        %3875 = vmatprep.subr.mxu0 0.0
        %3876 = vmatpush1.msra.mxu0 0.0
        %3877 = vmatprep.mubr.f32.mxu0 0.0
        %3878 = vmatmul.mubr.f32.gmra.mrb[0].mxu0 %v3758
        %v3879 = vpop.f32.mrb[0].mxu0
        %v3880 = vadd.f32 %v3806, %v3879
        %v3881 = vpop.f32.mrb[0].mxu0
        %v3882 = vadd.f32 %v3810, %v3881
        %3883 = vmatprep.mubr.f32.mxu0 0.0
        %3884 = vmatmul.mubr.f32.gmra.mrb[0].mxu0 %v3759
        %v3885 = vpop.f32.mrb[0].mxu0
        %v3886 = vadd.f32 %v3806, %v3885
        %v3887 = vpop.f32.mrb[0].mxu0
        %v3888 = vadd.f32 %v3810, %v3887
        %3889 = vdwg.mxu0
        %v3890 = vmul.f32 %v3880, 0.5
        %v3891 = vmul.f32 %v3882, 0.5
        %v3892 = vmul.f32 %v3886, 0.5
        %v3893 = vmul.f32 %v3888, 0.5
        %v3894 = vmul.f32 %v3880, 0.70710677
        %v3895 = vmul.f32 %v3882, 0.70710677
        %v3896 = vmul.f32 %v3886, 0.70710677
        %v3897 = vmul.f32 %v3888, 0.70710677
        %v3898 = verf.f32.pop %v3894
        %v3899 = verf.f32.pop %v3895
        %v3900 = verf.f32.pop %v3896
        %v3901 = verf.f32.pop %v3897
        %v3902 = vadd.f32 %v3898, 1.0
        %v3903 = vadd.f32 %v3899, 1.0
        %v3904 = vadd.f32 %v3900, 1.0
        %v3905 = vadd.f32 %v3901, 1.0
        %v3906 = vmul.f32 %v3890, %v3902
        %v3907 = vmul.f32 %v3891, %v3903
        %v3908 = vmul.f32 %v3892, %v3904
        %v3909 = vmul.f32 %v3893, %v3905
        %v3910 = vld [vmem:[#allocation23] sm:$0xff]
        %v3911 = vld [vmem:[#allocation23 + $0x8] sm:$0xff]
        %v3912 = vld [vmem:[#allocation23 + $0x10] sm:$0xff]
        %v3913 = vld [vmem:[#allocation23 + $0x18] sm:$0xff]
        %v3914 = vld [vmem:[#allocation23 + $0x20] sm:$0xff]
        %v3915 = vld [vmem:[#allocation23 + $0x28] sm:$0xff]
        %v3916 = vld [vmem:[#allocation23 + $0x30] sm:$0xff]
        %v3917 = vld [vmem:[#allocation23 + $0x38] sm:$0xff]
        %v3918 = vld [vmem:[#allocation23 + $0x40] sm:$0xff]
        %v3919 = vld [vmem:[#allocation23 + $0x48] sm:$0xff]
        %v3920 = vld [vmem:[#allocation23 + $0x50] sm:$0xff]
        %v3921 = vld [vmem:[#allocation23 + $0x58] sm:$0xff]
        %v3922 = vld [vmem:[#allocation23 + $0x60] sm:$0xff]
        %v3923 = vld [vmem:[#allocation23 + $0x68] sm:$0xff]
        %v3924 = vld [vmem:[#allocation23 + $0x70] sm:$0xff]
        %v3925 = vld [vmem:[#allocation23 + $0x78] sm:$0xff]
        %v3926 = vld [vmem:[#allocation23 + $0x80] sm:$0xff]
        %v3927 = vld [vmem:[#allocation23 + $0x88] sm:$0xff]
        %v3928 = vld [vmem:[#allocation23 + $0x90] sm:$0xff]
        %v3929 = vld [vmem:[#allocation23 + $0x98] sm:$0xff]
        %v3930 = vld [vmem:[#allocation23 + $0xa0] sm:$0xff]
        %v3931 = vld [vmem:[#allocation23 + $0xa8] sm:$0xff]
        %v3932 = vld [vmem:[#allocation23 + $0xb0] sm:$0xff]
        %v3933 = vld [vmem:[#allocation23 + $0xb8] sm:$0xff]
        %v3934 = vld [vmem:[#allocation23 + $0xc0] sm:$0xff]
        %v3935 = vld [vmem:[#allocation23 + $0xc8] sm:$0xff]
        %v3936 = vld [vmem:[#allocation23 + $0xd0] sm:$0xff]
        %v3937 = vld [vmem:[#allocation23 + $0xd8] sm:$0xff]
        %v3938 = vld [vmem:[#allocation23 + $0xe0] sm:$0xff]
        %v3939 = vld [vmem:[#allocation23 + $0xe8] sm:$0xff]
        %v3940 = vld [vmem:[#allocation23 + $0xf0] sm:$0xff]
        %v3941 = vld [vmem:[#allocation23 + $0xf8] sm:$0xff]
        %3942 = vmatprep.subr.mxu0 0.0
        %3943 = vmatpush1.msra.mxu0 %v3910
        %3944 = vmatprep.subr.mxu0 0.0
        %3945 = vmatpush1.msra.mxu0 %v3911
        %3946 = vmatprep.subr.mxu0 0.0
        %3947 = vmatpush1.msra.mxu0 %v3912
        %3948 = vmatprep.subr.mxu0 0.0
        %3949 = vmatpush1.msra.mxu0 %v3913
        %3950 = vmatprep.subr.mxu0 0.0
        %3951 = vmatpush1.msra.mxu0 %v3914
        %3952 = vmatprep.subr.mxu0 0.0
        %3953 = vmatpush1.msra.mxu0 %v3915
        %3954 = vmatprep.subr.mxu0 0.0
        %3955 = vmatpush1.msra.mxu0 %v3916
        %3956 = vmatprep.subr.mxu0 0.0
        %3957 = vmatpush1.msra.mxu0 %v3917
        %3958 = vmatprep.subr.mxu0 0.0
        %3959 = vmatpush1.msra.mxu0 %v3918
        %3960 = vmatprep.subr.mxu0 0.0
        %3961 = vmatpush1.msra.mxu0 %v3919
        %3962 = vmatprep.subr.mxu0 0.0
        %3963 = vmatpush1.msra.mxu0 %v3920
        %3964 = vmatprep.subr.mxu0 0.0
        %3965 = vmatpush1.msra.mxu0 %v3921
        %3966 = vmatprep.subr.mxu0 0.0
        %3967 = vmatpush1.msra.mxu0 %v3922
        %3968 = vmatprep.subr.mxu0 0.0
        %3969 = vmatpush1.msra.mxu0 %v3923
        %3970 = vmatprep.subr.mxu0 0.0
        %3971 = vmatpush1.msra.mxu0 %v3924
        %3972 = vmatprep.subr.mxu0 0.0
        %3973 = vmatpush1.msra.mxu0 %v3925
        %3974 = vmatprep.subr.mxu0 0.0
        %3975 = vmatpush1.msra.mxu0 %v3926
        %3976 = vmatprep.subr.mxu0 0.0
        %3977 = vmatpush1.msra.mxu0 %v3927
        %3978 = vmatprep.subr.mxu0 0.0
        %3979 = vmatpush1.msra.mxu0 %v3928
        %3980 = vmatprep.subr.mxu0 0.0
        %3981 = vmatpush1.msra.mxu0 %v3929
        %3982 = vmatprep.subr.mxu0 0.0
        %3983 = vmatpush1.msra.mxu0 %v3930
        %3984 = vmatprep.subr.mxu0 0.0
        %3985 = vmatpush1.msra.mxu0 %v3931
        %3986 = vmatprep.subr.mxu0 0.0
        %3987 = vmatpush1.msra.mxu0 %v3932
        %3988 = vmatprep.subr.mxu0 0.0
        %3989 = vmatpush1.msra.mxu0 %v3933
        %3990 = vmatprep.subr.mxu0 0.0
        %3991 = vmatpush1.msra.mxu0 %v3934
        %3992 = vmatprep.subr.mxu0 0.0
        %3993 = vmatpush1.msra.mxu0 %v3935
        %3994 = vmatprep.subr.mxu0 0.0
        %3995 = vmatpush1.msra.mxu0 %v3936
        %3996 = vmatprep.subr.mxu0 0.0
        %3997 = vmatpush1.msra.mxu0 %v3937
        %3998 = vmatprep.subr.mxu0 0.0
        %3999 = vmatpush1.msra.mxu0 %v3938
        %4000 = vmatprep.subr.mxu0 0.0
        %4001 = vmatpush1.msra.mxu0 %v3939
        %4002 = vmatprep.subr.mxu0 0.0
        %4003 = vmatpush1.msra.mxu0 %v3940
        %4004 = vmatprep.subr.mxu0 0.0
        %4005 = vmatpush1.msra.mxu0 %v3941
        %4006 = vmatprep.mubr.f32.mxu0 %v3907
        %4007 = vmatmul.mubr.f32.gmra.mrb[0].mxu0 %v3906
        %v4008 = vpop.f32.mrb[0].mxu0
        %v4009 = vadd.f32 0.0, %v4008
        %v4010 = vpop.f32.mrb[0].mxu0
        %4011 = vmatprep.mubr.f32.mxu0 %v3909
        %4012 = vmatmul.mubr.f32.gmra.mrb[0].mxu0 %v3908
        %v4013 = vpop.f32.mrb[0].mxu0
        %v4014 = vadd.f32 0.0, %v4013
        %v4015 = vpop.f32.mrb[0].mxu0
        %4016 = vdwg.mxu0
        %v4017 = vadd.f32 %v3767, %v4009
        %v4018 = vadd.f32 %v3768, %v4014
        %4019 = vst [vmem:[%s1157] sm:$0xff] %v4017
        %4020 = vst [vmem:[%s1157 + $0x8] sm:$0xff] %v4018
        %s4021 = sand.u32 %s732, 1
        %s4022 = scalar_lea.sflag [#allocation5], %s4021
        %s4023 = sand.u32 %s732, 1
        %s4024 = smul.addr %s4023, 16
        %s4025 = scalar_lea.vmem [#allocation24], %s4024
        // Predicated region
        $region189: #{tpu_custom_call.1} parent=135 // pred_check
          %p4026 = pneg %p742
        $region190: #{tpu_custom_call.1} parent=135 // pred_check_branch
          %4028 = sbr.rel (%p4026) target = $region192
        $region191: #{tpu_custom_call.1} parent=135 // pred_region
          %s4029 = smul.u32 2, %s89
          %s4031 = ssub.s32 256, 256
          %4032 = vsyncadd %s4022, %s4031
          %s4033 = smul.addr %s88, 2
          %s4034 = sadd.s32 %s4029, %s4033
          %s4035 = smul.addr %s4034, 128
          %s4036 = scalar_lea.hbm %s59, %s4035
          %s4037 = sshll.u32 %s4025, 4
          %s4038 = int_to_ptr.vmem [resolvable:$true] %s4037
          %4043 = dma.vmem_to_hbm [thread:$0]  %s4038, 256, %s4036, %s4022, 128, 128, 8
        $region192: #{tpu_custom_call.1} parent=135 // pred_fallthru
          _
      $region136: #{tpu_custom_call.1} parent=5 // pred_fallthru
        _
      %p4044 = scmp.le.s32.totalorder 2, %s79
      // Predicated region
      $region193: #{tpu_custom_call.1} parent=5 // pred_check
        %p4045 = pneg %p4044
      $region194: #{tpu_custom_call.1} parent=5 // pred_check_branch
        %4047 = sbr.rel (%p4045) target = $region196
      $region195: #{tpu_custom_call.1} parent=5 // pred_region
        %s4048 = ssub.s32 %s79, 2
        // Predicated region
        $region197: #{tpu_custom_call.1} parent=195 // pred_check
          %p4049 = pneg %p748
        $region198: #{tpu_custom_call.1} parent=195 // pred_check_branch
          %4051 = sbr.rel (%p4049) target = $region200
        $region199: #{tpu_custom_call.1} parent=195 // pred_region
          %s4052 = sand.u32 %s733, 1
          %s4053 = scalar_lea.sflag [#allocation5], %s4052
          %s4054 = sand.u32 %s733, 1
          %s4055 = smul.addr %s4054, 16
          %s4056 = scalar_lea.vmem [#allocation24], %s4055
          %4057 = dma.done %s4053, 256
        $region200: #{tpu_custom_call.1} parent=195 // pred_fallthru
          _
      $region196: #{tpu_custom_call.1} parent=5 // pred_fallthru
        _
    $region6: #{tpu_custom_call.1} parent=1 // loop_footer
      %s83 = sadd.s32 1, %s79
    $region7: #{tpu_custom_call.1} parent=1 // loop_footer_branch
      %78 = sbr.rel target = $region3
    $region8: #{tpu_custom_call.1} parent=1 // loop_exit
      _
    %4058 = vsyncpa [#allocation4], 1
    %s4059 = scalar_lea.sflag [#allocation4], 1
    %4060 = vsyncpa %s4059, 1
    %4061 = vsyncpa [#allocation7], 1
    %s4062 = scalar_lea.sflag [#allocation7], 1
    %4063 = vsyncpa %s4062, 1
    %4064 = vsyncpa [#allocation10], 1
    %4065 = vsyncpa [#allocation13], 1
    %4066 = vsyncpa [#allocation16], 1
    %4067 = vsyncpa [#allocation19], 1
    %4068 = vsyncpa [#allocation22], 1
    %4069 = vsyncpa [#allocation5], 1
    %s4070 = scalar_lea.sflag [#allocation5], 1
    %4071 = vsyncpa %s4070, 1

</llo_original>
